<compile_context>
chip_gen: v7x
topology: tpu7x:2x2x1
jax: 0.10.0
libtpu: 0.0.40
codegen_flags: <defaults>
</compile_context>

<pallas_src>
import functools
import numpy as np

import jax
import jax.numpy as jnp
from jax.experimental import pallas as pl
from jax.experimental.pallas import tpu as pltpu


# -----------------------------------------------------------------------------
# Static model geometry (kernel_size = 4, per-scale length = 64)
# -----------------------------------------------------------------------------
K = 4                 # conv kernel size
LC = 64               # per-scale length after AdaptiveAvgPool1d(64)
L1 = LC - K + 1       # 61  conv#1 valid positions
P1 = L1 // 2          # 30  after MaxPool1d(2)
P1P = 32              # padded pooled length per segment (4*32 = 128 lanes)
L2 = P1 - K + 1       # 27  conv#2 valid positions
P2 = L2 // 2          # 13  after MaxPool1d(2)
NSCALE = 4
NS = NSCALE * P1P     # 128 lanes per batch block

HIGH = jax.lax.Precision.HIGHEST   # used in the pure-jnp references only


# -----------------------------------------------------------------------------
# Pallas kernels
# -----------------------------------------------------------------------------

def emb_kernel(xu_ref, w_ref, pe_ref, o_ref):
    """DataEmbedding for one batch element: circular Conv1d(k=3) as one matmul.

    xu_ref: (3*c_in, L)  tap-unfolded input        (per-batch block)
    w_ref : (d_model, 3*c_in)                       (resident constant)
    pe_ref: (d_model, L) positional embedding       (resident constant)
    o_ref : (d_model, L)
    """
    o_ref[...] = (jnp.dot(w_ref[...], xu_ref[...],
                          preferred_element_type=jnp.float32) + pe_ref[...])


def _erf(z):
    # Abramowitz & Stegun 7.1.26 rational approximation (max abs err ~1.5e-7).
    a1, a2, a3, a4, a5 = (0.254829592, -0.284496736, 1.421413741,
                          -1.453152027, 1.061405429)
    p = 0.3275911
    sign = jnp.where(z >= 0.0, 1.0, -1.0)
    az = jnp.abs(z)
    t = 1.0 / (1.0 + p * az)          # exact divide (review: no approx recip)
    poly = ((((a5 * t + a4) * t + a3) * t + a2) * t + a1) * t
    return sign * (1.0 - poly * jnp.exp(-az * az))


def _gelu(x):
    # torch.nn.GELU (default, erf-based) -- approximated, see header note.
    return 0.5 * x * (1.0 + _erf(x * np.float32(1.0 / np.sqrt(2.0))))


def fused_tail_kernel(xe_ref, xo_ref, w1_ref, b1_ref, w2s_ref, b2_ref,
                      s2avg_ref, fc1_ref, fc1b_ref, fc2_ref, fc2b_ref,
                      alpha_ref, p1w_ref, p1b_ref, p2w_ref, p2b_ref, o_ref):
    """Fused Multi_CNN + alpha mix + pro for ONE batch element.

    Lane axis holds the 4 scale segments (32 padded pooled positions each).

    xe_ref/xo_ref: (K*d_model, NS)  conv#1 im2col at even / odd pool positions
    w1_ref: (C1, K*d_model)   b1_ref: (C1, 1)
    w2s_ref: (K*C2, C1)       b2_ref: (C2, 1)     (taps stacked on sublanes)
    s2avg_ref: (NS-4, 4)      MaxPool#2 + AdaptiveAvgPool fold (per scale)
    fc1_ref: (C2, C2) = W[:, :C2] + W[:, C2:]  (both concat-pool branches avg)
    fc2_ref: (d_model, C2)    alpha_ref: (4, 1)
    p1w/p2w: (d_model, d_model)  pro Linear weights (applied transposed)
    o_ref  : (d_model, 1)     sigmoid(pro(dx))^T for this batch element
    """
    f32 = jnp.float32
    c2 = b2_ref.shape[0]

    # Conv#1 + bias + ReLU at even / odd positions; MaxPool1d(2) == their max
    he = jnp.maximum(jnp.dot(w1_ref[...], xe_ref[...],
                             preferred_element_type=f32) + b1_ref[...], 0.0)
    ho = jnp.maximum(jnp.dot(w1_ref[...], xo_ref[...],
                             preferred_element_type=f32) + b1_ref[...], 0.0)
    p1 = jnp.maximum(he, ho)                                  # (C1, NS)
    ns = p1.shape[1]

    # Conv#2 as tap-sum: T_k = W2[:, :, k] @ p1 ; h2[:, c] = sum_k T_k[:, c+k]
    t = jnp.dot(w2s_ref[...], p1, preferred_element_type=f32)  # (K*C2, NS)
    h2 = (t[0 * c2:1 * c2, 0:ns - 3] + t[1 * c2:2 * c2, 1:ns - 2]
          + t[2 * c2:3 * c2, 2:ns - 1] + t[3 * c2:4 * c2, 3:ns])
    h2 = jnp.maximum(h2 + b2_ref[...], 0.0)                   # (C2, NS-3)

    # MaxPool1d(2) + AdaptiveAvgPool1d(1): pairwise max then fold matrix
    m2 = jnp.maximum(h2[:, :-1], h2[:, 1:])                   # (C2, NS-4)
    avg = jnp.dot(m2, s2avg_ref[...], preferred_element_type=f32)   # (C2, 4)

    # AdaptiveConcatPool1d (both branches avg) -> Linear(2*C2, C2) -> ReLU
    h3 = jnp.maximum(jnp.dot(fc1_ref[...], avg, preferred_element_type=f32)
                     + fc1b_ref[...], 0.0)                    # Dropout = id
    enc = (jnp.dot(fc2_ref[...], h3, preferred_element_type=f32)
           + fc2b_ref[...])                                   # (d_model, 4)

    # alpha-weighted sum over scales, then pro: Linear->GELU->Linear->Sigmoid
    dx = jnp.dot(enc, alpha_ref[...], preferred_element_type=f32)  # (d_model,1)
    hh = _gelu(jnp.dot(p1w_ref[...], dx, preferred_element_type=f32)
               + p1b_ref[...])
    y = jnp.dot(p2w_ref[...], hh, preferred_element_type=f32) + p2b_ref[...]
    o_ref[...] = jax.nn.sigmoid(y)                            # (d_model, 1)


# -----------------------------------------------------------------------------
# Constant helpers (built at trace time)
# -----------------------------------------------------------------------------

def _positional_embedding(L, d_model):
    pos = np.arange(L, dtype=np.float32)[:, None]
    div = np.exp(np.arange(0, d_model, 2, dtype=np.float32)
                 * (-np.log(10000.0) / d_model))
    pe = np.zeros((L, d_model), np.float32)
    pe[:, 0::2] = np.sin(pos * div)
    pe[:, 1::2] = np.cos(pos * div)
    return jnp.asarray(pe.T)                                  # (d_model, L)


def _s2avg_matrix():
    """(NS-4, 4): folds MaxPool1d(2) position selection and the 1/13 average.
    Row s*P1P + 2i (i < P2) of the pairwise-max array feeds scale column s."""
    M = np.zeros((NS - 4, NSCALE), np.float32)
    for s in range(NSCALE):
        for i in range(P2):
            M[s * P1P + 2 * i, s] = 1.0 / P2
    return M


def _adaptive_avg_pool_cl(x_cl, out_len):
    B, C, L = x_cl.shape
    assert L % out_len == 0, "config keeps pooled lengths multiples of 64"
    k = L // out_len
    return x_cl.reshape(B, C, out_len, k).mean(-1)


# -----------------------------------------------------------------------------
# Parameter init (deterministic, synthetic)
# -----------------------------------------------------------------------------

def init_params(key, c_in, d_model, num_channel=(32, 32, 40), kernel_size=4,
                init_alpha=1.0):
    ks = jax.random.split(key, 13)

    def uni(k, shape, fan_in):
        lim = 1.0 / np.sqrt(fan_in)
        return jax.random.uniform(k, shape, jnp.float32, -lim, lim)

    c1_out, c2_out = num_channel[1], num_channel[2]
    p = {}
    p["emb_w"]   = uni(ks[0], (d_model, c_in, 3), c_in * 3)     # TokenEmbedding
    p["conv1_w"] = uni(ks[1], (c1_out, d_model, kernel_size), d_model * kernel_size)
    p["conv1_b"] = uni(ks[2], (c1_out,), d_model * kernel_size)
    p["conv2_w"] = uni(ks[3], (c2_out, num_channel[0], kernel_size),
                       num_channel[0] * kernel_size)
    p["conv2_b"] = uni(ks[4], (c2_out,), num_channel[0] * kernel_size)
    p["fc1_w"]   = uni(ks[5], (c2_out, 2 * c2_out), 2 * c2_out)
    p["fc1_b"]   = uni(ks[6], (c2_out,), 2 * c2_out)
    p["fc2_w"]   = uni(ks[7], (d_model, c2_out), c2_out)
    p["fc2_b"]   = uni(ks[8], (d_model,), c2_out)
    p["pro1_w"]  = uni(ks[9], (d_model, d_model), d_model)
    p["pro1_b"]  = uni(ks[10], (d_model,), d_model)
    p["pro2_w"]  = uni(ks[11], (d_model, d_model), d_model)
    p["pro2_b"]  = uni(ks[12], (d_model,), d_model)
    p["alpha"]   = jnp.full((4,), init_alpha, jnp.float32)
    p["mask_re"] = jnp.zeros((d_model, 1), jnp.float32)   # mask_token = 0+0j
    p["mask_im"] = jnp.zeros((d_model, 1), jnp.float32)
    return p


# -----------------------------------------------------------------------------
# Forward pass stages
# -----------------------------------------------------------------------------

def _embed_pallas(x, params):
    """DataEmbedding: grid over batch, PE resident in VMEM.  -> (B, d_model, L)."""
    B, L, c_in = x.shape
    d_model = params["emb_w"].shape[0]
    x_cl = jnp.transpose(x, (0, 2, 1))                             # (B, c_in, L)
    x_pad = jnp.concatenate([x_cl[:, :, -1:], x_cl, x_cl[:, :, :1]], axis=-1)
    xu = jnp.concatenate([x_pad[:, :, k:k + L] for k in range(3)], axis=1)
    w_f = jnp.transpose(params["emb_w"], (0, 2, 1)).reshape(d_model, 3 * c_in)
    pe = _positional_embedding(L, d_model)                         # (d_model, L)

    flops = 2 * B * d_model * (3 * c_in) * L
    bytes_acc = 4 * (xu.size + w_f.size + pe.size + B * d_model * L)
    return pl.pallas_call(
        emb_kernel,
        out_shape=jax.ShapeDtypeStruct((B, d_model, L), jnp.float32),
        grid=(B,),
        in_specs=[pl.BlockSpec((None, 3 * c_in, L), lambda b: (b, 0, 0)),
                  pl.BlockSpec((d_model, 3 * c_in), lambda b: (0, 0)),
                  pl.BlockSpec((d_model, L), lambda b: (0, 0))],
        out_specs=pl.BlockSpec((None, d_model, L), lambda b: (b, 0, 0)),
        compiler_params=pltpu.CompilerParams(dimension_semantics=("parallel",)),
        cost_estimate=pl.CostEstimate(flops=flops, transcendentals=0,
                                      bytes_accessed=bytes_acc),
    )(xu, w_f, pe)


def _freq_mask(ex_cl, params, fr):
    """rfft -> mask (mag < quantile -> mask_token) -> irfft.  XLA glue."""
    # TODO(synk): rfft/irfft and quantile have no Pallas primitive; elementwise
    # masking is left to XLA so it fuses with the FFTs.
    cx = jnp.fft.rfft(ex_cl, axis=-1)                              # (B, d, F)
    mag = jnp.sqrt(jnp.real(cx) ** 2 + jnp.imag(cx) ** 2)
    q = jnp.quantile(mag, fr, axis=2, keepdims=True)
    mask_c = (params["mask_re"] + 1j * params["mask_im"])[None, :, :]
    cx = jnp.where(mag < q, mask_c, cx)
    return jnp.fft.irfft(cx, axis=-1).astype(jnp.float32)          # (B, d, L)


def _tail_pallas(ix_cl, params, scale1=64, scale2=128, scale3=256):
    """Fused Multi_CNN + alpha mix + pro, grid over batch.  -> (B, d_model)."""
    B, d_model, L = ix_cl.shape
    c1_out = params["conv1_w"].shape[0]
    c2_in = params["conv2_w"].shape[1]
    c2_out = params["conv2_w"].shape[0]
    assert params["conv1_w"].shape[2] == K and params["conv2_w"].shape[2] == K, \
        "fused kernel hard-codes kernel_size=4 (4 tap slices)"
    assert c1_out == c2_in, "conv1 out channels must equal conv2 in channels"

    # 4 scale views, pooled to 64 samples
    s1 = ix_cl[:, :, -scale1:]
    s2 = _adaptive_avg_pool_cl(ix_cl[:, :, -scale2:], LC)
    s3 = _adaptive_avg_pool_cl(ix_cl[:, :, -scale3:], LC)
    s4 = _adaptive_avg_pool_cl(ix_cl, LC)
    X4 = jnp.stack([s1, s2, s3, s4], axis=1)                       # (B,4,d,64)

    # conv#1 im2col at even / odd MaxPool positions, padded to 32 per segment
    taps = jnp.stack([X4[..., k:k + L1] for k in range(K)], axis=2)  # (B,4,K,d,61)
    ev = taps[..., 0:2 * P1:2]                                     # pos 0,2,..,58
    od = taps[..., 1:2 * P1:2]                                     # pos 1,3,..,59

    def to_blocks(a):                    # (B,4,K,d,P1) -> (B, K*d, NS)
        a = jnp.pad(a, ((0, 0), (0, 0), (0, 0), (0, 0), (0, P1P - P1)))
        a = jnp.transpose(a, (0, 2, 3, 1, 4))                      # (B,K,d,4,P1P)
        return a.reshape(B, K * d_model, NS)

    xe, xo = to_blocks(ev), to_blocks(od)

    # folded weights / constants
    w1f = jnp.transpose(params["conv1_w"], (0, 2, 1)).reshape(c1_out, K * d_model)
    w2s = jnp.transpose(params["conv2_w"], (2, 0, 1)).reshape(K * c2_out, c2_in)
    b1 = params["conv1_b"].reshape(-1, 1)
    b2 = params["conv2_b"].reshape(-1, 1)
    s2avg = jnp.asarray(_s2avg_matrix())                           # (NS-4, 4)
    fc1_sum = params["fc1_w"][:, :c2_out] + params["fc1_w"][:, c2_out:]
    fc1_b = params["fc1_b"].reshape(-1, 1)
    fc2_w, fc2_b = params["fc2_w"], params["fc2_b"].reshape(-1, 1)
    alpha_col = params["alpha"].reshape(NSCALE, 1)
    p1w, p1b = params["pro1_w"], params["pro1_b"].reshape(-1, 1)
    p2w, p2b = params["pro2_w"], params["pro2_b"].reshape(-1, 1)

    def batch_spec(a):
        return pl.BlockSpec((None,) + a.shape[1:], lambda b: (b, 0, 0))

    def const_spec(a):
        return pl.BlockSpec(a.shape, lambda b: (0, 0))

    consts = (w1f, b1, w2s, b2, s2avg, fc1_sum, fc1_b, fc2_w, fc2_b,
              alpha_col, p1w, p1b, p2w, p2b)
    inputs = (xe, xo) + consts
    in_specs = [batch_spec(xe), batch_spec(xo)] + [const_spec(a) for a in consts]

    flops = 2 * B * (2 * c1_out * (K * d_model) * NS      # conv#1 even/odd
                     + (K * c2_out) * c2_in * NS          # conv#2 tap matmul
                     + c2_out * (NS - 4) * NSCALE         # pool+avg fold
                     + c2_out * c2_out * NSCALE           # fc1
                     + d_model * c2_out * NSCALE          # fc2
                     + d_model * NSCALE                   # alpha mix
                     + 2 * d_model * d_model)             # pro head
    bytes_acc = 4 * (sum(int(a.size) for a in inputs) + B * d_model)

    out = pl.pallas_call(
        fused_tail_kernel,
        out_shape=jax.ShapeDtypeStruct((B, d_model, 1), jnp.float32),
        grid=(B,),
        in_specs=in_specs,
        out_specs=pl.BlockSpec((None, d_model, 1), lambda b: (b, 0, 0)),
        compiler_params=pltpu.CompilerParams(dimension_semantics=("parallel",)),
        cost_estimate=pl.CostEstimate(flops=flops,
                                      transcendentals=4 * B * d_model,
                                      bytes_accessed=bytes_acc),
    )(*inputs)
    return out[:, :, 0]                                            # (B, d_model)


def fre_enc_forward(x, params, fr=0.4):
    """x: (B, L, c_in) float32.  Returns att == [rec], rec: (B, 1, d_model)."""
    ex_cl = _embed_pallas(x, params)            # (B, d_model, L)
    ix_cl = _freq_mask(ex_cl, params, fr)       # (B, d_model, L)
    rec2d = _tail_pallas(ix_cl, params)         # (B, d_model)
    return [rec2d[:, None, :]]      # Multi_CNN att == []; FreEnc appends rec


# -----------------------------------------------------------------------------
# Pure-jnp references (HIGHEST precision so the checks can be tight)
# -----------------------------------------------------------------------------

def _conv1d_ref(x, w, b):
    y = jax.lax.conv_general_dilated(x, w, window_strides=(1,), padding="VALID",
                                     dimension_numbers=("NCH", "OIH", "NCH"),
                                     precision=HIGH)
    return y + b[None, :, None]


def _maxpool2_ref(x):
    N, C, L = x.shape
    return jnp.max(x[..., :(L // 2) * 2].reshape(N, C, L // 2, 2), axis=-1)


def _embed_ref(x, params):
    B, L, c_in = x.shape
    d_model = params["emb_w"].shape[0]
    x_cl = jnp.transpose(x, (0, 2, 1))
    x_pad = jnp.concatenate([x_cl[:, :, -1:], x_cl, x_cl[:, :, :1]], axis=-1)
    y = jax.lax.conv_general_dilated(x_pad, params["emb_w"], (1,), "VALID",
                                     dimension_numbers=("NCH", "OIH", "NCH"),
                                     precision=HIGH)
    return y + _positional_embedding(L, d_model)[None]


def _tail_ref(ix_cl, params):
    s1 = ix_cl[:, :, -64:]
    s2 = _adaptive_avg_pool_cl(ix_cl[:, :, -128:], 64)
    s3 = _adaptive_avg_pool_cl(ix_cl[:, :, -256:], 64)
    s4 = _adaptive_avg_pool_cl(ix_cl, 64)
    outs = []
    for s in (s1, s2, s3, s4):
        h = _maxpool2_ref(jax.nn.relu(_conv1d_ref(s, params["conv1_w"],
                                                  params["conv1_b"])))
        h = _maxpool2_ref(jax.nn.relu(_conv1d_ref(h, params["conv2_w"],
                                                  params["conv2_b"])))
        avg = jnp.mean(h, axis=-1)
        cat = jnp.concatenate([avg, avg], axis=-1)
        f = jax.nn.relu(jnp.dot(cat, params["fc1_w"].T, precision=HIGH)
                        + params["fc1_b"])
        outs.append(jnp.dot(f, params["fc2_w"].T, precision=HIGH)
                    + params["fc2_b"])
    dx = sum(params["alpha"][i] * outs[i] for i in range(4))
    h = jax.nn.gelu(jnp.dot(dx, params["pro1_w"].T, precision=HIGH)
                    + params["pro1_b"], approximate=False)
    return jax.nn.sigmoid(jnp.dot(h, params["pro2_w"].T, precision=HIGH)
                          + params["pro2_b"])


# -----------------------------------------------------------------------------
# Main
# -----------------------------------------------------------------------------

if __name__ == "__main__":
    key = jax.random.PRNGKey(0)
    B, L, c_in, d_model = 2, 256, 4, 32    # L >= scale3 (=256) as required
    fr = 0.4

    kx, kp = jax.random.split(key)
    x = jax.random.normal(kx, (B, L, c_in), jnp.float32)
    params = init_params(kp, c_in, d_model)

    fwd = jax.jit(functools.partial(fre_enc_forward, fr=fr))
    att = fwd(x, params)
    rec = att[-1]
    jax.block_until_ready(rec)

    assert rec.shape == (B, 1, d_model), rec.shape
    assert bool(jnp.all(jnp.isfinite(rec)))
    assert bool(jnp.all((rec > 0.0) & (rec < 1.0)))       # sigmoid output

    # tight cross-checks of the Pallas kernels against pure-jnp references
    ex_p = _embed_pallas(x, params)
    ex_r = _embed_ref(x, params)
    emb_err = float(jnp.max(jnp.abs(ex_p - ex_r)))
    assert emb_err < 1e-3, f"embedding mismatch: {emb_err}"

    ix = _freq_mask(ex_p, params, fr)                     # shared glue
    rec_p = _tail_pallas(ix, params)
    rec_r = _tail_ref(ix, params)
    tail_err = float(jnp.max(jnp.abs(rec_p - rec_r)))
    assert tail_err < 2e-3, f"tail mismatch: {tail_err}"

    print("KERNEL_OK")
</pallas_src>

<mosaic_0001>
module attributes {stable_mosaic.version = 11 : i64} {
  func.func @emb_kernel(%arg0: i32, %arg1: memref<1x12x256xf32, #tpu.memory_space<vmem>>, %arg2: memref<32x12xf32, #tpu.memory_space<vmem>>, %arg3: memref<32x256xf32, #tpu.memory_space<vmem>>, %arg4: memref<1x32x256xf32, #tpu.memory_space<vmem>>) attributes {dimension_semantics = [#tpu.dimension_semantics<parallel>], iteration_bounds = array<i64: 2>, scalar_prefetch = 0 : i64, scratch_operands = 0 : i64, tpu.core_type = #tpu.core_type<tc>, window_params = [{transform_indices = @transform_0, window_bounds = array<i64: 1, 12, 256>}, {pipeline_mode = #tpu.pipeline_mode<synchronous>, transform_indices = @transform_1, window_bounds = array<i64: 32, 12>}, {pipeline_mode = #tpu.pipeline_mode<synchronous>, transform_indices = @transform_2, window_bounds = array<i64: 32, 256>}, {transform_indices = @transform_3, window_bounds = array<i64: 1, 32, 256>}]} {
    %c0 = arith.constant 0 : index
    %c0_0 = arith.constant 0 : index
    %0 = vector.load %arg2[%c0, %c0_0] : memref<32x12xf32, #tpu.memory_space<vmem>>, vector<32x12xf32>
    %c0_1 = arith.constant 0 : index
    %c0_2 = arith.constant 0 : index
    %c0_3 = arith.constant 0 : index
    %1 = vector.load %arg1[%c0_1, %c0_2, %c0_3] : memref<1x12x256xf32, #tpu.memory_space<vmem>>, vector<1x12x256xf32>
    %2 = vector.shape_cast %1 : vector<1x12x256xf32> to vector<12x256xf32>
    %cst = arith.constant dense<0.000000e+00> : vector<32x256xf32>
    %3 = tpu.matmul %0, %2, %cst {dimension_numbers = #tpu.dot_dimension_numbers<[1], [0], [0], [1], [0, 0, 1, 1], [], []>} : vector<32x12xf32>, vector<12x256xf32>, vector<32x256xf32> -> vector<32x256xf32>
    %c0_4 = arith.constant 0 : index
    %c0_5 = arith.constant 0 : index
    %4 = vector.load %arg3[%c0_4, %c0_5] : memref<32x256xf32, #tpu.memory_space<vmem>>, vector<32x256xf32>
    %5 = arith.addf %3, %4 : vector<32x256xf32>
    %c0_6 = arith.constant 0 : index
    %c0_7 = arith.constant 0 : index
    %c0_8 = arith.constant 0 : index
    %6 = vector.load %arg4[%c0_6, %c0_7, %c0_8] : memref<1x32x256xf32, #tpu.memory_space<vmem>>, vector<1x32x256xf32>
    %7 = vector.shape_cast %6 : vector<1x32x256xf32> to vector<32x256xf32>
    %8 = vector.shape_cast %5 : vector<32x256xf32> to vector<1x32x256xf32>
    tpu.vector_store %arg4[%c0_6, %c0_7, %c0_8], %8 {strides = array<i32>} : memref<1x32x256xf32, #tpu.memory_space<vmem>>, vector<1x32x256xf32>,
    return
  }
  func.func @transform_0(%arg0: i32) -> (i32, i32, i32) {
    %c0_i32 = arith.constant 0 : i32
    %c0_i32_0 = arith.constant 0 : i32
    %c0_i32_1 = arith.constant 0 : i32
    return %arg0, %c0_i32, %c0_i32_0 : i32, i32, i32
  }
  func.func @transform_1(%arg0: i32) -> (i32, i32) {
    %c0_i32 = arith.constant 0 : i32
    %c0_i32_0 = arith.constant 0 : i32
    %c0_i32_1 = arith.constant 0 : i32
    return %c0_i32, %c0_i32_0 : i32, i32
  }
  func.func @transform_2(%arg0: i32) -> (i32, i32) {
    %c0_i32 = arith.constant 0 : i32
    %c0_i32_0 = arith.constant 0 : i32
    %c0_i32_1 = arith.constant 0 : i32
    return %c0_i32, %c0_i32_0 : i32, i32
  }
  func.func @transform_3(%arg0: i32) -> (i32, i32, i32) {
    %c0_i32 = arith.constant 0 : i32
    %c0_i32_0 = arith.constant 0 : i32
    %c0_i32_1 = arith.constant 0 : i32
    return %arg0, %c0_i32, %c0_i32_0 : i32, i32, i32
  }
}

module attributes {stable_mosaic.version = 11 : i64} {
  func.func @fused_tail_kernel(%arg0: i32, %arg1: memref<1x128x128xf32, #tpu.memory_space<vmem>>, %arg2: memref<1x128x128xf32, #tpu.memory_space<vmem>>, %arg3: memref<32x128xf32, #tpu.memory_space<vmem>>, %arg4: memref<32x1xf32, #tpu.memory_space<vmem>>, %arg5: memref<160x32xf32, #tpu.memory_space<vmem>>, %arg6: memref<40x1xf32, #tpu.memory_space<vmem>>, %arg7: memref<124x4xf32, #tpu.memory_space<vmem>>, %arg8: memref<40x40xf32, #tpu.memory_space<vmem>>, %arg9: memref<40x1xf32, #tpu.memory_space<vmem>>, %arg10: memref<32x40xf32, #tpu.memory_space<vmem>>, %arg11: memref<32x1xf32, #tpu.memory_space<vmem>>, %arg12: memref<4x1xf32, #tpu.memory_space<vmem>>, %arg13: memref<32x32xf32, #tpu.memory_space<vmem>>, %arg14: memref<32x1xf32, #tpu.memory_space<vmem>>, %arg15: memref<32x32xf32, #tpu.memory_space<vmem>>, %arg16: memref<32x1xf32, #tpu.memory_space<vmem>>, %arg17: memref<1x32x1xf32, #tpu.memory_space<vmem>>) attributes {dimension_semantics = [#tpu.dimension_semantics<parallel>], iteration_bounds = array<i64: 2>, scalar_prefetch = 0 : i64, scratch_operands = 0 : i64, tpu.core_type = #tpu.core_type<tc>, window_params = [{transform_indices = @transform_0, window_bounds = array<i64: 1, 128, 128>}, {transform_indices = @transform_1, window_bounds = array<i64: 1, 128, 128>}, {pipeline_mode = #tpu.pipeline_mode<synchronous>, transform_indices = @transform_2, window_bounds = array<i64: 32, 128>}, {pipeline_mode = #tpu.pipeline_mode<synchronous>, transform_indices = @transform_3, window_bounds = array<i64: 32, 1>}, {pipeline_mode = #tpu.pipeline_mode<synchronous>, transform_indices = @transform_4, window_bounds = array<i64: 160, 32>}, {pipeline_mode = #tpu.pipeline_mode<synchronous>, transform_indices = @transform_5, window_bounds = array<i64: 40, 1>}, {pipeline_mode = #tpu.pipeline_mode<synchronous>, transform_indices = @transform_6, window_bounds = array<i64: 124, 4>}, {pipeline_mode = #tpu.pipeline_mode<synchronous>, transform_indices = @transform_7, window_bounds = array<i64: 40, 40>}, {pipeline_mode = #tpu.pipeline_mode<synchronous>, transform_indices = @transform_8, window_bounds = array<i64: 40, 1>}, {pipeline_mode = #tpu.pipeline_mode<synchronous>, transform_indices = @transform_9, window_bounds = array<i64: 32, 40>}, {pipeline_mode = #tpu.pipeline_mode<synchronous>, transform_indices = @transform_10, window_bounds = array<i64: 32, 1>}, {pipeline_mode = #tpu.pipeline_mode<synchronous>, transform_indices = @transform_11, window_bounds = array<i64: 4, 1>}, {pipeline_mode = #tpu.pipeline_mode<synchronous>, transform_indices = @transform_12, window_bounds = array<i64: 32, 32>}, {pipeline_mode = #tpu.pipeline_mode<synchronous>, transform_indices = @transform_13, window_bounds = array<i64: 32, 1>}, {pipeline_mode = #tpu.pipeline_mode<synchronous>, transform_indices = @transform_14, window_bounds = array<i64: 32, 32>}, {pipeline_mode = #tpu.pipeline_mode<synchronous>, transform_indices = @transform_15, window_bounds = array<i64: 32, 1>}, {transform_indices = @transform_16, window_bounds = array<i64: 1, 32, 1>}]} {
    %c0 = arith.constant 0 : index
    %c0_0 = arith.constant 0 : index
    %0 = vector.load %arg3[%c0, %c0_0] : memref<32x128xf32, #tpu.memory_space<vmem>>, vector<32x128xf32>
    %c0_1 = arith.constant 0 : index
    %c0_2 = arith.constant 0 : index
    %c0_3 = arith.constant 0 : index
    %1 = vector.load %arg1[%c0_1, %c0_2, %c0_3] : memref<1x128x128xf32, #tpu.memory_space<vmem>>, vector<1x128x128xf32>
    %2 = vector.shape_cast %1 : vector<1x128x128xf32> to vector<128x128xf32>
    %cst = arith.constant dense<0.000000e+00> : vector<32x128xf32>
    %3 = tpu.matmul %0, %2, %cst {dimension_numbers = #tpu.dot_dimension_numbers<[1], [0], [0], [1], [0, 0, 1, 1], [], []>} : vector<32x128xf32>, vector<128x128xf32>, vector<32x128xf32> -> vector<32x128xf32>
    %c0_4 = arith.constant 0 : index
    %c0_5 = arith.constant 0 : index
    %4 = vector.load %arg4[%c0_4, %c0_5] : memref<32x1xf32, #tpu.memory_space<vmem>>, vector<32x1xf32>
    %5 = vector.broadcast %4 : vector<32x1xf32> to vector<32x128xf32>
    %6 = arith.addf %3, %5 : vector<32x128xf32>
    %cst_6 = arith.constant 0.000000e+00 : f32
    %7 = vector.broadcast %cst_6 : f32 to vector<32x128xf32>
    %8 = arith.maximumf %6, %7 : vector<32x128xf32>
    %c0_7 = arith.constant 0 : index
    %c0_8 = arith.constant 0 : index
    %9 = vector.load %arg3[%c0_7, %c0_8] : memref<32x128xf32, #tpu.memory_space<vmem>>, vector<32x128xf32>
    %c0_9 = arith.constant 0 : index
    %c0_10 = arith.constant 0 : index
    %c0_11 = arith.constant 0 : index
    %10 = vector.load %arg2[%c0_9, %c0_10, %c0_11] : memref<1x128x128xf32, #tpu.memory_space<vmem>>, vector<1x128x128xf32>
    %11 = vector.shape_cast %10 : vector<1x128x128xf32> to vector<128x128xf32>
    %cst_12 = arith.constant dense<0.000000e+00> : vector<32x128xf32>
    %12 = tpu.matmul %9, %11, %cst_12 {dimension_numbers = #tpu.dot_dimension_numbers<[1], [0], [0], [1], [0, 0, 1, 1], [], []>} : vector<32x128xf32>, vector<128x128xf32>, vector<32x128xf32> -> vector<32x128xf32>
    %c0_13 = arith.constant 0 : index
    %c0_14 = arith.constant 0 : index
    %13 = vector.load %arg4[%c0_13, %c0_14] : memref<32x1xf32, #tpu.memory_space<vmem>>, vector<32x1xf32>
    %14 = vector.broadcast %13 : vector<32x1xf32> to vector<32x128xf32>
    %15 = arith.addf %12, %14 : vector<32x128xf32>
    %cst_15 = arith.constant 0.000000e+00 : f32
    %16 = vector.broadcast %cst_15 : f32 to vector<32x128xf32>
    %17 = arith.maximumf %15, %16 : vector<32x128xf32>
    %18 = arith.maximumf %8, %17 : vector<32x128xf32>
    %c0_16 = arith.constant 0 : index
    %c0_17 = arith.constant 0 : index
    %19 = vector.load %arg5[%c0_16, %c0_17] : memref<160x32xf32, #tpu.memory_space<vmem>>, vector<160x32xf32>
    %cst_18 = arith.constant dense<0.000000e+00> : vector<160x128xf32>
    %20 = tpu.matmul %19, %18, %cst_18 {dimension_numbers = #tpu.dot_dimension_numbers<[1], [0], [0], [1], [0, 0, 1, 1], [], []>} : vector<160x32xf32>, vector<32x128xf32>, vector<160x128xf32> -> vector<160x128xf32>
    %21 = vector.extract_strided_slice %20 {offsets = [0, 0], sizes = [40, 125], strides = [1, 1]} : vector<160x128xf32> to vector<40x125xf32>
    %22 = vector.extract_strided_slice %20 {offsets = [40, 1], sizes = [40, 125], strides = [1, 1]} : vector<160x128xf32> to vector<40x125xf32>
    %23 = arith.addf %21, %22 : vector<40x125xf32>
    %24 = vector.extract_strided_slice %20 {offsets = [80, 2], sizes = [40, 125], strides = [1, 1]} : vector<160x128xf32> to vector<40x125xf32>
    %25 = arith.addf %23, %24 : vector<40x125xf32>
    %26 = vector.extract_strided_slice %20 {offsets = [120, 3], sizes = [40, 125], strides = [1, 1]} : vector<160x128xf32> to vector<40x125xf32>
    %27 = arith.addf %25, %26 : vector<40x125xf32>
    %c0_19 = arith.constant 0 : index
    %c0_20 = arith.constant 0 : index
    %28 = vector.load %arg6[%c0_19, %c0_20] : memref<40x1xf32, #tpu.memory_space<vmem>>, vector<40x1xf32>
    %29 = vector.broadcast %28 : vector<40x1xf32> to vector<40x125xf32>
    %30 = arith.addf %27, %29 : vector<40x125xf32>
    %cst_21 = arith.constant 0.000000e+00 : f32
    %31 = vector.broadcast %cst_21 : f32 to vector<40x125xf32>
    %32 = arith.maximumf %30, %31 : vector<40x125xf32>
    %33 = vector.extract_strided_slice %32 {offsets = [0, 0], sizes = [40, 124], strides = [1, 1]} : vector<40x125xf32> to vector<40x124xf32>
    %34 = vector.extract_strided_slice %32 {offsets = [0, 1], sizes = [40, 124], strides = [1, 1]} : vector<40x125xf32> to vector<40x124xf32>
    %35 = arith.maximumf %33, %34 : vector<40x124xf32>
    %c0_22 = arith.constant 0 : index
    %c0_23 = arith.constant 0 : index
    %36 = vector.load %arg7[%c0_22, %c0_23] : memref<124x4xf32, #tpu.memory_space<vmem>>, vector<124x4xf32>
    %cst_24 = arith.constant dense<0.000000e+00> : vector<40x4xf32>
    %37 = tpu.matmul %35, %36, %cst_24 {dimension_numbers = #tpu.dot_dimension_numbers<[1], [0], [0], [1], [0, 0, 1, 1], [], []>} : vector<40x124xf32>, vector<124x4xf32>, vector<40x4xf32> -> vector<40x4xf32>
    %c0_25 = arith.constant 0 : index
    %c0_26 = arith.constant 0 : index
    %38 = vector.load %arg8[%c0_25, %c0_26] : memref<40x40xf32, #tpu.memory_space<vmem>>, vector<40x40xf32>
    %cst_27 = arith.constant dense<0.000000e+00> : vector<40x4xf32>
    %39 = tpu.matmul %38, %37, %cst_27 {dimension_numbers = #tpu.dot_dimension_numbers<[1], [0], [0], [1], [0, 0, 1, 1], [], []>} : vector<40x40xf32>, vector<40x4xf32>, vector<40x4xf32> -> vector<40x4xf32>
    %c0_28 = arith.constant 0 : index
    %c0_29 = arith.constant 0 : index
    %40 = vector.load %arg9[%c0_28, %c0_29] : memref<40x1xf32, #tpu.memory_space<vmem>>, vector<40x1xf32>
    %41 = vector.broadcast %40 : vector<40x1xf32> to vector<40x4xf32>
    %42 = arith.addf %39, %41 : vector<40x4xf32>
    %cst_30 = arith.constant 0.000000e+00 : f32
    %43 = vector.broadcast %cst_30 : f32 to vector<40x4xf32>
    %44 = arith.maximumf %42, %43 : vector<40x4xf32>
    %c0_31 = arith.constant 0 : index
    %c0_32 = arith.constant 0 : index
    %45 = vector.load %arg10[%c0_31, %c0_32] : memref<32x40xf32, #tpu.memory_space<vmem>>, vector<32x40xf32>
    %cst_33 = arith.constant dense<0.000000e+00> : vector<32x4xf32>
    %46 = tpu.matmul %45, %44, %cst_33 {dimension_numbers = #tpu.dot_dimension_numbers<[1], [0], [0], [1], [0, 0, 1, 1], [], []>} : vector<32x40xf32>, vector<40x4xf32>, vector<32x4xf32> -> vector<32x4xf32>
    %c0_34 = arith.constant 0 : index
    %c0_35 = arith.constant 0 : index
    %47 = vector.load %arg11[%c0_34, %c0_35] : memref<32x1xf32, #tpu.memory_space<vmem>>, vector<32x1xf32>
    %48 = vector.broadcast %47 : vector<32x1xf32> to vector<32x4xf32>
    %49 = arith.addf %46, %48 : vector<32x4xf32>
    %c0_36 = arith.constant 0 : index
    %c0_37 = arith.constant 0 : index
    %50 = vector.load %arg12[%c0_36, %c0_37] : memref<4x1xf32, #tpu.memory_space<vmem>>, vector<4x1xf32>
    %cst_38 = arith.constant dense<0.000000e+00> : vector<32x1xf32>
    %51 = tpu.matmul %49, %50, %cst_38 {dimension_numbers = #tpu.dot_dimension_numbers<[1], [0], [0], [1], [0, 0, 1, 1], [], []>} : vector<32x4xf32>, vector<4x1xf32>, vector<32x1xf32> -> vector<32x1xf32>
    %c0_39 = arith.constant 0 : index
    %c0_40 = arith.constant 0 : index
    %52 = vector.load %arg13[%c0_39, %c0_40] : memref<32x32xf32, #tpu.memory_space<vmem>>, vector<32x32xf32>
    %cst_41 = arith.constant dense<0.000000e+00> : vector<32x1xf32>
    %53 = tpu.matmul %52, %51, %cst_41 {dimension_numbers = #tpu.dot_dimension_numbers<[1], [0], [0], [1], [0, 0, 1, 1], [], []>} : vector<32x32xf32>, vector<32x1xf32>, vector<32x1xf32> -> vector<32x1xf32>
    %c0_42 = arith.constant 0 : index
    %c0_43 = arith.constant 0 : index
    %54 = vector.load %arg14[%c0_42, %c0_43] : memref<32x1xf32, #tpu.memory_space<vmem>>, vector<32x1xf32>
    %55 = arith.addf %53, %54 : vector<32x1xf32>
    %cst_44 = arith.constant 5.000000e-01 : f32
    %56 = vector.broadcast %cst_44 : f32 to vector<32x1xf32>
    %57 = arith.mulf %56, %55 : vector<32x1xf32>
    %cst_45 = arith.constant 0.707106769 : f32
    %58 = vector.broadcast %cst_45 : f32 to vector<32x1xf32>
    %59 = arith.mulf %55, %58 : vector<32x1xf32>
    %cst_46 = arith.constant 0.000000e+00 : f32
    %60 = vector.broadcast %cst_46 : f32 to vector<32x1xf32>
    %61 = arith.cmpf oge, %59, %60 : vector<32x1xf32>
    %cst_47 = arith.constant 1.000000e+00 : f32
    %cst_48 = arith.constant -1.000000e+00 : f32
    %62 = vector.broadcast %cst_47 : f32 to vector<32x1xf32>
    %63 = vector.broadcast %cst_48 : f32 to vector<32x1xf32>
    %64 = arith.select %61, %62, %63 : vector<32x1xi1>, vector<32x1xf32>
    %65 = math.absf %59 : vector<32x1xf32>
    %cst_49 = arith.constant 0.327591091 : f32
    %66 = vector.broadcast %cst_49 : f32 to vector<32x1xf32>
    %67 = arith.mulf %66, %65 : vector<32x1xf32>
    %cst_50 = arith.constant 1.000000e+00 : f32
    %68 = vector.broadcast %cst_50 : f32 to vector<32x1xf32>
    %69 = arith.addf %68, %67 : vector<32x1xf32>
    %cst_51 = arith.constant 1.000000e+00 : f32
    %70 = vector.broadcast %cst_51 : f32 to vector<32x1xf32>
    %71 = arith.divf %70, %69 : vector<32x1xf32>
    %cst_52 = arith.constant 1.06140542 : f32
    %72 = vector.broadcast %cst_52 : f32 to vector<32x1xf32>
    %73 = arith.mulf %72, %71 : vector<32x1xf32>
    %cst_53 = arith.constant -1.45315206 : f32
    %74 = vector.broadcast %cst_53 : f32 to vector<32x1xf32>
    %75 = arith.addf %73, %74 : vector<32x1xf32>
    %76 = arith.mulf %75, %71 : vector<32x1xf32>
    %cst_54 = arith.constant 1.42141378 : f32
    %77 = vector.broadcast %cst_54 : f32 to vector<32x1xf32>
    %78 = arith.addf %76, %77 : vector<32x1xf32>
    %79 = arith.mulf %78, %71 : vector<32x1xf32>
    %cst_55 = arith.constant -0.284496725 : f32
    %80 = vector.broadcast %cst_55 : f32 to vector<32x1xf32>
    %81 = arith.addf %79, %80 : vector<32x1xf32>
    %82 = arith.mulf %81, %71 : vector<32x1xf32>
    %cst_56 = arith.constant 0.254829586 : f32
    %83 = vector.broadcast %cst_56 : f32 to vector<32x1xf32>
    %84 = arith.addf %82, %83 : vector<32x1xf32>
    %85 = arith.mulf %84, %71 : vector<32x1xf32>
    %cst_57 = arith.constant 0.000000e+00 : f32
    %86 = vector.broadcast %cst_57 : f32 to vector<32x1xf32>
    %87 = arith.subf %86, %65 : vector<32x1xf32>
    %88 = arith.mulf %87, %65 : vector<32x1xf32>
    %89 = math.exp %88 : vector<32x1xf32>
    %90 = arith.mulf %85, %89 : vector<32x1xf32>
    %cst_58 = arith.constant 1.000000e+00 : f32
    %91 = vector.broadcast %cst_58 : f32 to vector<32x1xf32>
    %92 = arith.subf %91, %90 : vector<32x1xf32>
    %93 = arith.mulf %64, %92 : vector<32x1xf32>
    %cst_59 = arith.constant 1.000000e+00 : f32
    %94 = vector.broadcast %cst_59 : f32 to vector<32x1xf32>
    %95 = arith.addf %94, %93 : vector<32x1xf32>
    %96 = arith.mulf %57, %95 : vector<32x1xf32>
    %c0_60 = arith.constant 0 : index
    %c0_61 = arith.constant 0 : index
    %97 = vector.load %arg15[%c0_60, %c0_61] : memref<32x32xf32, #tpu.memory_space<vmem>>, vector<32x32xf32>
    %cst_62 = arith.constant dense<0.000000e+00> : vector<32x1xf32>
    %98 = tpu.matmul %97, %96, %cst_62 {dimension_numbers = #tpu.dot_dimension_numbers<[1], [0], [0], [1], [0, 0, 1, 1], [], []>} : vector<32x32xf32>, vector<32x1xf32>, vector<32x1xf32> -> vector<32x1xf32>
    %c0_63 = arith.constant 0 : index
    %c0_64 = arith.constant 0 : index
    %99 = vector.load %arg16[%c0_63, %c0_64] : memref<32x1xf32, #tpu.memory_space<vmem>>, vector<32x1xf32>
    %100 = arith.addf %98, %99 : vector<32x1xf32>
    %101 = arith.negf %100 : vector<32x1xf32>
    %102 = math.exp %101 : vector<32x1xf32>
    %cst_65 = arith.constant 1.000000e+00 : f32
    %103 = vector.broadcast %cst_65 : f32 to vector<32x1xf32>
    %104 = arith.addf %103, %102 : vector<32x1xf32>
    %105 = arith.divf %103, %104 : vector<32x1xf32>
    %c0_66 = arith.constant 0 : index
    %c0_67 = arith.constant 0 : index
    %c0_68 = arith.constant 0 : index
    %106 = vector.load %arg17[%c0_66, %c0_67, %c0_68] : memref<1x32x1xf32, #tpu.memory_space<vmem>>, vector<1x32x1xf32>
    %107 = vector.shape_cast %106 : vector<1x32x1xf32> to vector<32x1xf32>
    %108 = vector.shape_cast %105 : vector<32x1xf32> to vector<1x32x1xf32>
    tpu.vector_store %arg17[%c0_66, %c0_67, %c0_68], %108 {strides = array<i32>} : memref<1x32x1xf32, #tpu.memory_space<vmem>>, vector<1x32x1xf32>,
    return
  }
  func.func @transform_0(%arg0: i32) -> (i32, i32, i32) {
    %c0_i32 = arith.constant 0 : i32
    %c0_i32_0 = arith.constant 0 : i32
    %c0_i32_1 = arith.constant 0 : i32
    return %arg0, %c0_i32, %c0_i32_0 : i32, i32, i32
  }
  func.func @transform_1(%arg0: i32) -> (i32, i32, i32) {
    %c0_i32 = arith.constant 0 : i32
    %c0_i32_0 = arith.constant 0 : i32
    %c0_i32_1 = arith.constant 0 : i32
    return %arg0, %c0_i32, %c0_i32_0 : i32, i32, i32
  }
  func.func @transform_2(%arg0: i32) -> (i32, i32) {
    %c0_i32 = arith.constant 0 : i32
    %c0_i32_0 = arith.constant 0 : i32
    %c0_i32_1 = arith.constant 0 : i32
    return %c0_i32, %c0_i32_0 : i32, i32
  }
  func.func @transform_3(%arg0: i32) -> (i32, i32) {
    %c0_i32 = arith.constant 0 : i32
    %c0_i32_0 = arith.constant 0 : i32
    %c0_i32_1 = arith.constant 0 : i32
    return %c0_i32, %c0_i32_0 : i32, i32
  }
  func.func @transform_4(%arg0: i32) -> (i32, i32) {
    %c0_i32 = arith.constant 0 : i32
    %c0_i32_0 = arith.constant 0 : i32
    %c0_i32_1 = arith.constant 0 : i32
    return %c0_i32, %c0_i32_0 : i32, i32
  }
  func.func @transform_5(%arg0: i32) -> (i32, i32) {
    %c0_i32 = arith.constant 0 : i32
    %c0_i32_0 = arith.constant 0 : i32
    %c0_i32_1 = arith.constant 0 : i32
    return %c0_i32, %c0_i32_0 : i32, i32
  }
  func.func @transform_6(%arg0: i32) -> (i32, i32) {
    %c0_i32 = arith.constant 0 : i32
    %c0_i32_0 = arith.constant 0 : i32
    %c0_i32_1 = arith.constant 0 : i32
    return %c0_i32, %c0_i32_0 : i32, i32
  }
  func.func @transform_7(%arg0: i32) -> (i32, i32) {
    %c0_i32 = arith.constant 0 : i32
    %c0_i32_0 = arith.constant 0 : i32
    %c0_i32_1 = arith.constant 0 : i32
    return %c0_i32, %c0_i32_0 : i32, i32
  }
  func.func @transform_8(%arg0: i32) -> (i32, i32) {
    %c0_i32 = arith.constant 0 : i32
    %c0_i32_0 = arith.constant 0 : i32
    %c0_i32_1 = arith.constant 0 : i32
    return %c0_i32, %c0_i32_0 : i32, i32
  }
  func.func @transform_9(%arg0: i32) -> (i32, i32) {
    %c0_i32 = arith.constant 0 : i32
    %c0_i32_0 = arith.constant 0 : i32
    %c0_i32_1 = arith.constant 0 : i32
    return %c0_i32, %c0_i32_0 : i32, i32
  }
  func.func @transform_10(%arg0: i32) -> (i32, i32) {
    %c0_i32 = arith.constant 0 : i32
    %c0_i32_0 = arith.constant 0 : i32
    %c0_i32_1 = arith.constant 0 : i32
    return %c0_i32, %c0_i32_0 : i32, i32
  }
  func.func @transform_11(%arg0: i32) -> (i32, i32) {
    %c0_i32 = arith.constant 0 : i32
    %c0_i32_0 = arith.constant 0 : i32
    %c0_i32_1 = arith.constant 0 : i32
    return %c0_i32, %c0_i32_0 : i32, i32
  }
  func.func @transform_12(%arg0: i32) -> (i32, i32) {
    %c0_i32 = arith.constant 0 : i32
    %c0_i32_0 = arith.constant 0 : i32
    %c0_i32_1 = arith.constant 0 : i32
    return %c0_i32, %c0_i32_0 : i32, i32
  }
  func.func @transform_13(%arg0: i32) -> (i32, i32) {
    %c0_i32 = arith.constant 0 : i32
    %c0_i32_0 = arith.constant 0 : i32
    %c0_i32_1 = arith.constant 0 : i32
    return %c0_i32, %c0_i32_0 : i32, i32
  }
  func.func @transform_14(%arg0: i32) -> (i32, i32) {
    %c0_i32 = arith.constant 0 : i32
    %c0_i32_0 = arith.constant 0 : i32
    %c0_i32_1 = arith.constant 0 : i32
    return %c0_i32, %c0_i32_0 : i32, i32
  }
  func.func @transform_15(%arg0: i32) -> (i32, i32) {
    %c0_i32 = arith.constant 0 : i32
    %c0_i32_0 = arith.constant 0 : i32
    %c0_i32_1 = arith.constant 0 : i32
    return %c0_i32, %c0_i32_0 : i32, i32
  }
  func.func @transform_16(%arg0: i32) -> (i32, i32, i32) {
    %c0_i32 = arith.constant 0 : i32
    %c0_i32_0 = arith.constant 0 : i32
    %c0_i32_1 = arith.constant 0 : i32
    return %arg0, %c0_i32, %c0_i32_0 : i32, i32, i32
  }
}

</mosaic_0001>

<llo_original>
// kernel: fre_enc_forward.2
$region0: #{fre_enc_forward.2}
  #allocation0 [shape = 'u32[]', space=smem, size = 0x4, offset = 0x4, fixed_abs, tag = 'smem constant byte address 0x4 - core index']
  #allocation1 [shape = 'u32[144,128]{1,0:T(1,128)}', space=vmem, size = 0x12000, scoped, tag = 'internal scratch']
  %s0 = inlined_call_operand.vmem [shape: f32[2,12,256], index: 0, kind: input, shape index: {}]
  %s1 = inlined_call_operand.vmem [shape: f32[32,12], index: 1, kind: input, shape index: {}]
  %s2 = inlined_call_operand.vmem [shape: f32[32,256], index: 2, kind: input, shape index: {}]
  %s3 = inlined_call_operand.vmem [shape: f32[2,32,256], index: 3, kind: output, shape index: {}]
  %s4 = sld [smem:[#allocation0]]
  $region45: #{fre_enc_forward.2} parent=0
    _
  %s6 = ssub.s32 1, %s4
  %s7 = scalar_select 0, %s6, %s4
  loop: start=0, step=1, limit=4
  $region2: #{fre_enc_forward.2} parent=0 // loop_pre_header
    _
  $region3: #{fre_enc_forward.2} parent=0 // loop_header
    %s9 = sphi 0, %s13
    %p10 = scmp.ge.s32.totalorder %s9, 4
    %s19 = sphi 0, %s21
    %s22 = sphi 0, %s19
    %s23 = sphi 0, %s22
    %s39 = sphi 0, %s23
    %s43 = sphi 0, %s43
    %s45 = sphi 0, %s43
    %s46 = sphi 0, %s45
    %s60 = sphi 0, %s46
    %s64 = sphi 0, %s64
    %s66 = sphi 0, %s64
    %s67 = sphi 0, %s66
    %s81 = sphi 0, %s67
    %s87 = sphi 0, %s89
    %s90 = sphi 0, %s87
    %s91 = sphi 0, %s90
    %s107 = sphi 0, %s91
  $region4: #{fre_enc_forward.2} parent=0 // loop_header_branch
    %12 = sbr.rel (%p10) target = $region8
  $region5: #{fre_enc_forward.2} parent=0 // loop_body
    %s14 = ssub.s32 %s9, 1
    %s15 = ssub.s32 %s9, 2
    %s16 = sadd.s32 %s9, 1
    %s17 = ssub.s32 %s9, %s16
    %p18 = scmp.eq.s32.totalorder %s17, 0
    %s20 = sadd.s32 %s19, 1
    %s21 = scalar_select %p18, %s19, %s20
    %p24 = pneg %p18
    %p25 = scmp.eq.s32.totalorder %s9, 1
    %p26 = por %p24, %p25
    %p27 = scmp.ne.s32.totalorder %s19, %s22
    %p28 = scmp.eq.s32.totalorder %s9, 0
    %p29 = por %p27, %p28
    %p30 = scmp.ne.s32.totalorder %s19, %s22
    %p31 = scmp.eq.s32.totalorder %s14, 1
    %p32 = por %p30, %p31
    %p33 = scmp.ne.s32.totalorder %s22, %s23
    %p34 = scmp.eq.s32.totalorder %s14, 0
    %p35 = por %p33, %p34
    %p36 = scmp.ne.s32.totalorder %s22, %s23
    %p37 = scmp.eq.s32.totalorder %s15, 1
    %p38 = por %p36, %p37
    %p40 = scmp.ne.s32.totalorder %s23, %s39
    %p41 = scmp.eq.s32.totalorder %s15, 0
    %p42 = por %p40, %p41
    %s44 = sadd.s32 %s43, 1
    %p47 = scmp.eq.s32.totalorder %s9, 1
    %p48 = scmp.ne.s32.totalorder %s43, %s45
    %p49 = scmp.eq.s32.totalorder %s9, 0
    %p50 = por %p48, %p49
    %p51 = scmp.ne.s32.totalorder %s43, %s45
    %p52 = scmp.eq.s32.totalorder %s14, 1
    %p53 = por %p51, %p52
    %p54 = scmp.ne.s32.totalorder %s45, %s46
    %p55 = scmp.eq.s32.totalorder %s14, 0
    %p56 = por %p54, %p55
    %p57 = scmp.ne.s32.totalorder %s45, %s46
    %p58 = scmp.eq.s32.totalorder %s15, 1
    %p59 = por %p57, %p58
    %p61 = scmp.ne.s32.totalorder %s46, %s60
    %p62 = scmp.eq.s32.totalorder %s15, 0
    %p63 = por %p61, %p62
    %s65 = sadd.s32 %s64, 1
    %p68 = scmp.eq.s32.totalorder %s9, 1
    %p69 = scmp.ne.s32.totalorder %s64, %s66
    %p70 = scmp.eq.s32.totalorder %s9, 0
    %p71 = por %p69, %p70
    %p72 = scmp.ne.s32.totalorder %s64, %s66
    %p73 = scmp.eq.s32.totalorder %s14, 1
    %p74 = por %p72, %p73
    %p75 = scmp.ne.s32.totalorder %s66, %s67
    %p76 = scmp.eq.s32.totalorder %s14, 0
    %p77 = por %p75, %p76
    %p78 = scmp.ne.s32.totalorder %s66, %s67
    %p79 = scmp.eq.s32.totalorder %s15, 1
    %p80 = por %p78, %p79
    %p82 = scmp.ne.s32.totalorder %s67, %s81
    %p83 = scmp.eq.s32.totalorder %s15, 0
    %p84 = por %p82, %p83
    %s85 = ssub.s32 %s9, %s16
    %p86 = scmp.eq.s32.totalorder %s85, 0
    %s88 = sadd.s32 %s87, 1
    %s89 = scalar_select %p86, %s87, %s88
    %p92 = pneg %p86
    %p93 = scmp.eq.s32.totalorder %s9, 1
    %p94 = por %p92, %p93
    %p95 = scmp.ne.s32.totalorder %s87, %s90
    %p96 = scmp.eq.s32.totalorder %s9, 0
    %p97 = por %p95, %p96
    %p98 = scmp.ne.s32.totalorder %s87, %s90
    %p99 = scmp.eq.s32.totalorder %s14, 1
    %p100 = por %p98, %p99
    %p101 = scmp.ne.s32.totalorder %s90, %s91
    %p102 = scmp.eq.s32.totalorder %s14, 0
    %p103 = por %p101, %p102
    %p104 = scmp.ne.s32.totalorder %s90, %s91
    %p105 = scmp.eq.s32.totalorder %s15, 1
    %p106 = por %p104, %p105
    %p108 = scmp.ne.s32.totalorder %s91, %s107
    %p109 = scmp.eq.s32.totalorder %s15, 0
    %p110 = por %p108, %p109
    %p111 = scmp.le.s32.totalorder 1, %s9
    %p112 = scmp.lt.s32.totalorder %s9, 3
    %p113 = pnand %p111, %p112
    %p114 = pneg %p113
    // Predicated region
    $region9: #{fre_enc_forward.2} parent=5 // pred_check
      _
    $region10: #{fre_enc_forward.2} parent=5 // pred_check_branch
      %116 = sbr.rel (%p113) target = $region12
    $region11: #{fre_enc_forward.2} parent=5 // pred_region
      %s117 = ssub.s32 %s9, 1
      // Predicated region
      $region13: #{fre_enc_forward.2} parent=11 // pred_check
        %p118 = pneg %p56
      $region14: #{fre_enc_forward.2} parent=11 // pred_check_branch
        %120 = sbr.rel (%p118) target = $region16
      $region15: #{fre_enc_forward.2} parent=11 // pred_region
        _
      $region16: #{fre_enc_forward.2} parent=11 // pred_fallthru
        _
      // Predicated region
      $region17: #{fre_enc_forward.2} parent=11 // pred_check
        %p121 = pneg %p77
      $region18: #{fre_enc_forward.2} parent=11 // pred_check_branch
        %123 = sbr.rel (%p121) target = $region20
      $region19: #{fre_enc_forward.2} parent=11 // pred_region
        _
      $region20: #{fre_enc_forward.2} parent=11 // pred_fallthru
        _
    $region12: #{fre_enc_forward.2} parent=5 // pred_fallthru
      _
    %p124 = scmp.lt.s32.totalorder %s9, 2
    // Predicated region
    $region21: #{fre_enc_forward.2} parent=5 // pred_check
      %p125 = pneg %p124
    $region22: #{fre_enc_forward.2} parent=5 // pred_check_branch
      %127 = sbr.rel (%p125) target = $region24
    $region23: #{fre_enc_forward.2} parent=5 // pred_region
      // Predicated region
      $region25: #{fre_enc_forward.2} parent=23 // pred_check
        %p128 = pneg %p29
      $region26: #{fre_enc_forward.2} parent=23 // pred_check_branch
        %130 = sbr.rel (%p128) target = $region28
      $region27: #{fre_enc_forward.2} parent=23 // pred_region
        %p131 = scmp.lt.s32.totalorder %s9, 1
        %s132 = scalar_select %p131, %s9, 1
        %s133 = smul.addr %s132, 4
        %s134 = smul.addr %s133, 8
        %s135 = scalar_lea.vmem %s0, %s134
      $region28: #{fre_enc_forward.2} parent=23 // pred_fallthru
        _
    $region24: #{fre_enc_forward.2} parent=5 // pred_fallthru
      _
    %p136 = scmp.le.s32.totalorder 1, %s9
    %p137 = scmp.lt.s32.totalorder %s9, 3
    %p138 = pnand %p136, %p137
    %p139 = pneg %p138
    // Predicated region
    $region29: #{fre_enc_forward.2} parent=5 // pred_check
      _
    $region30: #{fre_enc_forward.2} parent=5 // pred_check_branch
      %141 = sbr.rel (%p138) target = $region32
    $region31: #{fre_enc_forward.2} parent=5 // pred_region
      %s142 = ssub.s32 %s9, 1
      %p143 = scmp.lt.s32.totalorder %s14, 1
      %s144 = scalar_select %p143, %s14, 1
      %s145 = smul.addr %s144, 4
      %s146 = smul.addr %s145, 8
      %s147 = scalar_lea.vmem %s0, %s146
      %p148 = pneg %p35
      %p149 = pneg %p32
      %p150 = pneg %p56
      %p151 = pneg %p53
      %p152 = pneg %p77
      %p153 = pneg %p74
      %p154 = pneg %p103
      %p155 = pneg %p100
      %p156 = scmp.lt.s32.totalorder %s14, 1
      %s157 = scalar_select %p156, %s14, 1
      %s158 = smul.addr %s157, 8
      %s159 = smul.addr %s158, 8
      %s160 = scalar_lea.vmem %s3, %s159
      %p161 = scmp.lt.s32.totalorder %s14, 1
      %s162 = scalar_select %p161, %s14, 1
      %s163 = smul.addr %s162, 4
      %s164 = smul.addr %s163, 8
      %s165 = scalar_lea.vmem %s0, %s164
      %p166 = scmp.lt.s32.totalorder %s14, 1
      %s167 = scalar_select %p166, %s14, 1
      %s168 = smul.addr %s167, 8
      %s169 = smul.addr %s168, 8
      %s170 = scalar_lea.vmem %s3, %s169
      %v171 = vld [vmem:[%s1] sm:$0xff]
      %v172 = vld [vmem:[%s1 + $0x8] sm:$0xff]
      %v173 = vld [vmem:[%s1 + $0x10] sm:$0xff]
      %v174 = vld [vmem:[%s1 + $0x18] sm:$0xff]
      %v175 = vld [vmem:[%s165] sm:$0xff]
      %v176 = vld [vmem:[%s165 + $0x8] sm:$0xff]
      %v177 = vld [vmem:[%s165 + $0x10] sm:$0xf]
      %v178 = vld [vmem:[%s165 + $0x18] sm:$0xf]
      %v179 = vld [vmem:[%s2] sm:$0xff]
      %v180 = vld [vmem:[%s2 + $0x8] sm:$0xff]
      %v181 = vld [vmem:[%s2 + $0x10] sm:$0xff]
      %v182 = vld [vmem:[%s2 + $0x18] sm:$0xff]
      %v183 = vld [vmem:[%s2 + $0x20] sm:$0xff]
      %v184 = vld [vmem:[%s2 + $0x28] sm:$0xff]
      %v185 = vld [vmem:[%s2 + $0x30] sm:$0xff]
      %v186 = vld [vmem:[%s2 + $0x38] sm:$0xff]
      %vm187 = vcmask 97280
      %v189 = vsel %vm187, %v171, 0
      %v192 = vsel %vm187, %v172, 0
      %v195 = vsel %vm187, %v173, 0
      %v198 = vsel %vm187, %v174, 0
      %vm200 = vcmask 1043456
      %v202 = vsel %vm200, %v177, 0
      %v205 = vsel %vm200, %v178, 0
      %207 = vmatprep.subr.mxu0 %v176
      %208 = vmatpush1.msra.mxu0 %v175
      %209 = vmatprep.subr.mxu0 %v205
      %210 = vmatpush1.msra.mxu0 %v202
      %211 = vmatprep.subr.mxu0 0.0
      %212 = vmatpush1.msra.mxu0 0.0
      %213 = vmatprep.subr.mxu0 0.0
      %214 = vmatpush1.msra.mxu0 0.0
      %215 = vmatprep.subr.mxu0 0.0
      %216 = vmatpush1.msra.mxu0 0.0
      %217 = vmatprep.subr.mxu0 0.0
      %218 = vmatpush1.msra.mxu0 0.0
      %219 = vmatprep.subr.mxu0 0.0
      %220 = vmatpush1.msra.mxu0 0.0
      %221 = vmatprep.subr.mxu0 0.0
      %222 = vmatpush1.msra.mxu0 0.0
      %223 = vmatprep.subr.mxu0 0.0
      %224 = vmatpush1.msra.mxu0 0.0
      %225 = vmatprep.subr.mxu0 0.0
      %226 = vmatpush1.msra.mxu0 0.0
      %227 = vmatprep.subr.mxu0 0.0
      %228 = vmatpush1.msra.mxu0 0.0
      %229 = vmatprep.subr.mxu0 0.0
      %230 = vmatpush1.msra.mxu0 0.0
      %231 = vmatprep.subr.mxu0 0.0
      %232 = vmatpush1.msra.mxu0 0.0
      %233 = vmatprep.subr.mxu0 0.0
      %234 = vmatpush1.msra.mxu0 0.0
      %235 = vmatprep.subr.mxu0 0.0
      %236 = vmatpush1.msra.mxu0 0.0
      %237 = vmatprep.subr.mxu0 0.0
      %238 = vmatpush1.msra.mxu0 0.0
      %239 = vmatprep.subr.mxu0 0.0
      %240 = vmatpush1.msra.mxu0 0.0
      %241 = vmatprep.subr.mxu0 0.0
      %242 = vmatpush1.msra.mxu0 0.0
      %243 = vmatprep.subr.mxu0 0.0
      %244 = vmatpush1.msra.mxu0 0.0
      %245 = vmatprep.subr.mxu0 0.0
      %246 = vmatpush1.msra.mxu0 0.0
      %247 = vmatprep.subr.mxu0 0.0
      %248 = vmatpush1.msra.mxu0 0.0
      %249 = vmatprep.subr.mxu0 0.0
      %250 = vmatpush1.msra.mxu0 0.0
      %251 = vmatprep.subr.mxu0 0.0
      %252 = vmatpush1.msra.mxu0 0.0
      %253 = vmatprep.subr.mxu0 0.0
      %254 = vmatpush1.msra.mxu0 0.0
      %255 = vmatprep.subr.mxu0 0.0
      %256 = vmatpush1.msra.mxu0 0.0
      %257 = vmatprep.subr.mxu0 0.0
      %258 = vmatpush1.msra.mxu0 0.0
      %259 = vmatprep.subr.mxu0 0.0
      %260 = vmatpush1.msra.mxu0 0.0
      %261 = vmatprep.subr.mxu0 0.0
      %262 = vmatpush1.msra.mxu0 0.0
      %263 = vmatprep.subr.mxu0 0.0
      %264 = vmatpush1.msra.mxu0 0.0
      %265 = vmatprep.subr.mxu0 0.0
      %266 = vmatpush1.msra.mxu0 0.0
      %267 = vmatprep.subr.mxu0 0.0
      %268 = vmatpush1.msra.mxu0 0.0
      %269 = vmatprep.subr.mxu0 0.0
      %270 = vmatpush1.msra.mxu0 0.0
      %271 = vmatprep.mubr.f32.mxu0 0.0
      %272 = vmatmul.mubr.f32.gmra.mrb[0].mxu0 %v189
      %v273 = vpop.f32.mrb[0].mxu0
      %v274 = vadd.f32 %v179, %v273
      %v275 = vpop.f32.mrb[0].mxu0
      %v276 = vadd.f32 %v180, %v275
      %277 = vmatprep.mubr.f32.mxu0 0.0
      %278 = vmatmul.mubr.f32.gmra.mrb[0].mxu0 %v192
      %v279 = vpop.f32.mrb[0].mxu0
      %v280 = vadd.f32 %v181, %v279
      %v281 = vpop.f32.mrb[0].mxu0
      %v282 = vadd.f32 %v182, %v281
      %283 = vmatprep.mubr.f32.mxu0 0.0
      %284 = vmatmul.mubr.f32.gmra.mrb[0].mxu0 %v195
      %v285 = vpop.f32.mrb[0].mxu0
      %v286 = vadd.f32 %v183, %v285
      %v287 = vpop.f32.mrb[0].mxu0
      %v288 = vadd.f32 %v184, %v287
      %289 = vmatprep.mubr.f32.mxu0 0.0
      %290 = vmatmul.mubr.f32.gmra.mrb[0].mxu0 %v198
      %v291 = vpop.f32.mrb[0].mxu0
      %v292 = vadd.f32 %v185, %v291
      %v293 = vpop.f32.mrb[0].mxu0
      %v294 = vadd.f32 %v186, %v293
      %295 = vdwg.mxu0
      %296 = vst [vmem:[%s170] sm:$0xff] %v274
      %297 = vst [vmem:[%s170 + $0x8] sm:$0xff] %v276
      %298 = vst [vmem:[%s170 + $0x10] sm:$0xff] %v280
      %299 = vst [vmem:[%s170 + $0x18] sm:$0xff] %v282
      %300 = vst [vmem:[%s170 + $0x20] sm:$0xff] %v286
      %301 = vst [vmem:[%s170 + $0x28] sm:$0xff] %v288
      %302 = vst [vmem:[%s170 + $0x30] sm:$0xff] %v292
      %303 = vst [vmem:[%s170 + $0x38] sm:$0xff] %v294
      %p304 = scmp.lt.s32.totalorder %s14, 1
      %s305 = scalar_select %p304, %s14, 1
      %s306 = smul.addr %s305, 8
      %s307 = smul.addr %s306, 8
      %s308 = scalar_lea.vmem %s3, %s307
      // Predicated region
      $region33: #{fre_enc_forward.2} parent=31 // pred_check
        %p309 = pneg %p100
      $region34: #{fre_enc_forward.2} parent=31 // pred_check_branch
        %311 = sbr.rel (%p309) target = $region36
      $region35: #{fre_enc_forward.2} parent=31 // pred_region
        _
      $region36: #{fre_enc_forward.2} parent=31 // pred_fallthru
        _
    $region32: #{fre_enc_forward.2} parent=5 // pred_fallthru
      _
    %p312 = scmp.le.s32.totalorder 2, %s9
    // Predicated region
    $region37: #{fre_enc_forward.2} parent=5 // pred_check
      %p313 = pneg %p312
    $region38: #{fre_enc_forward.2} parent=5 // pred_check_branch
      %315 = sbr.rel (%p313) target = $region40
    $region39: #{fre_enc_forward.2} parent=5 // pred_region
      %s316 = ssub.s32 %s9, 2
      // Predicated region
      $region41: #{fre_enc_forward.2} parent=39 // pred_check
        %p317 = pneg %p106
      $region42: #{fre_enc_forward.2} parent=39 // pred_check_branch
        %319 = sbr.rel (%p317) target = $region44
      $region43: #{fre_enc_forward.2} parent=39 // pred_region
        %p320 = scmp.lt.s32.totalorder %s15, 1
        %s321 = scalar_select %p320, %s15, 1
        %s322 = smul.addr %s321, 8
        %s323 = smul.addr %s322, 8
        %s324 = scalar_lea.vmem %s3, %s323
      $region44: #{fre_enc_forward.2} parent=39 // pred_fallthru
        _
    $region40: #{fre_enc_forward.2} parent=5 // pred_fallthru
      _
  $region6: #{fre_enc_forward.2} parent=0 // loop_footer
    %s13 = sadd.s32 1, %s9
  $region7: #{fre_enc_forward.2} parent=0 // loop_footer_branch
    %8 = sbr.rel target = $region3
  $region8: #{fre_enc_forward.2} parent=0 // loop_exit
    _

// kernel: reverse.0
$region0: #{reverse.0}
  %s0 = inlined_call_operand.vmem [shape: f32[2,32,127], index: 0, kind: input, shape index: {}]
  %s1 = inlined_call_operand.vmem [shape: f32[2,32,127], index: 1, kind: output, shape index: {}]
  %v2 = vlaneseq
  %v3 = vsub.s32 126, %v2
  %4 = vset.pattern.permute.xlu0 %v3
  $region1: #{reverse.0} parent=0
    #allocation0 [shape = 'u8[32768]{0}', space=vmem, size = 0x8000, scoped, tag = 'operand span for operand 0']
    #allocation1 [shape = 'u8[32768]{0}', space=vmem, size = 0x8000, scoped, tag = 'operand span for operand 1']
    // Predicated region
    $region2: #{reverse.0} parent=1 // pred_check
      _
    $region3: #{reverse.0} parent=1 // pred_check_branch
      %6 = sbr.rel (0) target = $region5
    $region4: #{reverse.0} parent=1 // pred_region
      // Predicated region
      $region6: #{reverse.0} parent=4 // pred_check
        _
      $region7: #{reverse.0} parent=4 // pred_check_branch
        %8 = sbr.rel (0) target = $region9
      $region8: #{reverse.0} parent=4 // pred_region
        // Predicated region
        $region21: #{reverse.0} parent=8 // pred_check
          _
        $region22: #{reverse.0} parent=8 // pred_check_branch
          %37 = sbr.rel (0) target = $region24
        $region23: #{reverse.0} parent=8 // pred_region
          loop: start=0, step=1, limit=1
          $region25: #{reverse.0} parent=23 // loop_pre_header
            _
          $region26: #{reverse.0} parent=23 // loop_header
            %s39 = sphi 0, %s43
            %p40 = scmp.ge.s32.totalorder %s39, 1
            %s44 = sphi %s0, %s0
            %s45 = sphi [#allocation0], [#allocation0]
          $region27: #{reverse.0} parent=23 // loop_header_branch
            %42 = sbr.rel (%p40) target = $region31
          $region28: #{reverse.0} parent=23 // loop_body
            %v46 = vld [vmem:[%s44] sm:$0xff]
            %47 = vst [vmem:[%s45] sm:$0xff] %v46
            %v48 = vld [vmem:[%s44 + $0x8] sm:$0xff]
            %49 = vst [vmem:[%s45 + $0x8] sm:$0xff] %v48
            %v50 = vld [vmem:[%s44 + $0x10] sm:$0xff]
            %51 = vst [vmem:[%s45 + $0x10] sm:$0xff] %v50
            %v52 = vld [vmem:[%s44 + $0x18] sm:$0xff]
            %53 = vst [vmem:[%s45 + $0x18] sm:$0xff] %v52
            %v54 = vld [vmem:[%s44 + $0x20] sm:$0xff]
            %55 = vst [vmem:[%s45 + $0x20] sm:$0xff] %v54
            %v56 = vld [vmem:[%s44 + $0x28] sm:$0xff]
            %57 = vst [vmem:[%s45 + $0x28] sm:$0xff] %v56
            %v58 = vld [vmem:[%s44 + $0x30] sm:$0xff]
            %59 = vst [vmem:[%s45 + $0x30] sm:$0xff] %v58
            %v60 = vld [vmem:[%s44 + $0x38] sm:$0xff]
            %61 = vst [vmem:[%s45 + $0x38] sm:$0xff] %v60
          $region29: #{reverse.0} parent=23 // loop_footer
            %s43 = sadd.s32 1, %s39
          $region30: #{reverse.0} parent=23 // loop_footer_branch
            %38 = sbr.rel target = $region26
          $region31: #{reverse.0} parent=23 // loop_exit
            _
        $region24: #{reverse.0} parent=8 // pred_fallthru
          _
        // Predicated region
        $region32: #{reverse.0} parent=8 // pred_check
          _
        $region33: #{reverse.0} parent=8 // pred_check_branch
          %63 = sbr.rel target = $region35
        $region34: #{reverse.0} parent=8 // pred_region
          _
        $region35: #{reverse.0} parent=8 // pred_fallthru
          _
      $region9: #{reverse.0} parent=4 // pred_fallthru
        _
      // Predicated region
      $region10: #{reverse.0} parent=4 // pred_check
        _
      $region11: #{reverse.0} parent=4 // pred_check_branch
        %10 = sbr.rel target = $region13
      $region12: #{reverse.0} parent=4 // pred_region
        loop: start=0, step=1, limit=1
        $region14: #{reverse.0} parent=12 // loop_pre_header
          _
        $region15: #{reverse.0} parent=12 // loop_header
          %s13 = sphi 0, %s17
          %p14 = scmp.ge.s32.totalorder %s13, 1
          %s18 = sphi %s0, %s0
          %s19 = sphi [#allocation0], [#allocation0]
        $region16: #{reverse.0} parent=12 // loop_header_branch
          %16 = sbr.rel (%p14) target = $region20
        $region17: #{reverse.0} parent=12 // loop_body
          %v20 = vld [vmem:[%s18] sm:$0xff]
          %21 = vst [vmem:[%s19] sm:$0xff] %v20
          %v22 = vld [vmem:[%s18 + $0x8] sm:$0xff]
          %23 = vst [vmem:[%s19 + $0x8] sm:$0xff] %v22
          %v24 = vld [vmem:[%s18 + $0x10] sm:$0xff]
          %25 = vst [vmem:[%s19 + $0x10] sm:$0xff] %v24
          %v26 = vld [vmem:[%s18 + $0x18] sm:$0xff]
          %27 = vst [vmem:[%s19 + $0x18] sm:$0xff] %v26
          %v28 = vld [vmem:[%s18 + $0x20] sm:$0xff]
          %29 = vst [vmem:[%s19 + $0x20] sm:$0xff] %v28
          %v30 = vld [vmem:[%s18 + $0x28] sm:$0xff]
          %31 = vst [vmem:[%s19 + $0x28] sm:$0xff] %v30
          %v32 = vld [vmem:[%s18 + $0x30] sm:$0xff]
          %33 = vst [vmem:[%s19 + $0x30] sm:$0xff] %v32
          %v34 = vld [vmem:[%s18 + $0x38] sm:$0xff]
          %35 = vst [vmem:[%s19 + $0x38] sm:$0xff] %v34
        $region18: #{reverse.0} parent=12 // loop_footer
          %s17 = sadd.s32 1, %s13
        $region19: #{reverse.0} parent=12 // loop_footer_branch
          %12 = sbr.rel target = $region15
        $region20: #{reverse.0} parent=12 // loop_exit
          _
      $region13: #{reverse.0} parent=4 // pred_fallthru
        _
    $region5: #{reverse.0} parent=1 // pred_fallthru
      _
    %64 = vnop
    %v65 = vld [vmem:[#allocation0] sm:$0xff]
    %66 = vperm.xlu0 %4, %v65
    %v67 = vpop.permute.xlu0 %66
    %68 = vst [vmem:[#allocation1] sm:$0xff] %v67
    %s69 = scalar_lea.vmem [#allocation1], 8
    %s70 = scalar_lea.vmem [#allocation0], 8
    %v71 = vld [vmem:[%s70] sm:$0xff]
    %72 = vperm.xlu0 %4, %v71
    %v73 = vpop.permute.xlu0 %72
    %74 = vst [vmem:[%s69] sm:$0xff] %v73
    %s75 = scalar_lea.vmem [#allocation1], 16
    %s76 = scalar_lea.vmem [#allocation0], 16
    %v77 = vld [vmem:[%s76] sm:$0xff]
    %78 = vperm.xlu0 %4, %v77
    %v79 = vpop.permute.xlu0 %78
    %80 = vst [vmem:[%s75] sm:$0xff] %v79
    %s81 = scalar_lea.vmem [#allocation1], 24
    %s82 = scalar_lea.vmem [#allocation0], 24
    %v83 = vld [vmem:[%s82] sm:$0xff]
    %84 = vperm.xlu0 %4, %v83
    %v85 = vpop.permute.xlu0 %84
    %86 = vst [vmem:[%s81] sm:$0xff] %v85
    %s87 = scalar_lea.vmem [#allocation1], 32
    %s88 = scalar_lea.vmem [#allocation0], 32
    %v89 = vld [vmem:[%s88] sm:$0xff]
    %90 = vperm.xlu0 %4, %v89
    %v91 = vpop.permute.xlu0 %90
    %92 = vst [vmem:[%s87] sm:$0xff] %v91
    %s93 = scalar_lea.vmem %s87, 8 [#allocation1]
    %s94 = scalar_lea.vmem %s88, 8 [#allocation0]
    %v95 = vld [vmem:[%s94] sm:$0xff]
    %96 = vperm.xlu0 %4, %v95
    %v97 = vpop.permute.xlu0 %96
    %98 = vst [vmem:[%s93] sm:$0xff] %v97
    %s99 = scalar_lea.vmem %s87, 16 [#allocation1]
    %s100 = scalar_lea.vmem %s88, 16 [#allocation0]
    %v101 = vld [vmem:[%s100] sm:$0xff]
    %102 = vperm.xlu0 %4, %v101
    %v103 = vpop.permute.xlu0 %102
    %104 = vst [vmem:[%s99] sm:$0xff] %v103
    %s105 = scalar_lea.vmem %s87, 24 [#allocation1]
    %s106 = scalar_lea.vmem %s88, 24 [#allocation0]
    %v107 = vld [vmem:[%s106] sm:$0xff]
    %108 = vperm.xlu0 %4, %v107
    %v109 = vpop.permute.xlu0 %108
    %110 = vst [vmem:[%s105] sm:$0xff] %v109
    // Predicated region
    $region36: #{reverse.0} parent=1 // pred_check
      _
    $region37: #{reverse.0} parent=1 // pred_check_branch
      %112 = sbr.rel (0) target = $region39
    $region38: #{reverse.0} parent=1 // pred_region
      // Predicated region
      $region40: #{reverse.0} parent=38 // pred_check
        _
      $region41: #{reverse.0} parent=38 // pred_check_branch
        %114 = sbr.rel (0) target = $region43
      $region42: #{reverse.0} parent=38 // pred_region
        // Predicated region
        $region55: #{reverse.0} parent=42 // pred_check
          _
        $region56: #{reverse.0} parent=42 // pred_check_branch
          %143 = sbr.rel (0) target = $region58
        $region57: #{reverse.0} parent=42 // pred_region
          loop: start=0, step=1, limit=1
          $region59: #{reverse.0} parent=57 // loop_pre_header
            _
          $region60: #{reverse.0} parent=57 // loop_header
            %s145 = sphi 0, %s149
            %p146 = scmp.ge.s32.totalorder %s145, 1
            %s150 = sphi [#allocation1], [#allocation1]
            %s151 = sphi %s1, %s1
          $region61: #{reverse.0} parent=57 // loop_header_branch
            %148 = sbr.rel (%p146) target = $region65
          $region62: #{reverse.0} parent=57 // loop_body
            %v152 = vld [vmem:[%s150] sm:$0xff]
            %153 = vst [vmem:[%s151] sm:$0xff] %v152
            %v154 = vld [vmem:[%s150 + $0x8] sm:$0xff]
            %155 = vst [vmem:[%s151 + $0x8] sm:$0xff] %v154
            %v156 = vld [vmem:[%s150 + $0x10] sm:$0xff]
            %157 = vst [vmem:[%s151 + $0x10] sm:$0xff] %v156
            %v158 = vld [vmem:[%s150 + $0x18] sm:$0xff]
            %159 = vst [vmem:[%s151 + $0x18] sm:$0xff] %v158
            %v160 = vld [vmem:[%s150 + $0x20] sm:$0xff]
            %161 = vst [vmem:[%s151 + $0x20] sm:$0xff] %v160
            %v162 = vld [vmem:[%s150 + $0x28] sm:$0xff]
            %163 = vst [vmem:[%s151 + $0x28] sm:$0xff] %v162
            %v164 = vld [vmem:[%s150 + $0x30] sm:$0xff]
            %165 = vst [vmem:[%s151 + $0x30] sm:$0xff] %v164
            %v166 = vld [vmem:[%s150 + $0x38] sm:$0xff]
            %167 = vst [vmem:[%s151 + $0x38] sm:$0xff] %v166
          $region63: #{reverse.0} parent=57 // loop_footer
            %s149 = sadd.s32 1, %s145
          $region64: #{reverse.0} parent=57 // loop_footer_branch
            %144 = sbr.rel target = $region60
          $region65: #{reverse.0} parent=57 // loop_exit
            _
        $region58: #{reverse.0} parent=42 // pred_fallthru
          _
        // Predicated region
        $region66: #{reverse.0} parent=42 // pred_check
          _
        $region67: #{reverse.0} parent=42 // pred_check_branch
          %169 = sbr.rel target = $region69
        $region68: #{reverse.0} parent=42 // pred_region
          _
        $region69: #{reverse.0} parent=42 // pred_fallthru
          _
      $region43: #{reverse.0} parent=38 // pred_fallthru
        _
      // Predicated region
      $region44: #{reverse.0} parent=38 // pred_check
        _
      $region45: #{reverse.0} parent=38 // pred_check_branch
        %116 = sbr.rel target = $region47
      $region46: #{reverse.0} parent=38 // pred_region
        loop: start=0, step=1, limit=1
        $region48: #{reverse.0} parent=46 // loop_pre_header
          _
        $region49: #{reverse.0} parent=46 // loop_header
          %s119 = sphi 0, %s123
          %p120 = scmp.ge.s32.totalorder %s119, 1
          %s124 = sphi [#allocation1], [#allocation1]
          %s125 = sphi %s1, %s1
        $region50: #{reverse.0} parent=46 // loop_header_branch
          %122 = sbr.rel (%p120) target = $region54
        $region51: #{reverse.0} parent=46 // loop_body
          %v126 = vld [vmem:[%s124] sm:$0xff]
          %127 = vst [vmem:[%s125] sm:$0xff] %v126
          %v128 = vld [vmem:[%s124 + $0x8] sm:$0xff]
          %129 = vst [vmem:[%s125 + $0x8] sm:$0xff] %v128
          %v130 = vld [vmem:[%s124 + $0x10] sm:$0xff]
          %131 = vst [vmem:[%s125 + $0x10] sm:$0xff] %v130
          %v132 = vld [vmem:[%s124 + $0x18] sm:$0xff]
          %133 = vst [vmem:[%s125 + $0x18] sm:$0xff] %v132
          %v134 = vld [vmem:[%s124 + $0x20] sm:$0xff]
          %135 = vst [vmem:[%s125 + $0x20] sm:$0xff] %v134
          %v136 = vld [vmem:[%s124 + $0x28] sm:$0xff]
          %137 = vst [vmem:[%s125 + $0x28] sm:$0xff] %v136
          %v138 = vld [vmem:[%s124 + $0x30] sm:$0xff]
          %139 = vst [vmem:[%s125 + $0x30] sm:$0xff] %v138
          %v140 = vld [vmem:[%s124 + $0x38] sm:$0xff]
          %141 = vst [vmem:[%s125 + $0x38] sm:$0xff] %v140
        $region52: #{reverse.0} parent=46 // loop_footer
          %s123 = sadd.s32 1, %s119
        $region53: #{reverse.0} parent=46 // loop_footer_branch
          %118 = sbr.rel target = $region49
        $region54: #{reverse.0} parent=46 // loop_exit
          _
      $region47: #{reverse.0} parent=38 // pred_fallthru
        _
    $region39: #{reverse.0} parent=1 // pred_fallthru
      _
    %170 = vnop

// kernel: fre_enc_forward.3
$region0: #{fre_enc_forward.3}
  #allocation0 [shape = 'u32[]', space=smem, size = 0x4, offset = 0x4, fixed_abs, tag = 'smem constant byte address 0x4 - core index']
  #allocation1 [shape = 'u32[144,128]{1,0:T(1,128)}', space=vmem, size = 0x12000, scoped, tag = 'internal scratch']
  %s0 = inlined_call_operand.vmem [shape: f32[2,128,128], index: 0, kind: input, shape index: {}]
  %s1 = inlined_call_operand.vmem [shape: f32[2,128,128], index: 1, kind: input, shape index: {}]
  %s2 = inlined_call_operand.vmem [shape: f32[32,128], index: 2, kind: input, shape index: {}]
  %s3 = inlined_call_operand.vmem [shape: f32[32,1], index: 3, kind: input, shape index: {}]
  %s4 = inlined_call_operand.vmem [shape: f32[160,32], index: 4, kind: input, shape index: {}]
  %s5 = inlined_call_operand.vmem [shape: f32[40,1], index: 5, kind: input, shape index: {}]
  %s6 = inlined_call_operand.vmem [shape: f32[124,4], index: 6, kind: input, shape index: {}]
  %s7 = inlined_call_operand.vmem [shape: f32[40,40], index: 7, kind: input, shape index: {}]
  %s8 = inlined_call_operand.vmem [shape: f32[40,1], index: 8, kind: input, shape index: {}]
  %s9 = inlined_call_operand.vmem [shape: f32[32,40], index: 9, kind: input, shape index: {}]
  %s10 = inlined_call_operand.vmem [shape: f32[32,1], index: 10, kind: input, shape index: {}]
  %s11 = inlined_call_operand.vmem [shape: f32[4,1], index: 11, kind: input, shape index: {}]
  %s12 = inlined_call_operand.vmem [shape: f32[32,32], index: 12, kind: input, shape index: {}]
  %s13 = inlined_call_operand.vmem [shape: f32[32,1], index: 13, kind: input, shape index: {}]
  %s14 = inlined_call_operand.vmem [shape: f32[32,32], index: 14, kind: input, shape index: {}]
  %s15 = inlined_call_operand.vmem [shape: f32[32,1], index: 15, kind: input, shape index: {}]
  %s16 = inlined_call_operand.vmem [shape: f32[2,32,1], index: 16, kind: output, shape index: {}]
  %s17 = sld [smem:[#allocation0]]
  $region97: #{fre_enc_forward.3} parent=0
    _
  %s19 = ssub.s32 1, %s17
  %s20 = scalar_select 0, %s19, %s17
  loop: start=0, step=1, limit=4
  $region2: #{fre_enc_forward.3} parent=0 // loop_pre_header
    _
  $region3: #{fre_enc_forward.3} parent=0 // loop_header
    %s22 = sphi 0, %s26
    %p23 = scmp.ge.s32.totalorder %s22, 4
    %s32 = sphi 0, %s34
    %s35 = sphi 0, %s32
    %s36 = sphi 0, %s35
    %s52 = sphi 0, %s36
    %s58 = sphi 0, %s60
    %s61 = sphi 0, %s58
    %s62 = sphi 0, %s61
    %s78 = sphi 0, %s62
    %s82 = sphi 0, %s82
    %s84 = sphi 0, %s82
    %s85 = sphi 0, %s84
    %s99 = sphi 0, %s85
    %s103 = sphi 0, %s103
    %s105 = sphi 0, %s103
    %s106 = sphi 0, %s105
    %s120 = sphi 0, %s106
    %s124 = sphi 0, %s124
    %s126 = sphi 0, %s124
    %s127 = sphi 0, %s126
    %s141 = sphi 0, %s127
    %s145 = sphi 0, %s145
    %s147 = sphi 0, %s145
    %s148 = sphi 0, %s147
    %s162 = sphi 0, %s148
    %s166 = sphi 0, %s166
    %s168 = sphi 0, %s166
    %s169 = sphi 0, %s168
    %s183 = sphi 0, %s169
    %s187 = sphi 0, %s187
    %s189 = sphi 0, %s187
    %s190 = sphi 0, %s189
    %s204 = sphi 0, %s190
    %s208 = sphi 0, %s208
    %s210 = sphi 0, %s208
    %s211 = sphi 0, %s210
    %s225 = sphi 0, %s211
    %s229 = sphi 0, %s229
    %s231 = sphi 0, %s229
    %s232 = sphi 0, %s231
    %s246 = sphi 0, %s232
    %s250 = sphi 0, %s250
    %s252 = sphi 0, %s250
    %s253 = sphi 0, %s252
    %s267 = sphi 0, %s253
    %s271 = sphi 0, %s271
    %s273 = sphi 0, %s271
    %s274 = sphi 0, %s273
    %s288 = sphi 0, %s274
    %s292 = sphi 0, %s292
    %s294 = sphi 0, %s292
    %s295 = sphi 0, %s294
    %s309 = sphi 0, %s295
    %s313 = sphi 0, %s313
    %s315 = sphi 0, %s313
    %s316 = sphi 0, %s315
    %s330 = sphi 0, %s316
    %s334 = sphi 0, %s334
    %s336 = sphi 0, %s334
    %s337 = sphi 0, %s336
    %s351 = sphi 0, %s337
    %s355 = sphi 0, %s355
    %s357 = sphi 0, %s355
    %s358 = sphi 0, %s357
    %s372 = sphi 0, %s358
    %s378 = sphi 0, %s380
    %s381 = sphi 0, %s378
    %s382 = sphi 0, %s381
    %s398 = sphi 0, %s382
  $region4: #{fre_enc_forward.3} parent=0 // loop_header_branch
    %25 = sbr.rel (%p23) target = $region8
  $region5: #{fre_enc_forward.3} parent=0 // loop_body
    %s27 = ssub.s32 %s22, 1
    %s28 = ssub.s32 %s22, 2
    %s29 = sadd.s32 %s22, 1
    %s30 = ssub.s32 %s22, %s29
    %p31 = scmp.eq.s32.totalorder %s30, 0
    %s33 = sadd.s32 %s32, 1
    %s34 = scalar_select %p31, %s32, %s33
    %p37 = pneg %p31
    %p38 = scmp.eq.s32.totalorder %s22, 1
    %p39 = por %p37, %p38
    %p40 = scmp.ne.s32.totalorder %s32, %s35
    %p41 = scmp.eq.s32.totalorder %s22, 0
    %p42 = por %p40, %p41
    %p43 = scmp.ne.s32.totalorder %s32, %s35
    %p44 = scmp.eq.s32.totalorder %s27, 1
    %p45 = por %p43, %p44
    %p46 = scmp.ne.s32.totalorder %s35, %s36
    %p47 = scmp.eq.s32.totalorder %s27, 0
    %p48 = por %p46, %p47
    %p49 = scmp.ne.s32.totalorder %s35, %s36
    %p50 = scmp.eq.s32.totalorder %s28, 1
    %p51 = por %p49, %p50
    %p53 = scmp.ne.s32.totalorder %s36, %s52
    %p54 = scmp.eq.s32.totalorder %s28, 0
    %p55 = por %p53, %p54
    %s56 = ssub.s32 %s22, %s29
    %p57 = scmp.eq.s32.totalorder %s56, 0
    %s59 = sadd.s32 %s58, 1
    %s60 = scalar_select %p57, %s58, %s59
    %p63 = pneg %p57
    %p64 = scmp.eq.s32.totalorder %s22, 1
    %p65 = por %p63, %p64
    %p66 = scmp.ne.s32.totalorder %s58, %s61
    %p67 = scmp.eq.s32.totalorder %s22, 0
    %p68 = por %p66, %p67
    %p69 = scmp.ne.s32.totalorder %s58, %s61
    %p70 = scmp.eq.s32.totalorder %s27, 1
    %p71 = por %p69, %p70
    %p72 = scmp.ne.s32.totalorder %s61, %s62
    %p73 = scmp.eq.s32.totalorder %s27, 0
    %p74 = por %p72, %p73
    %p75 = scmp.ne.s32.totalorder %s61, %s62
    %p76 = scmp.eq.s32.totalorder %s28, 1
    %p77 = por %p75, %p76
    %p79 = scmp.ne.s32.totalorder %s62, %s78
    %p80 = scmp.eq.s32.totalorder %s28, 0
    %p81 = por %p79, %p80
    %s83 = sadd.s32 %s82, 1
    %p86 = scmp.eq.s32.totalorder %s22, 1
    %p87 = scmp.ne.s32.totalorder %s82, %s84
    %p88 = scmp.eq.s32.totalorder %s22, 0
    %p89 = por %p87, %p88
    %p90 = scmp.ne.s32.totalorder %s82, %s84
    %p91 = scmp.eq.s32.totalorder %s27, 1
    %p92 = por %p90, %p91
    %p93 = scmp.ne.s32.totalorder %s84, %s85
    %p94 = scmp.eq.s32.totalorder %s27, 0
    %p95 = por %p93, %p94
    %p96 = scmp.ne.s32.totalorder %s84, %s85
    %p97 = scmp.eq.s32.totalorder %s28, 1
    %p98 = por %p96, %p97
    %p100 = scmp.ne.s32.totalorder %s85, %s99
    %p101 = scmp.eq.s32.totalorder %s28, 0
    %p102 = por %p100, %p101
    %s104 = sadd.s32 %s103, 1
    %p107 = scmp.eq.s32.totalorder %s22, 1
    %p108 = scmp.ne.s32.totalorder %s103, %s105
    %p109 = scmp.eq.s32.totalorder %s22, 0
    %p110 = por %p108, %p109
    %p111 = scmp.ne.s32.totalorder %s103, %s105
    %p112 = scmp.eq.s32.totalorder %s27, 1
    %p113 = por %p111, %p112
    %p114 = scmp.ne.s32.totalorder %s105, %s106
    %p115 = scmp.eq.s32.totalorder %s27, 0
    %p116 = por %p114, %p115
    %p117 = scmp.ne.s32.totalorder %s105, %s106
    %p118 = scmp.eq.s32.totalorder %s28, 1
    %p119 = por %p117, %p118
    %p121 = scmp.ne.s32.totalorder %s106, %s120
    %p122 = scmp.eq.s32.totalorder %s28, 0
    %p123 = por %p121, %p122
    %s125 = sadd.s32 %s124, 1
    %p128 = scmp.eq.s32.totalorder %s22, 1
    %p129 = scmp.ne.s32.totalorder %s124, %s126
    %p130 = scmp.eq.s32.totalorder %s22, 0
    %p131 = por %p129, %p130
    %p132 = scmp.ne.s32.totalorder %s124, %s126
    %p133 = scmp.eq.s32.totalorder %s27, 1
    %p134 = por %p132, %p133
    %p135 = scmp.ne.s32.totalorder %s126, %s127
    %p136 = scmp.eq.s32.totalorder %s27, 0
    %p137 = por %p135, %p136
    %p138 = scmp.ne.s32.totalorder %s126, %s127
    %p139 = scmp.eq.s32.totalorder %s28, 1
    %p140 = por %p138, %p139
    %p142 = scmp.ne.s32.totalorder %s127, %s141
    %p143 = scmp.eq.s32.totalorder %s28, 0
    %p144 = por %p142, %p143
    %s146 = sadd.s32 %s145, 1
    %p149 = scmp.eq.s32.totalorder %s22, 1
    %p150 = scmp.ne.s32.totalorder %s145, %s147
    %p151 = scmp.eq.s32.totalorder %s22, 0
    %p152 = por %p150, %p151
    %p153 = scmp.ne.s32.totalorder %s145, %s147
    %p154 = scmp.eq.s32.totalorder %s27, 1
    %p155 = por %p153, %p154
    %p156 = scmp.ne.s32.totalorder %s147, %s148
    %p157 = scmp.eq.s32.totalorder %s27, 0
    %p158 = por %p156, %p157
    %p159 = scmp.ne.s32.totalorder %s147, %s148
    %p160 = scmp.eq.s32.totalorder %s28, 1
    %p161 = por %p159, %p160
    %p163 = scmp.ne.s32.totalorder %s148, %s162
    %p164 = scmp.eq.s32.totalorder %s28, 0
    %p165 = por %p163, %p164
    %s167 = sadd.s32 %s166, 1
    %p170 = scmp.eq.s32.totalorder %s22, 1
    %p171 = scmp.ne.s32.totalorder %s166, %s168
    %p172 = scmp.eq.s32.totalorder %s22, 0
    %p173 = por %p171, %p172
    %p174 = scmp.ne.s32.totalorder %s166, %s168
    %p175 = scmp.eq.s32.totalorder %s27, 1
    %p176 = por %p174, %p175
    %p177 = scmp.ne.s32.totalorder %s168, %s169
    %p178 = scmp.eq.s32.totalorder %s27, 0
    %p179 = por %p177, %p178
    %p180 = scmp.ne.s32.totalorder %s168, %s169
    %p181 = scmp.eq.s32.totalorder %s28, 1
    %p182 = por %p180, %p181
    %p184 = scmp.ne.s32.totalorder %s169, %s183
    %p185 = scmp.eq.s32.totalorder %s28, 0
    %p186 = por %p184, %p185
    %s188 = sadd.s32 %s187, 1
    %p191 = scmp.eq.s32.totalorder %s22, 1
    %p192 = scmp.ne.s32.totalorder %s187, %s189
    %p193 = scmp.eq.s32.totalorder %s22, 0
    %p194 = por %p192, %p193
    %p195 = scmp.ne.s32.totalorder %s187, %s189
    %p196 = scmp.eq.s32.totalorder %s27, 1
    %p197 = por %p195, %p196
    %p198 = scmp.ne.s32.totalorder %s189, %s190
    %p199 = scmp.eq.s32.totalorder %s27, 0
    %p200 = por %p198, %p199
    %p201 = scmp.ne.s32.totalorder %s189, %s190
    %p202 = scmp.eq.s32.totalorder %s28, 1
    %p203 = por %p201, %p202
    %p205 = scmp.ne.s32.totalorder %s190, %s204
    %p206 = scmp.eq.s32.totalorder %s28, 0
    %p207 = por %p205, %p206
    %s209 = sadd.s32 %s208, 1
    %p212 = scmp.eq.s32.totalorder %s22, 1
    %p213 = scmp.ne.s32.totalorder %s208, %s210
    %p214 = scmp.eq.s32.totalorder %s22, 0
    %p215 = por %p213, %p214
    %p216 = scmp.ne.s32.totalorder %s208, %s210
    %p217 = scmp.eq.s32.totalorder %s27, 1
    %p218 = por %p216, %p217
    %p219 = scmp.ne.s32.totalorder %s210, %s211
    %p220 = scmp.eq.s32.totalorder %s27, 0
    %p221 = por %p219, %p220
    %p222 = scmp.ne.s32.totalorder %s210, %s211
    %p223 = scmp.eq.s32.totalorder %s28, 1
    %p224 = por %p222, %p223
    %p226 = scmp.ne.s32.totalorder %s211, %s225
    %p227 = scmp.eq.s32.totalorder %s28, 0
    %p228 = por %p226, %p227
    %s230 = sadd.s32 %s229, 1
    %p233 = scmp.eq.s32.totalorder %s22, 1
    %p234 = scmp.ne.s32.totalorder %s229, %s231
    %p235 = scmp.eq.s32.totalorder %s22, 0
    %p236 = por %p234, %p235
    %p237 = scmp.ne.s32.totalorder %s229, %s231
    %p238 = scmp.eq.s32.totalorder %s27, 1
    %p239 = por %p237, %p238
    %p240 = scmp.ne.s32.totalorder %s231, %s232
    %p241 = scmp.eq.s32.totalorder %s27, 0
    %p242 = por %p240, %p241
    %p243 = scmp.ne.s32.totalorder %s231, %s232
    %p244 = scmp.eq.s32.totalorder %s28, 1
    %p245 = por %p243, %p244
    %p247 = scmp.ne.s32.totalorder %s232, %s246
    %p248 = scmp.eq.s32.totalorder %s28, 0
    %p249 = por %p247, %p248
    %s251 = sadd.s32 %s250, 1
    %p254 = scmp.eq.s32.totalorder %s22, 1
    %p255 = scmp.ne.s32.totalorder %s250, %s252
    %p256 = scmp.eq.s32.totalorder %s22, 0
    %p257 = por %p255, %p256
    %p258 = scmp.ne.s32.totalorder %s250, %s252
    %p259 = scmp.eq.s32.totalorder %s27, 1
    %p260 = por %p258, %p259
    %p261 = scmp.ne.s32.totalorder %s252, %s253
    %p262 = scmp.eq.s32.totalorder %s27, 0
    %p263 = por %p261, %p262
    %p264 = scmp.ne.s32.totalorder %s252, %s253
    %p265 = scmp.eq.s32.totalorder %s28, 1
    %p266 = por %p264, %p265
    %p268 = scmp.ne.s32.totalorder %s253, %s267
    %p269 = scmp.eq.s32.totalorder %s28, 0
    %p270 = por %p268, %p269
    %s272 = sadd.s32 %s271, 1
    %p275 = scmp.eq.s32.totalorder %s22, 1
    %p276 = scmp.ne.s32.totalorder %s271, %s273
    %p277 = scmp.eq.s32.totalorder %s22, 0
    %p278 = por %p276, %p277
    %p279 = scmp.ne.s32.totalorder %s271, %s273
    %p280 = scmp.eq.s32.totalorder %s27, 1
    %p281 = por %p279, %p280
    %p282 = scmp.ne.s32.totalorder %s273, %s274
    %p283 = scmp.eq.s32.totalorder %s27, 0
    %p284 = por %p282, %p283
    %p285 = scmp.ne.s32.totalorder %s273, %s274
    %p286 = scmp.eq.s32.totalorder %s28, 1
    %p287 = por %p285, %p286
    %p289 = scmp.ne.s32.totalorder %s274, %s288
    %p290 = scmp.eq.s32.totalorder %s28, 0
    %p291 = por %p289, %p290
    %s293 = sadd.s32 %s292, 1
    %p296 = scmp.eq.s32.totalorder %s22, 1
    %p297 = scmp.ne.s32.totalorder %s292, %s294
    %p298 = scmp.eq.s32.totalorder %s22, 0
    %p299 = por %p297, %p298
    %p300 = scmp.ne.s32.totalorder %s292, %s294
    %p301 = scmp.eq.s32.totalorder %s27, 1
    %p302 = por %p300, %p301
    %p303 = scmp.ne.s32.totalorder %s294, %s295
    %p304 = scmp.eq.s32.totalorder %s27, 0
    %p305 = por %p303, %p304
    %p306 = scmp.ne.s32.totalorder %s294, %s295
    %p307 = scmp.eq.s32.totalorder %s28, 1
    %p308 = por %p306, %p307
    %p310 = scmp.ne.s32.totalorder %s295, %s309
    %p311 = scmp.eq.s32.totalorder %s28, 0
    %p312 = por %p310, %p311
    %s314 = sadd.s32 %s313, 1
    %p317 = scmp.eq.s32.totalorder %s22, 1
    %p318 = scmp.ne.s32.totalorder %s313, %s315
    %p319 = scmp.eq.s32.totalorder %s22, 0
    %p320 = por %p318, %p319
    %p321 = scmp.ne.s32.totalorder %s313, %s315
    %p322 = scmp.eq.s32.totalorder %s27, 1
    %p323 = por %p321, %p322
    %p324 = scmp.ne.s32.totalorder %s315, %s316
    %p325 = scmp.eq.s32.totalorder %s27, 0
    %p326 = por %p324, %p325
    %p327 = scmp.ne.s32.totalorder %s315, %s316
    %p328 = scmp.eq.s32.totalorder %s28, 1
    %p329 = por %p327, %p328
    %p331 = scmp.ne.s32.totalorder %s316, %s330
    %p332 = scmp.eq.s32.totalorder %s28, 0
    %p333 = por %p331, %p332
    %s335 = sadd.s32 %s334, 1
    %p338 = scmp.eq.s32.totalorder %s22, 1
    %p339 = scmp.ne.s32.totalorder %s334, %s336
    %p340 = scmp.eq.s32.totalorder %s22, 0
    %p341 = por %p339, %p340
    %p342 = scmp.ne.s32.totalorder %s334, %s336
    %p343 = scmp.eq.s32.totalorder %s27, 1
    %p344 = por %p342, %p343
    %p345 = scmp.ne.s32.totalorder %s336, %s337
    %p346 = scmp.eq.s32.totalorder %s27, 0
    %p347 = por %p345, %p346
    %p348 = scmp.ne.s32.totalorder %s336, %s337
    %p349 = scmp.eq.s32.totalorder %s28, 1
    %p350 = por %p348, %p349
    %p352 = scmp.ne.s32.totalorder %s337, %s351
    %p353 = scmp.eq.s32.totalorder %s28, 0
    %p354 = por %p352, %p353
    %s356 = sadd.s32 %s355, 1
    %p359 = scmp.eq.s32.totalorder %s22, 1
    %p360 = scmp.ne.s32.totalorder %s355, %s357
    %p361 = scmp.eq.s32.totalorder %s22, 0
    %p362 = por %p360, %p361
    %p363 = scmp.ne.s32.totalorder %s355, %s357
    %p364 = scmp.eq.s32.totalorder %s27, 1
    %p365 = por %p363, %p364
    %p366 = scmp.ne.s32.totalorder %s357, %s358
    %p367 = scmp.eq.s32.totalorder %s27, 0
    %p368 = por %p366, %p367
    %p369 = scmp.ne.s32.totalorder %s357, %s358
    %p370 = scmp.eq.s32.totalorder %s28, 1
    %p371 = por %p369, %p370
    %p373 = scmp.ne.s32.totalorder %s358, %s372
    %p374 = scmp.eq.s32.totalorder %s28, 0
    %p375 = por %p373, %p374
    %s376 = ssub.s32 %s22, %s29
    %p377 = scmp.eq.s32.totalorder %s376, 0
    %s379 = sadd.s32 %s378, 1
    %s380 = scalar_select %p377, %s378, %s379
    %p383 = pneg %p377
    %p384 = scmp.eq.s32.totalorder %s22, 1
    %p385 = por %p383, %p384
    %p386 = scmp.ne.s32.totalorder %s378, %s381
    %p387 = scmp.eq.s32.totalorder %s22, 0
    %p388 = por %p386, %p387
    %p389 = scmp.ne.s32.totalorder %s378, %s381
    %p390 = scmp.eq.s32.totalorder %s27, 1
    %p391 = por %p389, %p390
    %p392 = scmp.ne.s32.totalorder %s381, %s382
    %p393 = scmp.eq.s32.totalorder %s27, 0
    %p394 = por %p392, %p393
    %p395 = scmp.ne.s32.totalorder %s381, %s382
    %p396 = scmp.eq.s32.totalorder %s28, 1
    %p397 = por %p395, %p396
    %p399 = scmp.ne.s32.totalorder %s382, %s398
    %p400 = scmp.eq.s32.totalorder %s28, 0
    %p401 = por %p399, %p400
    %p402 = scmp.le.s32.totalorder 1, %s22
    %p403 = scmp.lt.s32.totalorder %s22, 3
    %p404 = pnand %p402, %p403
    %p405 = pneg %p404
    // Predicated region
    $region9: #{fre_enc_forward.3} parent=5 // pred_check
      _
    $region10: #{fre_enc_forward.3} parent=5 // pred_check_branch
      %407 = sbr.rel (%p404) target = $region12
    $region11: #{fre_enc_forward.3} parent=5 // pred_region
      %s408 = ssub.s32 %s22, 1
      // Predicated region
      $region13: #{fre_enc_forward.3} parent=11 // pred_check
        %p409 = pneg %p95
      $region14: #{fre_enc_forward.3} parent=11 // pred_check_branch
        %411 = sbr.rel (%p409) target = $region16
      $region15: #{fre_enc_forward.3} parent=11 // pred_region
        _
      $region16: #{fre_enc_forward.3} parent=11 // pred_fallthru
        _
      // Predicated region
      $region17: #{fre_enc_forward.3} parent=11 // pred_check
        %p412 = pneg %p116
      $region18: #{fre_enc_forward.3} parent=11 // pred_check_branch
        %414 = sbr.rel (%p412) target = $region20
      $region19: #{fre_enc_forward.3} parent=11 // pred_region
        _
      $region20: #{fre_enc_forward.3} parent=11 // pred_fallthru
        _
      // Predicated region
      $region21: #{fre_enc_forward.3} parent=11 // pred_check
        %p415 = pneg %p137
      $region22: #{fre_enc_forward.3} parent=11 // pred_check_branch
        %417 = sbr.rel (%p415) target = $region24
      $region23: #{fre_enc_forward.3} parent=11 // pred_region
        _
      $region24: #{fre_enc_forward.3} parent=11 // pred_fallthru
        _
      // Predicated region
      $region25: #{fre_enc_forward.3} parent=11 // pred_check
        %p418 = pneg %p158
      $region26: #{fre_enc_forward.3} parent=11 // pred_check_branch
        %420 = sbr.rel (%p418) target = $region28
      $region27: #{fre_enc_forward.3} parent=11 // pred_region
        _
      $region28: #{fre_enc_forward.3} parent=11 // pred_fallthru
        _
      // Predicated region
      $region29: #{fre_enc_forward.3} parent=11 // pred_check
        %p421 = pneg %p179
      $region30: #{fre_enc_forward.3} parent=11 // pred_check_branch
        %423 = sbr.rel (%p421) target = $region32
      $region31: #{fre_enc_forward.3} parent=11 // pred_region
        _
      $region32: #{fre_enc_forward.3} parent=11 // pred_fallthru
        _
      // Predicated region
      $region33: #{fre_enc_forward.3} parent=11 // pred_check
        %p424 = pneg %p200
      $region34: #{fre_enc_forward.3} parent=11 // pred_check_branch
        %426 = sbr.rel (%p424) target = $region36
      $region35: #{fre_enc_forward.3} parent=11 // pred_region
        _
      $region36: #{fre_enc_forward.3} parent=11 // pred_fallthru
        _
      // Predicated region
      $region37: #{fre_enc_forward.3} parent=11 // pred_check
        %p427 = pneg %p221
      $region38: #{fre_enc_forward.3} parent=11 // pred_check_branch
        %429 = sbr.rel (%p427) target = $region40
      $region39: #{fre_enc_forward.3} parent=11 // pred_region
        _
      $region40: #{fre_enc_forward.3} parent=11 // pred_fallthru
        _
      // Predicated region
      $region41: #{fre_enc_forward.3} parent=11 // pred_check
        %p430 = pneg %p242
      $region42: #{fre_enc_forward.3} parent=11 // pred_check_branch
        %432 = sbr.rel (%p430) target = $region44
      $region43: #{fre_enc_forward.3} parent=11 // pred_region
        _
      $region44: #{fre_enc_forward.3} parent=11 // pred_fallthru
        _
      // Predicated region
      $region45: #{fre_enc_forward.3} parent=11 // pred_check
        %p433 = pneg %p263
      $region46: #{fre_enc_forward.3} parent=11 // pred_check_branch
        %435 = sbr.rel (%p433) target = $region48
      $region47: #{fre_enc_forward.3} parent=11 // pred_region
        _
      $region48: #{fre_enc_forward.3} parent=11 // pred_fallthru
        _
      // Predicated region
      $region49: #{fre_enc_forward.3} parent=11 // pred_check
        %p436 = pneg %p284
      $region50: #{fre_enc_forward.3} parent=11 // pred_check_branch
        %438 = sbr.rel (%p436) target = $region52
      $region51: #{fre_enc_forward.3} parent=11 // pred_region
        _
      $region52: #{fre_enc_forward.3} parent=11 // pred_fallthru
        _
      // Predicated region
      $region53: #{fre_enc_forward.3} parent=11 // pred_check
        %p439 = pneg %p305
      $region54: #{fre_enc_forward.3} parent=11 // pred_check_branch
        %441 = sbr.rel (%p439) target = $region56
      $region55: #{fre_enc_forward.3} parent=11 // pred_region
        _
      $region56: #{fre_enc_forward.3} parent=11 // pred_fallthru
        _
      // Predicated region
      $region57: #{fre_enc_forward.3} parent=11 // pred_check
        %p442 = pneg %p326
      $region58: #{fre_enc_forward.3} parent=11 // pred_check_branch
        %444 = sbr.rel (%p442) target = $region60
      $region59: #{fre_enc_forward.3} parent=11 // pred_region
        _
      $region60: #{fre_enc_forward.3} parent=11 // pred_fallthru
        _
      // Predicated region
      $region61: #{fre_enc_forward.3} parent=11 // pred_check
        %p445 = pneg %p347
      $region62: #{fre_enc_forward.3} parent=11 // pred_check_branch
        %447 = sbr.rel (%p445) target = $region64
      $region63: #{fre_enc_forward.3} parent=11 // pred_region
        _
      $region64: #{fre_enc_forward.3} parent=11 // pred_fallthru
        _
      // Predicated region
      $region65: #{fre_enc_forward.3} parent=11 // pred_check
        %p448 = pneg %p368
      $region66: #{fre_enc_forward.3} parent=11 // pred_check_branch
        %450 = sbr.rel (%p448) target = $region68
      $region67: #{fre_enc_forward.3} parent=11 // pred_region
        _
      $region68: #{fre_enc_forward.3} parent=11 // pred_fallthru
        _
    $region12: #{fre_enc_forward.3} parent=5 // pred_fallthru
      _
    %p451 = scmp.lt.s32.totalorder %s22, 2
    // Predicated region
    $region69: #{fre_enc_forward.3} parent=5 // pred_check
      %p452 = pneg %p451
    $region70: #{fre_enc_forward.3} parent=5 // pred_check_branch
      %454 = sbr.rel (%p452) target = $region72
    $region71: #{fre_enc_forward.3} parent=5 // pred_region
      // Predicated region
      $region73: #{fre_enc_forward.3} parent=71 // pred_check
        %p455 = pneg %p42
      $region74: #{fre_enc_forward.3} parent=71 // pred_check_branch
        %457 = sbr.rel (%p455) target = $region76
      $region75: #{fre_enc_forward.3} parent=71 // pred_region
        %p458 = scmp.lt.s32.totalorder %s22, 1
        %s459 = scalar_select %p458, %s22, 1
        %s460 = smul.addr %s459, 16
        %s461 = smul.addr %s460, 8
        %s462 = scalar_lea.vmem %s0, %s461
      $region76: #{fre_enc_forward.3} parent=71 // pred_fallthru
        _
      // Predicated region
      $region77: #{fre_enc_forward.3} parent=71 // pred_check
        %p463 = pneg %p68
      $region78: #{fre_enc_forward.3} parent=71 // pred_check_branch
        %465 = sbr.rel (%p463) target = $region80
      $region79: #{fre_enc_forward.3} parent=71 // pred_region
        %p466 = scmp.lt.s32.totalorder %s22, 1
        %s467 = scalar_select %p466, %s22, 1
        %s468 = smul.addr %s467, 16
        %s469 = smul.addr %s468, 8
        %s470 = scalar_lea.vmem %s1, %s469
      $region80: #{fre_enc_forward.3} parent=71 // pred_fallthru
        _
    $region72: #{fre_enc_forward.3} parent=5 // pred_fallthru
      _
    %p471 = scmp.le.s32.totalorder 1, %s22
    %p472 = scmp.lt.s32.totalorder %s22, 3
    %p473 = pnand %p471, %p472
    %p474 = pneg %p473
    // Predicated region
    $region81: #{fre_enc_forward.3} parent=5 // pred_check
      _
    $region82: #{fre_enc_forward.3} parent=5 // pred_check_branch
      %476 = sbr.rel (%p473) target = $region84
    $region83: #{fre_enc_forward.3} parent=5 // pred_region
      %s477 = ssub.s32 %s22, 1
      %p478 = scmp.lt.s32.totalorder %s27, 1
      %s479 = scalar_select %p478, %s27, 1
      %s480 = smul.addr %s479, 16
      %s481 = smul.addr %s480, 8
      %s482 = scalar_lea.vmem %s0, %s481
      %p483 = pneg %p48
      %p484 = pneg %p45
      %p485 = scmp.lt.s32.totalorder %s27, 1
      %s486 = scalar_select %p485, %s27, 1
      %s487 = smul.addr %s486, 16
      %s488 = smul.addr %s487, 8
      %s489 = scalar_lea.vmem %s1, %s488
      %p490 = pneg %p74
      %p491 = pneg %p71
      %p492 = pneg %p95
      %p493 = pneg %p92
      %p494 = pneg %p116
      %p495 = pneg %p113
      %p496 = pneg %p137
      %p497 = pneg %p134
      %p498 = pneg %p158
      %p499 = pneg %p155
      %p500 = pneg %p179
      %p501 = pneg %p176
      %p502 = pneg %p200
      %p503 = pneg %p197
      %p504 = pneg %p221
      %p505 = pneg %p218
      %p506 = pneg %p242
      %p507 = pneg %p239
      %p508 = pneg %p263
      %p509 = pneg %p260
      %p510 = pneg %p284
      %p511 = pneg %p281
      %p512 = pneg %p305
      %p513 = pneg %p302
      %p514 = pneg %p326
      %p515 = pneg %p323
      %p516 = pneg %p347
      %p517 = pneg %p344
      %p518 = pneg %p368
      %p519 = pneg %p365
      %p520 = pneg %p394
      %p521 = pneg %p391
      %p522 = scmp.lt.s32.totalorder %s27, 1
      %s523 = scalar_select %p522, %s27, 1
      %s524 = smul.addr %s523, 4
      %s525 = smul.addr %s524, 8
      %s526 = scalar_lea.vmem %s16, %s525
      %p527 = scmp.lt.s32.totalorder %s27, 1
      %s528 = scalar_select %p527, %s27, 1
      %s529 = smul.addr %s528, 16
      %s530 = smul.addr %s529, 8
      %s531 = scalar_lea.vmem %s0, %s530
      %p532 = scmp.lt.s32.totalorder %s27, 1
      %s533 = scalar_select %p532, %s27, 1
      %s534 = smul.addr %s533, 16
      %s535 = smul.addr %s534, 8
      %s536 = scalar_lea.vmem %s1, %s535
      %p537 = scmp.lt.s32.totalorder %s27, 1
      %s538 = scalar_select %p537, %s27, 1
      %s539 = smul.addr %s538, 4
      %s540 = smul.addr %s539, 8
      %s541 = scalar_lea.vmem %s16, %s540
      %v542 = vld [vmem:[%s2] sm:$0xff]
      %v543 = vld [vmem:[%s2 + $0x8] sm:$0xff]
      %v544 = vld [vmem:[%s2 + $0x10] sm:$0xff]
      %v545 = vld [vmem:[%s2 + $0x18] sm:$0xff]
      %v546 = vld [vmem:[%s531] sm:$0xff]
      %v547 = vld [vmem:[%s531 + $0x8] sm:$0xff]
      %v548 = vld [vmem:[%s531 + $0x10] sm:$0xff]
      %v549 = vld [vmem:[%s531 + $0x18] sm:$0xff]
      %v550 = vld [vmem:[%s531 + $0x20] sm:$0xff]
      %v551 = vld [vmem:[%s531 + $0x28] sm:$0xff]
      %v552 = vld [vmem:[%s531 + $0x30] sm:$0xff]
      %v553 = vld [vmem:[%s531 + $0x38] sm:$0xff]
      %v554 = vld [vmem:[%s531 + $0x40] sm:$0xff]
      %v555 = vld [vmem:[%s531 + $0x48] sm:$0xff]
      %v556 = vld [vmem:[%s531 + $0x50] sm:$0xff]
      %v557 = vld [vmem:[%s531 + $0x58] sm:$0xff]
      %v558 = vld [vmem:[%s531 + $0x60] sm:$0xff]
      %v559 = vld [vmem:[%s531 + $0x68] sm:$0xff]
      %v560 = vld [vmem:[%s531 + $0x70] sm:$0xff]
      %v561 = vld [vmem:[%s531 + $0x78] sm:$0xff]
      %v562 = vld [vmem:[%s3] sm:$0xff]
      %v563 = vld [vmem:[%s3 + $0x8] sm:$0xff]
      %v564 = vld [vmem:[%s3 + $0x10] sm:$0xff]
      %v565 = vld [vmem:[%s3 + $0x18] sm:$0xff]
      %567 = vset.pattern.permute.xlu0 0
      %568 = vperm.xlu0 %567, %v562
      %v569 = vpop.permute.xlu0 %568
      %572 = vset.pattern.permute.xlu0 0
      %573 = vperm.xlu0 %572, %v563
      %v574 = vpop.permute.xlu0 %573
      %577 = vset.pattern.permute.xlu0 0
      %578 = vperm.xlu0 %577, %v564
      %v579 = vpop.permute.xlu0 %578
      %582 = vset.pattern.permute.xlu0 0
      %583 = vperm.xlu0 %582, %v565
      %v584 = vpop.permute.xlu0 %583
      %586 = vmatprep.subr.mxu0 0.0
      %587 = vmatpush1.msra.mxu0 %v546
      %588 = vmatprep.subr.mxu0 0.0
      %589 = vmatpush1.msra.mxu0 %v547
      %590 = vmatprep.subr.mxu0 0.0
      %591 = vmatpush1.msra.mxu0 %v548
      %592 = vmatprep.subr.mxu0 0.0
      %593 = vmatpush1.msra.mxu0 %v549
      %594 = vmatprep.subr.mxu0 0.0
      %595 = vmatpush1.msra.mxu0 %v550
      %596 = vmatprep.subr.mxu0 0.0
      %597 = vmatpush1.msra.mxu0 %v551
      %598 = vmatprep.subr.mxu0 0.0
      %599 = vmatpush1.msra.mxu0 %v552
      %600 = vmatprep.subr.mxu0 0.0
      %601 = vmatpush1.msra.mxu0 %v553
      %602 = vmatprep.subr.mxu0 0.0
      %603 = vmatpush1.msra.mxu0 %v554
      %604 = vmatprep.subr.mxu0 0.0
      %605 = vmatpush1.msra.mxu0 %v555
      %606 = vmatprep.subr.mxu0 0.0
      %607 = vmatpush1.msra.mxu0 %v556
      %608 = vmatprep.subr.mxu0 0.0
      %609 = vmatpush1.msra.mxu0 %v557
      %610 = vmatprep.subr.mxu0 0.0
      %611 = vmatpush1.msra.mxu0 %v558
      %612 = vmatprep.subr.mxu0 0.0
      %613 = vmatpush1.msra.mxu0 %v559
      %614 = vmatprep.subr.mxu0 0.0
      %615 = vmatpush1.msra.mxu0 %v560
      %616 = vmatprep.subr.mxu0 0.0
      %617 = vmatpush1.msra.mxu0 %v561
      %618 = vmatprep.subr.mxu0 0.0
      %619 = vmatpush1.msra.mxu0 0.0
      %620 = vmatprep.subr.mxu0 0.0
      %621 = vmatpush1.msra.mxu0 0.0
      %622 = vmatprep.subr.mxu0 0.0
      %623 = vmatpush1.msra.mxu0 0.0
      %624 = vmatprep.subr.mxu0 0.0
      %625 = vmatpush1.msra.mxu0 0.0
      %626 = vmatprep.subr.mxu0 0.0
      %627 = vmatpush1.msra.mxu0 0.0
      %628 = vmatprep.subr.mxu0 0.0
      %629 = vmatpush1.msra.mxu0 0.0
      %630 = vmatprep.subr.mxu0 0.0
      %631 = vmatpush1.msra.mxu0 0.0
      %632 = vmatprep.subr.mxu0 0.0
      %633 = vmatpush1.msra.mxu0 0.0
      %634 = vmatprep.subr.mxu0 0.0
      %635 = vmatpush1.msra.mxu0 0.0
      %636 = vmatprep.subr.mxu0 0.0
      %637 = vmatpush1.msra.mxu0 0.0
      %638 = vmatprep.subr.mxu0 0.0
      %639 = vmatpush1.msra.mxu0 0.0
      %640 = vmatprep.subr.mxu0 0.0
      %641 = vmatpush1.msra.mxu0 0.0
      %642 = vmatprep.subr.mxu0 0.0
      %643 = vmatpush1.msra.mxu0 0.0
      %644 = vmatprep.subr.mxu0 0.0
      %645 = vmatpush1.msra.mxu0 0.0
      %646 = vmatprep.subr.mxu0 0.0
      %647 = vmatpush1.msra.mxu0 0.0
      %648 = vmatprep.subr.mxu0 0.0
      %649 = vmatpush1.msra.mxu0 0.0
      %650 = vmatprep.mubr.f32.mxu0 0.0
      %651 = vmatmul.mubr.f32.gmra.mrb[0].mxu0 %v542
      %v652 = vpop.f32.mrb[0].mxu0
      %v653 = vadd.f32 %v569, %v652
      %v654 = vpop.f32.mrb[0].mxu0
      %655 = vmatprep.mubr.f32.mxu0 0.0
      %656 = vmatmul.mubr.f32.gmra.mrb[0].mxu0 %v543
      %v657 = vpop.f32.mrb[0].mxu0
      %v658 = vadd.f32 %v574, %v657
      %v659 = vpop.f32.mrb[0].mxu0
      %660 = vmatprep.mubr.f32.mxu0 0.0
      %661 = vmatmul.mubr.f32.gmra.mrb[0].mxu0 %v544
      %v662 = vpop.f32.mrb[0].mxu0
      %v663 = vadd.f32 %v579, %v662
      %v664 = vpop.f32.mrb[0].mxu0
      %665 = vmatprep.mubr.f32.mxu0 0.0
      %666 = vmatmul.mubr.f32.gmra.mrb[0].mxu0 %v545
      %v667 = vpop.f32.mrb[0].mxu0
      %v668 = vadd.f32 %v584, %v667
      %v669 = vpop.f32.mrb[0].mxu0
      %670 = vdwg.mxu0
      %v671 = vmax.f32 %v653, 0.0
      %v672 = vmax.f32 %v658, 0.0
      %v673 = vmax.f32 %v663, 0.0
      %v674 = vmax.f32 %v668, 0.0
      %v675 = vld [vmem:[%s536] sm:$0xff]
      %v676 = vld [vmem:[%s536 + $0x8] sm:$0xff]
      %v677 = vld [vmem:[%s536 + $0x10] sm:$0xff]
      %v678 = vld [vmem:[%s536 + $0x18] sm:$0xff]
      %v679 = vld [vmem:[%s536 + $0x20] sm:$0xff]
      %v680 = vld [vmem:[%s536 + $0x28] sm:$0xff]
      %v681 = vld [vmem:[%s536 + $0x30] sm:$0xff]
      %v682 = vld [vmem:[%s536 + $0x38] sm:$0xff]
      %v683 = vld [vmem:[%s536 + $0x40] sm:$0xff]
      %v684 = vld [vmem:[%s536 + $0x48] sm:$0xff]
      %v685 = vld [vmem:[%s536 + $0x50] sm:$0xff]
      %v686 = vld [vmem:[%s536 + $0x58] sm:$0xff]
      %v687 = vld [vmem:[%s536 + $0x60] sm:$0xff]
      %v688 = vld [vmem:[%s536 + $0x68] sm:$0xff]
      %v689 = vld [vmem:[%s536 + $0x70] sm:$0xff]
      %v690 = vld [vmem:[%s536 + $0x78] sm:$0xff]
      %691 = vmatprep.subr.mxu0 0.0
      %692 = vmatpush1.msra.mxu0 %v675
      %693 = vmatprep.subr.mxu0 0.0
      %694 = vmatpush1.msra.mxu0 %v676
      %695 = vmatprep.subr.mxu0 0.0
      %696 = vmatpush1.msra.mxu0 %v677
      %697 = vmatprep.subr.mxu0 0.0
      %698 = vmatpush1.msra.mxu0 %v678
      %699 = vmatprep.subr.mxu0 0.0
      %700 = vmatpush1.msra.mxu0 %v679
      %701 = vmatprep.subr.mxu0 0.0
      %702 = vmatpush1.msra.mxu0 %v680
      %703 = vmatprep.subr.mxu0 0.0
      %704 = vmatpush1.msra.mxu0 %v681
      %705 = vmatprep.subr.mxu0 0.0
      %706 = vmatpush1.msra.mxu0 %v682
      %707 = vmatprep.subr.mxu0 0.0
      %708 = vmatpush1.msra.mxu0 %v683
      %709 = vmatprep.subr.mxu0 0.0
      %710 = vmatpush1.msra.mxu0 %v684
      %711 = vmatprep.subr.mxu0 0.0
      %712 = vmatpush1.msra.mxu0 %v685
      %713 = vmatprep.subr.mxu0 0.0
      %714 = vmatpush1.msra.mxu0 %v686
      %715 = vmatprep.subr.mxu0 0.0
      %716 = vmatpush1.msra.mxu0 %v687
      %717 = vmatprep.subr.mxu0 0.0
      %718 = vmatpush1.msra.mxu0 %v688
      %719 = vmatprep.subr.mxu0 0.0
      %720 = vmatpush1.msra.mxu0 %v689
      %721 = vmatprep.subr.mxu0 0.0
      %722 = vmatpush1.msra.mxu0 %v690
      %723 = vmatprep.subr.mxu0 0.0
      %724 = vmatpush1.msra.mxu0 0.0
      %725 = vmatprep.subr.mxu0 0.0
      %726 = vmatpush1.msra.mxu0 0.0
      %727 = vmatprep.subr.mxu0 0.0
      %728 = vmatpush1.msra.mxu0 0.0
      %729 = vmatprep.subr.mxu0 0.0
      %730 = vmatpush1.msra.mxu0 0.0
      %731 = vmatprep.subr.mxu0 0.0
      %732 = vmatpush1.msra.mxu0 0.0
      %733 = vmatprep.subr.mxu0 0.0
      %734 = vmatpush1.msra.mxu0 0.0
      %735 = vmatprep.subr.mxu0 0.0
      %736 = vmatpush1.msra.mxu0 0.0
      %737 = vmatprep.subr.mxu0 0.0
      %738 = vmatpush1.msra.mxu0 0.0
      %739 = vmatprep.subr.mxu0 0.0
      %740 = vmatpush1.msra.mxu0 0.0
      %741 = vmatprep.subr.mxu0 0.0
      %742 = vmatpush1.msra.mxu0 0.0
      %743 = vmatprep.subr.mxu0 0.0
      %744 = vmatpush1.msra.mxu0 0.0
      %745 = vmatprep.subr.mxu0 0.0
      %746 = vmatpush1.msra.mxu0 0.0
      %747 = vmatprep.subr.mxu0 0.0
      %748 = vmatpush1.msra.mxu0 0.0
      %749 = vmatprep.subr.mxu0 0.0
      %750 = vmatpush1.msra.mxu0 0.0
      %751 = vmatprep.subr.mxu0 0.0
      %752 = vmatpush1.msra.mxu0 0.0
      %753 = vmatprep.subr.mxu0 0.0
      %754 = vmatpush1.msra.mxu0 0.0
      %755 = vmatprep.mubr.f32.mxu0 0.0
      %756 = vmatmul.mubr.f32.gmra.mrb[0].mxu0 %v542
      %v757 = vpop.f32.mrb[0].mxu0
      %v758 = vadd.f32 %v569, %v757
      %v759 = vpop.f32.mrb[0].mxu0
      %760 = vmatprep.mubr.f32.mxu0 0.0
      %761 = vmatmul.mubr.f32.gmra.mrb[0].mxu0 %v543
      %v762 = vpop.f32.mrb[0].mxu0
      %v763 = vadd.f32 %v574, %v762
      %v764 = vpop.f32.mrb[0].mxu0
      %765 = vmatprep.mubr.f32.mxu0 0.0
      %766 = vmatmul.mubr.f32.gmra.mrb[0].mxu0 %v544
      %v767 = vpop.f32.mrb[0].mxu0
      %v768 = vadd.f32 %v579, %v767
      %v769 = vpop.f32.mrb[0].mxu0
      %770 = vmatprep.mubr.f32.mxu0 0.0
      %771 = vmatmul.mubr.f32.gmra.mrb[0].mxu0 %v545
      %v772 = vpop.f32.mrb[0].mxu0
      %v773 = vadd.f32 %v584, %v772
      %v774 = vpop.f32.mrb[0].mxu0
      %775 = vdwg.mxu0
      %v776 = vmax.f32 %v758, 0.0
      %v777 = vmax.f32 %v763, 0.0
      %v778 = vmax.f32 %v768, 0.0
      %v779 = vmax.f32 %v773, 0.0
      %v780 = vmax.f32 %v671, %v776
      %v781 = vmax.f32 %v672, %v777
      %v782 = vmax.f32 %v673, %v778
      %v783 = vmax.f32 %v674, %v779
      %v784 = vld [vmem:[%s4] sm:$0xff]
      %v785 = vld [vmem:[%s4 + $0x8] sm:$0xff]
      %v786 = vld [vmem:[%s4 + $0x10] sm:$0xff]
      %v787 = vld [vmem:[%s4 + $0x18] sm:$0xff]
      %v788 = vld [vmem:[%s4 + $0x20] sm:$0xff]
      %v789 = vld [vmem:[%s4 + $0x28] sm:$0xff]
      %v790 = vld [vmem:[%s4 + $0x30] sm:$0xff]
      %v791 = vld [vmem:[%s4 + $0x38] sm:$0xff]
      %v792 = vld [vmem:[%s4 + $0x40] sm:$0xff]
      %v793 = vld [vmem:[%s4 + $0x48] sm:$0xff]
      %v794 = vld [vmem:[%s4 + $0x50] sm:$0xff]
      %v795 = vld [vmem:[%s4 + $0x58] sm:$0xff]
      %v796 = vld [vmem:[%s4 + $0x60] sm:$0xff]
      %v797 = vld [vmem:[%s4 + $0x68] sm:$0xff]
      %v798 = vld [vmem:[%s4 + $0x70] sm:$0xff]
      %v799 = vld [vmem:[%s4 + $0x78] sm:$0xff]
      %v800 = vld [vmem:[%s4 + $0x80] sm:$0xff]
      %v801 = vld [vmem:[%s4 + $0x88] sm:$0xff]
      %v802 = vld [vmem:[%s4 + $0x90] sm:$0xff]
      %v803 = vld [vmem:[%s4 + $0x98] sm:$0xff]
      %vm804 = vcmask 261120
      %v806 = vsel %vm804, %v784, 0
      %v809 = vsel %vm804, %v785, 0
      %v812 = vsel %vm804, %v786, 0
      %v815 = vsel %vm804, %v787, 0
      %v818 = vsel %vm804, %v788, 0
      %v821 = vsel %vm804, %v789, 0
      %v824 = vsel %vm804, %v790, 0
      %v827 = vsel %vm804, %v791, 0
      %v830 = vsel %vm804, %v792, 0
      %v833 = vsel %vm804, %v793, 0
      %v836 = vsel %vm804, %v794, 0
      %v839 = vsel %vm804, %v795, 0
      %v842 = vsel %vm804, %v796, 0
      %v845 = vsel %vm804, %v797, 0
      %v848 = vsel %vm804, %v798, 0
      %v851 = vsel %vm804, %v799, 0
      %v854 = vsel %vm804, %v800, 0
      %v857 = vsel %vm804, %v801, 0
      %v860 = vsel %vm804, %v802, 0
      %v863 = vsel %vm804, %v803, 0
      %865 = vmatprep.subr.mxu0 0.0
      %866 = vmatpush1.msra.mxu0 %v780
      %867 = vmatprep.subr.mxu0 0.0
      %868 = vmatpush1.msra.mxu0 %v781
      %869 = vmatprep.subr.mxu0 0.0
      %870 = vmatpush1.msra.mxu0 %v782
      %871 = vmatprep.subr.mxu0 0.0
      %872 = vmatpush1.msra.mxu0 %v783
      %873 = vmatprep.subr.mxu0 0.0
      %874 = vmatpush1.msra.mxu0 0.0
      %875 = vmatprep.subr.mxu0 0.0
      %876 = vmatpush1.msra.mxu0 0.0
      %877 = vmatprep.subr.mxu0 0.0
      %878 = vmatpush1.msra.mxu0 0.0
      %879 = vmatprep.subr.mxu0 0.0
      %880 = vmatpush1.msra.mxu0 0.0
      %881 = vmatprep.subr.mxu0 0.0
      %882 = vmatpush1.msra.mxu0 0.0
      %883 = vmatprep.subr.mxu0 0.0
      %884 = vmatpush1.msra.mxu0 0.0
      %885 = vmatprep.subr.mxu0 0.0
      %886 = vmatpush1.msra.mxu0 0.0
      %887 = vmatprep.subr.mxu0 0.0
      %888 = vmatpush1.msra.mxu0 0.0
      %889 = vmatprep.subr.mxu0 0.0
      %890 = vmatpush1.msra.mxu0 0.0
      %891 = vmatprep.subr.mxu0 0.0
      %892 = vmatpush1.msra.mxu0 0.0
      %893 = vmatprep.subr.mxu0 0.0
      %894 = vmatpush1.msra.mxu0 0.0
      %895 = vmatprep.subr.mxu0 0.0
      %896 = vmatpush1.msra.mxu0 0.0
      %897 = vmatprep.subr.mxu0 0.0
      %898 = vmatpush1.msra.mxu0 0.0
      %899 = vmatprep.subr.mxu0 0.0
      %900 = vmatpush1.msra.mxu0 0.0
      %901 = vmatprep.subr.mxu0 0.0
      %902 = vmatpush1.msra.mxu0 0.0
      %903 = vmatprep.subr.mxu0 0.0
      %904 = vmatpush1.msra.mxu0 0.0
      %905 = vmatprep.subr.mxu0 0.0
      %906 = vmatpush1.msra.mxu0 0.0
      %907 = vmatprep.subr.mxu0 0.0
      %908 = vmatpush1.msra.mxu0 0.0
      %909 = vmatprep.subr.mxu0 0.0
      %910 = vmatpush1.msra.mxu0 0.0
      %911 = vmatprep.subr.mxu0 0.0
      %912 = vmatpush1.msra.mxu0 0.0
      %913 = vmatprep.subr.mxu0 0.0
      %914 = vmatpush1.msra.mxu0 0.0
      %915 = vmatprep.subr.mxu0 0.0
      %916 = vmatpush1.msra.mxu0 0.0
      %917 = vmatprep.subr.mxu0 0.0
      %918 = vmatpush1.msra.mxu0 0.0
      %919 = vmatprep.subr.mxu0 0.0
      %920 = vmatpush1.msra.mxu0 0.0
      %921 = vmatprep.subr.mxu0 0.0
      %922 = vmatpush1.msra.mxu0 0.0
      %923 = vmatprep.subr.mxu0 0.0
      %924 = vmatpush1.msra.mxu0 0.0
      %925 = vmatprep.subr.mxu0 0.0
      %926 = vmatpush1.msra.mxu0 0.0
      %927 = vmatprep.subr.mxu0 0.0
      %928 = vmatpush1.msra.mxu0 0.0
      %929 = vmatprep.mubr.f32.mxu0 0.0
      %930 = vmatmul.mubr.f32.gmra.mrb[0].mxu0 %v806
      %v931 = vpop.f32.mrb[0].mxu0
      %v932 = vadd.f32 0.0, %v931
      %v933 = vpop.f32.mrb[0].mxu0
      %934 = vmatprep.mubr.f32.mxu0 0.0
      %935 = vmatmul.mubr.f32.gmra.mrb[0].mxu0 %v809
      %v936 = vpop.f32.mrb[0].mxu0
      %v937 = vadd.f32 0.0, %v936
      %v938 = vpop.f32.mrb[0].mxu0
      %939 = vmatprep.mubr.f32.mxu0 0.0
      %940 = vmatmul.mubr.f32.gmra.mrb[0].mxu0 %v812
      %v941 = vpop.f32.mrb[0].mxu0
      %v942 = vadd.f32 0.0, %v941
      %v943 = vpop.f32.mrb[0].mxu0
      %944 = vmatprep.mubr.f32.mxu0 0.0
      %945 = vmatmul.mubr.f32.gmra.mrb[0].mxu0 %v815
      %v946 = vpop.f32.mrb[0].mxu0
      %v947 = vadd.f32 0.0, %v946
      %v948 = vpop.f32.mrb[0].mxu0
      %949 = vmatprep.mubr.f32.mxu0 0.0
      %950 = vmatmul.mubr.f32.gmra.mrb[0].mxu0 %v818
      %v951 = vpop.f32.mrb[0].mxu0
      %v952 = vadd.f32 0.0, %v951
      %v953 = vpop.f32.mrb[0].mxu0
      %954 = vmatprep.mubr.f32.mxu0 0.0
      %955 = vmatmul.mubr.f32.gmra.mrb[0].mxu0 %v821
      %v956 = vpop.f32.mrb[0].mxu0
      %v957 = vadd.f32 0.0, %v956
      %v958 = vpop.f32.mrb[0].mxu0
      %959 = vmatprep.mubr.f32.mxu0 0.0
      %960 = vmatmul.mubr.f32.gmra.mrb[0].mxu0 %v824
      %v961 = vpop.f32.mrb[0].mxu0
      %v962 = vadd.f32 0.0, %v961
      %v963 = vpop.f32.mrb[0].mxu0
      %964 = vmatprep.mubr.f32.mxu0 0.0
      %965 = vmatmul.mubr.f32.gmra.mrb[0].mxu0 %v827
      %v966 = vpop.f32.mrb[0].mxu0
      %v967 = vadd.f32 0.0, %v966
      %v968 = vpop.f32.mrb[0].mxu0
      %969 = vmatprep.mubr.f32.mxu0 0.0
      %970 = vmatmul.mubr.f32.gmra.mrb[0].mxu0 %v830
      %v971 = vpop.f32.mrb[0].mxu0
      %v972 = vadd.f32 0.0, %v971
      %v973 = vpop.f32.mrb[0].mxu0
      %974 = vmatprep.mubr.f32.mxu0 0.0
      %975 = vmatmul.mubr.f32.gmra.mrb[0].mxu0 %v833
      %v976 = vpop.f32.mrb[0].mxu0
      %v977 = vadd.f32 0.0, %v976
      %v978 = vpop.f32.mrb[0].mxu0
      %979 = vmatprep.mubr.f32.mxu0 0.0
      %980 = vmatmul.mubr.f32.gmra.mrb[0].mxu0 %v836
      %v981 = vpop.f32.mrb[0].mxu0
      %v982 = vadd.f32 0.0, %v981
      %v983 = vpop.f32.mrb[0].mxu0
      %984 = vmatprep.mubr.f32.mxu0 0.0
      %985 = vmatmul.mubr.f32.gmra.mrb[0].mxu0 %v839
      %v986 = vpop.f32.mrb[0].mxu0
      %v987 = vadd.f32 0.0, %v986
      %v988 = vpop.f32.mrb[0].mxu0
      %989 = vmatprep.mubr.f32.mxu0 0.0
      %990 = vmatmul.mubr.f32.gmra.mrb[0].mxu0 %v842
      %v991 = vpop.f32.mrb[0].mxu0
      %v992 = vadd.f32 0.0, %v991
      %v993 = vpop.f32.mrb[0].mxu0
      %994 = vmatprep.mubr.f32.mxu0 0.0
      %995 = vmatmul.mubr.f32.gmra.mrb[0].mxu0 %v845
      %v996 = vpop.f32.mrb[0].mxu0
      %v997 = vadd.f32 0.0, %v996
      %v998 = vpop.f32.mrb[0].mxu0
      %999 = vmatprep.mubr.f32.mxu0 0.0
      %1000 = vmatmul.mubr.f32.gmra.mrb[0].mxu0 %v848
      %v1001 = vpop.f32.mrb[0].mxu0
      %v1002 = vadd.f32 0.0, %v1001
      %v1003 = vpop.f32.mrb[0].mxu0
      %1004 = vmatprep.mubr.f32.mxu0 0.0
      %1005 = vmatmul.mubr.f32.gmra.mrb[0].mxu0 %v851
      %v1006 = vpop.f32.mrb[0].mxu0
      %v1007 = vadd.f32 0.0, %v1006
      %v1008 = vpop.f32.mrb[0].mxu0
      %1009 = vmatprep.mubr.f32.mxu0 0.0
      %1010 = vmatmul.mubr.f32.gmra.mrb[0].mxu0 %v854
      %v1011 = vpop.f32.mrb[0].mxu0
      %v1012 = vadd.f32 0.0, %v1011
      %v1013 = vpop.f32.mrb[0].mxu0
      %1014 = vmatprep.mubr.f32.mxu0 0.0
      %1015 = vmatmul.mubr.f32.gmra.mrb[0].mxu0 %v857
      %v1016 = vpop.f32.mrb[0].mxu0
      %v1017 = vadd.f32 0.0, %v1016
      %v1018 = vpop.f32.mrb[0].mxu0
      %1019 = vmatprep.mubr.f32.mxu0 0.0
      %1020 = vmatmul.mubr.f32.gmra.mrb[0].mxu0 %v860
      %v1021 = vpop.f32.mrb[0].mxu0
      %v1022 = vadd.f32 0.0, %v1021
      %v1023 = vpop.f32.mrb[0].mxu0
      %1024 = vmatprep.mubr.f32.mxu0 0.0
      %1025 = vmatmul.mubr.f32.gmra.mrb[0].mxu0 %v863
      %v1026 = vpop.f32.mrb[0].mxu0
      %v1027 = vadd.f32 0.0, %v1026
      %v1028 = vpop.f32.mrb[0].mxu0
      %1029 = vdwg.mxu0
      %1035 = vrot.lane.b32.xlu0 %v957, 127
      %v1036 = vpop.permute.xlu0 %1035
      %1037 = vrot.lane.b32.xlu0 %v962, 127
      %v1038 = vpop.permute.xlu0 %1037
      %1039 = vrot.lane.b32.xlu0 %v967, 127
      %v1040 = vpop.permute.xlu0 %1039
      %1041 = vrot.lane.b32.xlu0 %v972, 127
      %v1042 = vpop.permute.xlu0 %1041
      %1043 = vrot.lane.b32.xlu0 %v977, 127
      %v1044 = vpop.permute.xlu0 %1043
      %v1050 = vadd.f32 %v932, %v1036
      %v1051 = vadd.f32 %v937, %v1038
      %v1052 = vadd.f32 %v942, %v1040
      %v1053 = vadd.f32 %v947, %v1042
      %v1054 = vadd.f32 %v952, %v1044
      %1060 = vrot.lane.b32.xlu0 %v982, 126
      %v1061 = vpop.permute.xlu0 %1060
      %1062 = vrot.lane.b32.xlu0 %v987, 126
      %v1063 = vpop.permute.xlu0 %1062
      %1064 = vrot.lane.b32.xlu0 %v992, 126
      %v1065 = vpop.permute.xlu0 %1064
      %1066 = vrot.lane.b32.xlu0 %v997, 126
      %v1067 = vpop.permute.xlu0 %1066
      %1068 = vrot.lane.b32.xlu0 %v1002, 126
      %v1069 = vpop.permute.xlu0 %1068
      %v1075 = vadd.f32 %v1050, %v1061
      %v1076 = vadd.f32 %v1051, %v1063
      %v1077 = vadd.f32 %v1052, %v1065
      %v1078 = vadd.f32 %v1053, %v1067
      %v1079 = vadd.f32 %v1054, %v1069
      %1085 = vrot.lane.b32.xlu0 %v1007, 125
      %v1086 = vpop.permute.xlu0 %1085
      %1087 = vrot.lane.b32.xlu0 %v1012, 125
      %v1088 = vpop.permute.xlu0 %1087
      %1089 = vrot.lane.b32.xlu0 %v1017, 125
      %v1090 = vpop.permute.xlu0 %1089
      %1091 = vrot.lane.b32.xlu0 %v1022, 125
      %v1092 = vpop.permute.xlu0 %1091
      %1093 = vrot.lane.b32.xlu0 %v1027, 125
      %v1094 = vpop.permute.xlu0 %1093
      %v1100 = vadd.f32 %v1075, %v1086
      %v1101 = vadd.f32 %v1076, %v1088
      %v1102 = vadd.f32 %v1077, %v1090
      %v1103 = vadd.f32 %v1078, %v1092
      %v1104 = vadd.f32 %v1079, %v1094
      %v1105 = vld [vmem:[%s5] sm:$0xff]
      %v1106 = vld [vmem:[%s5 + $0x8] sm:$0xff]
      %v1107 = vld [vmem:[%s5 + $0x10] sm:$0xff]
      %v1108 = vld [vmem:[%s5 + $0x18] sm:$0xff]
      %v1109 = vld [vmem:[%s5 + $0x20] sm:$0xff]
      %1111 = vset.pattern.permute.xlu0 0
      %1112 = vperm.xlu0 %1111, %v1105
      %v1113 = vpop.permute.xlu0 %1112
      %1116 = vset.pattern.permute.xlu0 0
      %1117 = vperm.xlu0 %1116, %v1106
      %v1118 = vpop.permute.xlu0 %1117
      %1121 = vset.pattern.permute.xlu0 0
      %1122 = vperm.xlu0 %1121, %v1107
      %v1123 = vpop.permute.xlu0 %1122
      %1126 = vset.pattern.permute.xlu0 0
      %1127 = vperm.xlu0 %1126, %v1108
      %v1128 = vpop.permute.xlu0 %1127
      %1131 = vset.pattern.permute.xlu0 0
      %1132 = vperm.xlu0 %1131, %v1109
      %v1133 = vpop.permute.xlu0 %1132
      %v1135 = vadd.f32 %v1100, %v1113
      %v1136 = vadd.f32 %v1101, %v1118
      %v1137 = vadd.f32 %v1102, %v1123
      %v1138 = vadd.f32 %v1103, %v1128
      %v1139 = vadd.f32 %v1104, %v1133
      %v1140 = vmax.f32 %v1135, 0.0
      %v1141 = vmax.f32 %v1136, 0.0
      %v1142 = vmax.f32 %v1137, 0.0
      %v1143 = vmax.f32 %v1138, 0.0
      %v1144 = vmax.f32 %v1139, 0.0
      %1150 = vrot.lane.b32.xlu0 %v1140, 127
      %v1151 = vpop.permute.xlu0 %1150
      %1152 = vrot.lane.b32.xlu0 %v1141, 127
      %v1153 = vpop.permute.xlu0 %1152
      %1154 = vrot.lane.b32.xlu0 %v1142, 127
      %v1155 = vpop.permute.xlu0 %1154
      %1156 = vrot.lane.b32.xlu0 %v1143, 127
      %v1157 = vpop.permute.xlu0 %1156
      %1158 = vrot.lane.b32.xlu0 %v1144, 127
      %v1159 = vpop.permute.xlu0 %1158
      %v1165 = vmax.f32 %v1140, %v1151
      %v1166 = vmax.f32 %v1141, %v1153
      %v1167 = vmax.f32 %v1142, %v1155
      %v1168 = vmax.f32 %v1143, %v1157
      %v1169 = vmax.f32 %v1144, %v1159
      %v1170 = vld [vmem:[%s6] sm:$0xff]
      %v1171 = vld [vmem:[%s6 + $0x8] sm:$0xff]
      %v1172 = vld [vmem:[%s6 + $0x10] sm:$0xff]
      %v1173 = vld [vmem:[%s6 + $0x18] sm:$0xff]
      %v1174 = vld [vmem:[%s6 + $0x20] sm:$0xff]
      %v1175 = vld [vmem:[%s6 + $0x28] sm:$0xff]
      %v1176 = vld [vmem:[%s6 + $0x30] sm:$0xff]
      %v1177 = vld [vmem:[%s6 + $0x38] sm:$0xff]
      %v1178 = vld [vmem:[%s6 + $0x40] sm:$0xff]
      %v1179 = vld [vmem:[%s6 + $0x48] sm:$0xff]
      %v1180 = vld [vmem:[%s6 + $0x50] sm:$0xff]
      %v1181 = vld [vmem:[%s6 + $0x58] sm:$0xff]
      %v1182 = vld [vmem:[%s6 + $0x60] sm:$0xff]
      %v1183 = vld [vmem:[%s6 + $0x68] sm:$0xff]
      %v1184 = vld [vmem:[%s6 + $0x70] sm:$0xff]
      %v1185 = vld [vmem:[%s6 + $0x78] sm:$0xf]
      %vm1186 = vcmask 1014784
      %v1188 = vsel %vm1186, %v1165, 0
      %v1191 = vsel %vm1186, %v1166, 0
      %v1194 = vsel %vm1186, %v1167, 0
      %v1197 = vsel %vm1186, %v1168, 0
      %v1200 = vsel %vm1186, %v1169, 0
      %vm1202 = vcmask 1043456
      %v1204 = vsel %vm1202, %v1185, 0
      %1206 = vmatprep.subr.mxu0 0.0
      %1207 = vmatpush1.msra.mxu0 %v1170
      %1208 = vmatprep.subr.mxu0 0.0
      %1209 = vmatpush1.msra.mxu0 %v1171
      %1210 = vmatprep.subr.mxu0 0.0
      %1211 = vmatpush1.msra.mxu0 %v1172
      %1212 = vmatprep.subr.mxu0 0.0
      %1213 = vmatpush1.msra.mxu0 %v1173
      %1214 = vmatprep.subr.mxu0 0.0
      %1215 = vmatpush1.msra.mxu0 %v1174
      %1216 = vmatprep.subr.mxu0 0.0
      %1217 = vmatpush1.msra.mxu0 %v1175
      %1218 = vmatprep.subr.mxu0 0.0
      %1219 = vmatpush1.msra.mxu0 %v1176
      %1220 = vmatprep.subr.mxu0 0.0
      %1221 = vmatpush1.msra.mxu0 %v1177
      %1222 = vmatprep.subr.mxu0 0.0
      %1223 = vmatpush1.msra.mxu0 %v1178
      %1224 = vmatprep.subr.mxu0 0.0
      %1225 = vmatpush1.msra.mxu0 %v1179
      %1226 = vmatprep.subr.mxu0 0.0
      %1227 = vmatpush1.msra.mxu0 %v1180
      %1228 = vmatprep.subr.mxu0 0.0
      %1229 = vmatpush1.msra.mxu0 %v1181
      %1230 = vmatprep.subr.mxu0 0.0
      %1231 = vmatpush1.msra.mxu0 %v1182
      %1232 = vmatprep.subr.mxu0 0.0
      %1233 = vmatpush1.msra.mxu0 %v1183
      %1234 = vmatprep.subr.mxu0 0.0
      %1235 = vmatpush1.msra.mxu0 %v1184
      %1236 = vmatprep.subr.mxu0 0.0
      %1237 = vmatpush1.msra.mxu0 %v1204
      %1238 = vmatprep.subr.mxu0 0.0
      %1239 = vmatpush1.msra.mxu0 0.0
      %1240 = vmatprep.subr.mxu0 0.0
      %1241 = vmatpush1.msra.mxu0 0.0
      %1242 = vmatprep.subr.mxu0 0.0
      %1243 = vmatpush1.msra.mxu0 0.0
      %1244 = vmatprep.subr.mxu0 0.0
      %1245 = vmatpush1.msra.mxu0 0.0
      %1246 = vmatprep.subr.mxu0 0.0
      %1247 = vmatpush1.msra.mxu0 0.0
      %1248 = vmatprep.subr.mxu0 0.0
      %1249 = vmatpush1.msra.mxu0 0.0
      %1250 = vmatprep.subr.mxu0 0.0
      %1251 = vmatpush1.msra.mxu0 0.0
      %1252 = vmatprep.subr.mxu0 0.0
      %1253 = vmatpush1.msra.mxu0 0.0
      %1254 = vmatprep.subr.mxu0 0.0
      %1255 = vmatpush1.msra.mxu0 0.0
      %1256 = vmatprep.subr.mxu0 0.0
      %1257 = vmatpush1.msra.mxu0 0.0
      %1258 = vmatprep.subr.mxu0 0.0
      %1259 = vmatpush1.msra.mxu0 0.0
      %1260 = vmatprep.subr.mxu0 0.0
      %1261 = vmatpush1.msra.mxu0 0.0
      %1262 = vmatprep.subr.mxu0 0.0
      %1263 = vmatpush1.msra.mxu0 0.0
      %1264 = vmatprep.subr.mxu0 0.0
      %1265 = vmatpush1.msra.mxu0 0.0
      %1266 = vmatprep.subr.mxu0 0.0
      %1267 = vmatpush1.msra.mxu0 0.0
      %1268 = vmatprep.subr.mxu0 0.0
      %1269 = vmatpush1.msra.mxu0 0.0
      %1270 = vmatprep.mubr.f32.mxu0 0.0
      %1271 = vmatmul.mubr.f32.gmra.mrb[0].mxu0 %v1188
      %v1272 = vpop.f32.mrb[0].mxu0
      %v1273 = vadd.f32 0.0, %v1272
      %v1274 = vpop.f32.mrb[0].mxu0
      %1275 = vmatprep.mubr.f32.mxu0 0.0
      %1276 = vmatmul.mubr.f32.gmra.mrb[0].mxu0 %v1191
      %v1277 = vpop.f32.mrb[0].mxu0
      %v1278 = vadd.f32 0.0, %v1277
      %v1279 = vpop.f32.mrb[0].mxu0
      %1280 = vmatprep.mubr.f32.mxu0 0.0
      %1281 = vmatmul.mubr.f32.gmra.mrb[0].mxu0 %v1194
      %v1282 = vpop.f32.mrb[0].mxu0
      %v1283 = vadd.f32 0.0, %v1282
      %v1284 = vpop.f32.mrb[0].mxu0
      %1285 = vmatprep.mubr.f32.mxu0 0.0
      %1286 = vmatmul.mubr.f32.gmra.mrb[0].mxu0 %v1197
      %v1287 = vpop.f32.mrb[0].mxu0
      %v1288 = vadd.f32 0.0, %v1287
      %v1289 = vpop.f32.mrb[0].mxu0
      %1290 = vmatprep.mubr.f32.mxu0 0.0
      %1291 = vmatmul.mubr.f32.gmra.mrb[0].mxu0 %v1200
      %v1292 = vpop.f32.mrb[0].mxu0
      %v1293 = vadd.f32 0.0, %v1292
      %v1294 = vpop.f32.mrb[0].mxu0
      %1295 = vdwg.mxu0
      %v1296 = vld [vmem:[%s7] sm:$0xff]
      %v1297 = vld [vmem:[%s7 + $0x8] sm:$0xff]
      %v1298 = vld [vmem:[%s7 + $0x10] sm:$0xff]
      %v1299 = vld [vmem:[%s7 + $0x18] sm:$0xff]
      %v1300 = vld [vmem:[%s7 + $0x20] sm:$0xff]
      %v1301 = vld [vmem:[%s8] sm:$0xff]
      %v1302 = vld [vmem:[%s8 + $0x8] sm:$0xff]
      %v1303 = vld [vmem:[%s8 + $0x10] sm:$0xff]
      %v1304 = vld [vmem:[%s8 + $0x18] sm:$0xff]
      %v1305 = vld [vmem:[%s8 + $0x20] sm:$0xff]
      %1307 = vset.pattern.permute.xlu0 0
      %1308 = vperm.xlu0 %1307, %v1301
      %v1309 = vpop.permute.xlu0 %1308
      %1312 = vset.pattern.permute.xlu0 0
      %1313 = vperm.xlu0 %1312, %v1302
      %v1314 = vpop.permute.xlu0 %1313
      %1317 = vset.pattern.permute.xlu0 0
      %1318 = vperm.xlu0 %1317, %v1303
      %v1319 = vpop.permute.xlu0 %1318
      %1322 = vset.pattern.permute.xlu0 0
      %1323 = vperm.xlu0 %1322, %v1304
      %v1324 = vpop.permute.xlu0 %1323
      %1327 = vset.pattern.permute.xlu0 0
      %1328 = vperm.xlu0 %1327, %v1305
      %v1329 = vpop.permute.xlu0 %1328
      %vm1331 = vcmask 326656
      %v1333 = vsel %vm1331, %v1296, 0
      %v1336 = vsel %vm1331, %v1297, 0
      %v1339 = vsel %vm1331, %v1298, 0
      %v1342 = vsel %vm1331, %v1299, 0
      %v1345 = vsel %vm1331, %v1300, 0
      %1347 = vmatprep.subr.mxu0 0.0
      %1348 = vmatpush1.msra.mxu0 %v1273
      %1349 = vmatprep.subr.mxu0 0.0
      %1350 = vmatpush1.msra.mxu0 %v1278
      %1351 = vmatprep.subr.mxu0 0.0
      %1352 = vmatpush1.msra.mxu0 %v1283
      %1353 = vmatprep.subr.mxu0 0.0
      %1354 = vmatpush1.msra.mxu0 %v1288
      %1355 = vmatprep.subr.mxu0 0.0
      %1356 = vmatpush1.msra.mxu0 %v1293
      %1357 = vmatprep.subr.mxu0 0.0
      %1358 = vmatpush1.msra.mxu0 0.0
      %1359 = vmatprep.subr.mxu0 0.0
      %1360 = vmatpush1.msra.mxu0 0.0
      %1361 = vmatprep.subr.mxu0 0.0
      %1362 = vmatpush1.msra.mxu0 0.0
      %1363 = vmatprep.subr.mxu0 0.0
      %1364 = vmatpush1.msra.mxu0 0.0
      %1365 = vmatprep.subr.mxu0 0.0
      %1366 = vmatpush1.msra.mxu0 0.0
      %1367 = vmatprep.subr.mxu0 0.0
      %1368 = vmatpush1.msra.mxu0 0.0
      %1369 = vmatprep.subr.mxu0 0.0
      %1370 = vmatpush1.msra.mxu0 0.0
      %1371 = vmatprep.subr.mxu0 0.0
      %1372 = vmatpush1.msra.mxu0 0.0
      %1373 = vmatprep.subr.mxu0 0.0
      %1374 = vmatpush1.msra.mxu0 0.0
      %1375 = vmatprep.subr.mxu0 0.0
      %1376 = vmatpush1.msra.mxu0 0.0
      %1377 = vmatprep.subr.mxu0 0.0
      %1378 = vmatpush1.msra.mxu0 0.0
      %1379 = vmatprep.subr.mxu0 0.0
      %1380 = vmatpush1.msra.mxu0 0.0
      %1381 = vmatprep.subr.mxu0 0.0
      %1382 = vmatpush1.msra.mxu0 0.0
      %1383 = vmatprep.subr.mxu0 0.0
      %1384 = vmatpush1.msra.mxu0 0.0
      %1385 = vmatprep.subr.mxu0 0.0
      %1386 = vmatpush1.msra.mxu0 0.0
      %1387 = vmatprep.subr.mxu0 0.0
      %1388 = vmatpush1.msra.mxu0 0.0
      %1389 = vmatprep.subr.mxu0 0.0
      %1390 = vmatpush1.msra.mxu0 0.0
      %1391 = vmatprep.subr.mxu0 0.0
      %1392 = vmatpush1.msra.mxu0 0.0
      %1393 = vmatprep.subr.mxu0 0.0
      %1394 = vmatpush1.msra.mxu0 0.0
      %1395 = vmatprep.subr.mxu0 0.0
      %1396 = vmatpush1.msra.mxu0 0.0
      %1397 = vmatprep.subr.mxu0 0.0
      %1398 = vmatpush1.msra.mxu0 0.0
      %1399 = vmatprep.subr.mxu0 0.0
      %1400 = vmatpush1.msra.mxu0 0.0
      %1401 = vmatprep.subr.mxu0 0.0
      %1402 = vmatpush1.msra.mxu0 0.0
      %1403 = vmatprep.subr.mxu0 0.0
      %1404 = vmatpush1.msra.mxu0 0.0
      %1405 = vmatprep.subr.mxu0 0.0
      %1406 = vmatpush1.msra.mxu0 0.0
      %1407 = vmatprep.subr.mxu0 0.0
      %1408 = vmatpush1.msra.mxu0 0.0
      %1409 = vmatprep.subr.mxu0 0.0
      %1410 = vmatpush1.msra.mxu0 0.0
      %1411 = vmatprep.mubr.f32.mxu0 0.0
      %1412 = vmatmul.mubr.f32.gmra.mrb[0].mxu0 %v1333
      %v1413 = vpop.f32.mrb[0].mxu0
      %v1414 = vadd.f32 %v1309, %v1413
      %v1415 = vpop.f32.mrb[0].mxu0
      %1416 = vmatprep.mubr.f32.mxu0 0.0
      %1417 = vmatmul.mubr.f32.gmra.mrb[0].mxu0 %v1336
      %v1418 = vpop.f32.mrb[0].mxu0
      %v1419 = vadd.f32 %v1314, %v1418
      %v1420 = vpop.f32.mrb[0].mxu0
      %1421 = vmatprep.mubr.f32.mxu0 0.0
      %1422 = vmatmul.mubr.f32.gmra.mrb[0].mxu0 %v1339
      %v1423 = vpop.f32.mrb[0].mxu0
      %v1424 = vadd.f32 %v1319, %v1423
      %v1425 = vpop.f32.mrb[0].mxu0
      %1426 = vmatprep.mubr.f32.mxu0 0.0
      %1427 = vmatmul.mubr.f32.gmra.mrb[0].mxu0 %v1342
      %v1428 = vpop.f32.mrb[0].mxu0
      %v1429 = vadd.f32 %v1324, %v1428
      %v1430 = vpop.f32.mrb[0].mxu0
      %1431 = vmatprep.mubr.f32.mxu0 0.0
      %1432 = vmatmul.mubr.f32.gmra.mrb[0].mxu0 %v1345
      %v1433 = vpop.f32.mrb[0].mxu0
      %v1434 = vadd.f32 %v1329, %v1433
      %v1435 = vpop.f32.mrb[0].mxu0
      %1436 = vdwg.mxu0
      %v1437 = vmax.f32 %v1414, 0.0
      %v1438 = vmax.f32 %v1419, 0.0
      %v1439 = vmax.f32 %v1424, 0.0
      %v1440 = vmax.f32 %v1429, 0.0
      %v1441 = vmax.f32 %v1434, 0.0
      %v1442 = vld [vmem:[%s9] sm:$0xff]
      %v1443 = vld [vmem:[%s9 + $0x8] sm:$0xff]
      %v1444 = vld [vmem:[%s9 + $0x10] sm:$0xff]
      %v1445 = vld [vmem:[%s9 + $0x18] sm:$0xff]
      %v1446 = vld [vmem:[%s10] sm:$0xff]
      %v1447 = vld [vmem:[%s10 + $0x8] sm:$0xff]
      %v1448 = vld [vmem:[%s10 + $0x10] sm:$0xff]
      %v1449 = vld [vmem:[%s10 + $0x18] sm:$0xff]
      %1451 = vset.pattern.permute.xlu0 0
      %1452 = vperm.xlu0 %1451, %v1446
      %v1453 = vpop.permute.xlu0 %1452
      %1456 = vset.pattern.permute.xlu0 0
      %1457 = vperm.xlu0 %1456, %v1447
      %v1458 = vpop.permute.xlu0 %1457
      %1461 = vset.pattern.permute.xlu0 0
      %1462 = vperm.xlu0 %1461, %v1448
      %v1463 = vpop.permute.xlu0 %1462
      %1466 = vset.pattern.permute.xlu0 0
      %1467 = vperm.xlu0 %1466, %v1449
      %v1468 = vpop.permute.xlu0 %1467
      %v1471 = vsel %vm1331, %v1442, 0
      %v1474 = vsel %vm1331, %v1443, 0
      %v1477 = vsel %vm1331, %v1444, 0
      %v1480 = vsel %vm1331, %v1445, 0
      %1482 = vmatprep.subr.mxu0 0.0
      %1483 = vmatpush1.msra.mxu0 %v1437
      %1484 = vmatprep.subr.mxu0 0.0
      %1485 = vmatpush1.msra.mxu0 %v1438
      %1486 = vmatprep.subr.mxu0 0.0
      %1487 = vmatpush1.msra.mxu0 %v1439
      %1488 = vmatprep.subr.mxu0 0.0
      %1489 = vmatpush1.msra.mxu0 %v1440
      %1490 = vmatprep.subr.mxu0 0.0
      %1491 = vmatpush1.msra.mxu0 %v1441
      %1492 = vmatprep.subr.mxu0 0.0
      %1493 = vmatpush1.msra.mxu0 0.0
      %1494 = vmatprep.subr.mxu0 0.0
      %1495 = vmatpush1.msra.mxu0 0.0
      %1496 = vmatprep.subr.mxu0 0.0
      %1497 = vmatpush1.msra.mxu0 0.0
      %1498 = vmatprep.subr.mxu0 0.0
      %1499 = vmatpush1.msra.mxu0 0.0
      %1500 = vmatprep.subr.mxu0 0.0
      %1501 = vmatpush1.msra.mxu0 0.0
      %1502 = vmatprep.subr.mxu0 0.0
      %1503 = vmatpush1.msra.mxu0 0.0
      %1504 = vmatprep.subr.mxu0 0.0
      %1505 = vmatpush1.msra.mxu0 0.0
      %1506 = vmatprep.subr.mxu0 0.0
      %1507 = vmatpush1.msra.mxu0 0.0
      %1508 = vmatprep.subr.mxu0 0.0
      %1509 = vmatpush1.msra.mxu0 0.0
      %1510 = vmatprep.subr.mxu0 0.0
      %1511 = vmatpush1.msra.mxu0 0.0
      %1512 = vmatprep.subr.mxu0 0.0
      %1513 = vmatpush1.msra.mxu0 0.0
      %1514 = vmatprep.subr.mxu0 0.0
      %1515 = vmatpush1.msra.mxu0 0.0
      %1516 = vmatprep.subr.mxu0 0.0
      %1517 = vmatpush1.msra.mxu0 0.0
      %1518 = vmatprep.subr.mxu0 0.0
      %1519 = vmatpush1.msra.mxu0 0.0
      %1520 = vmatprep.subr.mxu0 0.0
      %1521 = vmatpush1.msra.mxu0 0.0
      %1522 = vmatprep.subr.mxu0 0.0
      %1523 = vmatpush1.msra.mxu0 0.0
      %1524 = vmatprep.subr.mxu0 0.0
      %1525 = vmatpush1.msra.mxu0 0.0
      %1526 = vmatprep.subr.mxu0 0.0
      %1527 = vmatpush1.msra.mxu0 0.0
      %1528 = vmatprep.subr.mxu0 0.0
      %1529 = vmatpush1.msra.mxu0 0.0
      %1530 = vmatprep.subr.mxu0 0.0
      %1531 = vmatpush1.msra.mxu0 0.0
      %1532 = vmatprep.subr.mxu0 0.0
      %1533 = vmatpush1.msra.mxu0 0.0
      %1534 = vmatprep.subr.mxu0 0.0
      %1535 = vmatpush1.msra.mxu0 0.0
      %1536 = vmatprep.subr.mxu0 0.0
      %1537 = vmatpush1.msra.mxu0 0.0
      %1538 = vmatprep.subr.mxu0 0.0
      %1539 = vmatpush1.msra.mxu0 0.0
      %1540 = vmatprep.subr.mxu0 0.0
      %1541 = vmatpush1.msra.mxu0 0.0
      %1542 = vmatprep.subr.mxu0 0.0
      %1543 = vmatpush1.msra.mxu0 0.0
      %1544 = vmatprep.subr.mxu0 0.0
      %1545 = vmatpush1.msra.mxu0 0.0
      %1546 = vmatprep.mubr.f32.mxu0 0.0
      %1547 = vmatmul.mubr.f32.gmra.mrb[0].mxu0 %v1471
      %v1548 = vpop.f32.mrb[0].mxu0
      %v1549 = vadd.f32 %v1453, %v1548
      %v1550 = vpop.f32.mrb[0].mxu0
      %1551 = vmatprep.mubr.f32.mxu0 0.0
      %1552 = vmatmul.mubr.f32.gmra.mrb[0].mxu0 %v1474
      %v1553 = vpop.f32.mrb[0].mxu0
      %v1554 = vadd.f32 %v1458, %v1553
      %v1555 = vpop.f32.mrb[0].mxu0
      %1556 = vmatprep.mubr.f32.mxu0 0.0
      %1557 = vmatmul.mubr.f32.gmra.mrb[0].mxu0 %v1477
      %v1558 = vpop.f32.mrb[0].mxu0
      %v1559 = vadd.f32 %v1463, %v1558
      %v1560 = vpop.f32.mrb[0].mxu0
      %1561 = vmatprep.mubr.f32.mxu0 0.0
      %1562 = vmatmul.mubr.f32.gmra.mrb[0].mxu0 %v1480
      %v1563 = vpop.f32.mrb[0].mxu0
      %v1564 = vadd.f32 %v1468, %v1563
      %v1565 = vpop.f32.mrb[0].mxu0
      %1566 = vdwg.mxu0
      %v1567 = vld [vmem:[%s11] sm:$0xf]
      %vm1568 = vcmask 31744
      %v1570 = vsel %vm1568, %v1549, 0
      %v1573 = vsel %vm1568, %v1554, 0
      %v1576 = vsel %vm1568, %v1559, 0
      %v1579 = vsel %vm1568, %v1564, 0
      %v1582 = vsel %vm1202, %v1567, 0
      %1584 = vmatprep.subr.mxu0 0.0
      %1585 = vmatpush1.msra.mxu0 %v1582
      %1586 = vmatprep.subr.mxu0 0.0
      %1587 = vmatpush1.msra.mxu0 0.0
      %1588 = vmatprep.subr.mxu0 0.0
      %1589 = vmatpush1.msra.mxu0 0.0
      %1590 = vmatprep.subr.mxu0 0.0
      %1591 = vmatpush1.msra.mxu0 0.0
      %1592 = vmatprep.subr.mxu0 0.0
      %1593 = vmatpush1.msra.mxu0 0.0
      %1594 = vmatprep.subr.mxu0 0.0
      %1595 = vmatpush1.msra.mxu0 0.0
      %1596 = vmatprep.subr.mxu0 0.0
      %1597 = vmatpush1.msra.mxu0 0.0
      %1598 = vmatprep.subr.mxu0 0.0
      %1599 = vmatpush1.msra.mxu0 0.0
      %1600 = vmatprep.subr.mxu0 0.0
      %1601 = vmatpush1.msra.mxu0 0.0
      %1602 = vmatprep.subr.mxu0 0.0
      %1603 = vmatpush1.msra.mxu0 0.0
      %1604 = vmatprep.subr.mxu0 0.0
      %1605 = vmatpush1.msra.mxu0 0.0
      %1606 = vmatprep.subr.mxu0 0.0
      %1607 = vmatpush1.msra.mxu0 0.0
      %1608 = vmatprep.subr.mxu0 0.0
      %1609 = vmatpush1.msra.mxu0 0.0
      %1610 = vmatprep.subr.mxu0 0.0
      %1611 = vmatpush1.msra.mxu0 0.0
      %1612 = vmatprep.subr.mxu0 0.0
      %1613 = vmatpush1.msra.mxu0 0.0
      %1614 = vmatprep.subr.mxu0 0.0
      %1615 = vmatpush1.msra.mxu0 0.0
      %1616 = vmatprep.subr.mxu0 0.0
      %1617 = vmatpush1.msra.mxu0 0.0
      %1618 = vmatprep.subr.mxu0 0.0
      %1619 = vmatpush1.msra.mxu0 0.0
      %1620 = vmatprep.subr.mxu0 0.0
      %1621 = vmatpush1.msra.mxu0 0.0
      %1622 = vmatprep.subr.mxu0 0.0
      %1623 = vmatpush1.msra.mxu0 0.0
      %1624 = vmatprep.subr.mxu0 0.0
      %1625 = vmatpush1.msra.mxu0 0.0
      %1626 = vmatprep.subr.mxu0 0.0
      %1627 = vmatpush1.msra.mxu0 0.0
      %1628 = vmatprep.subr.mxu0 0.0
      %1629 = vmatpush1.msra.mxu0 0.0
      %1630 = vmatprep.subr.mxu0 0.0
      %1631 = vmatpush1.msra.mxu0 0.0
      %1632 = vmatprep.subr.mxu0 0.0
      %1633 = vmatpush1.msra.mxu0 0.0
      %1634 = vmatprep.subr.mxu0 0.0
      %1635 = vmatpush1.msra.mxu0 0.0
      %1636 = vmatprep.subr.mxu0 0.0
      %1637 = vmatpush1.msra.mxu0 0.0
      %1638 = vmatprep.subr.mxu0 0.0
      %1639 = vmatpush1.msra.mxu0 0.0
      %1640 = vmatprep.subr.mxu0 0.0
      %1641 = vmatpush1.msra.mxu0 0.0
      %1642 = vmatprep.subr.mxu0 0.0
      %1643 = vmatpush1.msra.mxu0 0.0
      %1644 = vmatprep.subr.mxu0 0.0
      %1645 = vmatpush1.msra.mxu0 0.0
      %1646 = vmatprep.subr.mxu0 0.0
      %1647 = vmatpush1.msra.mxu0 0.0
      %1648 = vmatprep.mubr.f32.mxu0 0.0
      %1649 = vmatmul.mubr.f32.gmra.mrb[0].mxu0 %v1570
      %v1650 = vpop.f32.mrb[0].mxu0
      %v1651 = vadd.f32 0.0, %v1650
      %v1652 = vpop.f32.mrb[0].mxu0
      %1653 = vmatprep.mubr.f32.mxu0 0.0
      %1654 = vmatmul.mubr.f32.gmra.mrb[0].mxu0 %v1573
      %v1655 = vpop.f32.mrb[0].mxu0
      %v1656 = vadd.f32 0.0, %v1655
      %v1657 = vpop.f32.mrb[0].mxu0
      %1658 = vmatprep.mubr.f32.mxu0 0.0
      %1659 = vmatmul.mubr.f32.gmra.mrb[0].mxu0 %v1576
      %v1660 = vpop.f32.mrb[0].mxu0
      %v1661 = vadd.f32 0.0, %v1660
      %v1662 = vpop.f32.mrb[0].mxu0
      %1663 = vmatprep.mubr.f32.mxu0 0.0
      %1664 = vmatmul.mubr.f32.gmra.mrb[0].mxu0 %v1579
      %v1665 = vpop.f32.mrb[0].mxu0
      %v1666 = vadd.f32 0.0, %v1665
      %v1667 = vpop.f32.mrb[0].mxu0
      %1668 = vdwg.mxu0
      %v1669 = vld [vmem:[%s12] sm:$0xff]
      %v1670 = vld [vmem:[%s12 + $0x8] sm:$0xff]
      %v1671 = vld [vmem:[%s12 + $0x10] sm:$0xff]
      %v1672 = vld [vmem:[%s12 + $0x18] sm:$0xff]
      %v1673 = vld [vmem:[%s13] sm:$0xff]
      %v1674 = vld [vmem:[%s13 + $0x8] sm:$0xff]
      %v1675 = vld [vmem:[%s13 + $0x10] sm:$0xff]
      %v1676 = vld [vmem:[%s13 + $0x18] sm:$0xff]
      %v1678 = vsel %vm804, %v1669, 0
      %v1681 = vsel %vm804, %v1670, 0
      %v1684 = vsel %vm804, %v1671, 0
      %v1687 = vsel %vm804, %v1672, 0
      %1689 = vmatprep.subr.mxu0 0.0
      %1690 = vmatpush1.msra.mxu0 %v1651
      %1691 = vmatprep.subr.mxu0 0.0
      %1692 = vmatpush1.msra.mxu0 %v1656
      %1693 = vmatprep.subr.mxu0 0.0
      %1694 = vmatpush1.msra.mxu0 %v1661
      %1695 = vmatprep.subr.mxu0 0.0
      %1696 = vmatpush1.msra.mxu0 %v1666
      %1697 = vmatprep.subr.mxu0 0.0
      %1698 = vmatpush1.msra.mxu0 0.0
      %1699 = vmatprep.subr.mxu0 0.0
      %1700 = vmatpush1.msra.mxu0 0.0
      %1701 = vmatprep.subr.mxu0 0.0
      %1702 = vmatpush1.msra.mxu0 0.0
      %1703 = vmatprep.subr.mxu0 0.0
      %1704 = vmatpush1.msra.mxu0 0.0
      %1705 = vmatprep.subr.mxu0 0.0
      %1706 = vmatpush1.msra.mxu0 0.0
      %1707 = vmatprep.subr.mxu0 0.0
      %1708 = vmatpush1.msra.mxu0 0.0
      %1709 = vmatprep.subr.mxu0 0.0
      %1710 = vmatpush1.msra.mxu0 0.0
      %1711 = vmatprep.subr.mxu0 0.0
      %1712 = vmatpush1.msra.mxu0 0.0
      %1713 = vmatprep.subr.mxu0 0.0
      %1714 = vmatpush1.msra.mxu0 0.0
      %1715 = vmatprep.subr.mxu0 0.0
      %1716 = vmatpush1.msra.mxu0 0.0
      %1717 = vmatprep.subr.mxu0 0.0
      %1718 = vmatpush1.msra.mxu0 0.0
      %1719 = vmatprep.subr.mxu0 0.0
      %1720 = vmatpush1.msra.mxu0 0.0
      %1721 = vmatprep.subr.mxu0 0.0
      %1722 = vmatpush1.msra.mxu0 0.0
      %1723 = vmatprep.subr.mxu0 0.0
      %1724 = vmatpush1.msra.mxu0 0.0
      %1725 = vmatprep.subr.mxu0 0.0
      %1726 = vmatpush1.msra.mxu0 0.0
      %1727 = vmatprep.subr.mxu0 0.0
      %1728 = vmatpush1.msra.mxu0 0.0
      %1729 = vmatprep.subr.mxu0 0.0
      %1730 = vmatpush1.msra.mxu0 0.0
      %1731 = vmatprep.subr.mxu0 0.0
      %1732 = vmatpush1.msra.mxu0 0.0
      %1733 = vmatprep.subr.mxu0 0.0
      %1734 = vmatpush1.msra.mxu0 0.0
      %1735 = vmatprep.subr.mxu0 0.0
      %1736 = vmatpush1.msra.mxu0 0.0
      %1737 = vmatprep.subr.mxu0 0.0
      %1738 = vmatpush1.msra.mxu0 0.0
      %1739 = vmatprep.subr.mxu0 0.0
      %1740 = vmatpush1.msra.mxu0 0.0
      %1741 = vmatprep.subr.mxu0 0.0
      %1742 = vmatpush1.msra.mxu0 0.0
      %1743 = vmatprep.subr.mxu0 0.0
      %1744 = vmatpush1.msra.mxu0 0.0
      %1745 = vmatprep.subr.mxu0 0.0
      %1746 = vmatpush1.msra.mxu0 0.0
      %1747 = vmatprep.subr.mxu0 0.0
      %1748 = vmatpush1.msra.mxu0 0.0
      %1749 = vmatprep.subr.mxu0 0.0
      %1750 = vmatpush1.msra.mxu0 0.0
      %1751 = vmatprep.subr.mxu0 0.0
      %1752 = vmatpush1.msra.mxu0 0.0
      %1753 = vmatprep.mubr.f32.mxu0 0.0
      %1754 = vmatmul.mubr.f32.gmra.mrb[0].mxu0 %v1678
      %v1755 = vpop.f32.mrb[0].mxu0
      %v1756 = vadd.f32 %v1673, %v1755
      %v1757 = vpop.f32.mrb[0].mxu0
      %1758 = vmatprep.mubr.f32.mxu0 0.0
      %1759 = vmatmul.mubr.f32.gmra.mrb[0].mxu0 %v1681
      %v1760 = vpop.f32.mrb[0].mxu0
      %v1761 = vadd.f32 %v1674, %v1760
      %v1762 = vpop.f32.mrb[0].mxu0
      %1763 = vmatprep.mubr.f32.mxu0 0.0
      %1764 = vmatmul.mubr.f32.gmra.mrb[0].mxu0 %v1684
      %v1765 = vpop.f32.mrb[0].mxu0
      %v1766 = vadd.f32 %v1675, %v1765
      %v1767 = vpop.f32.mrb[0].mxu0
      %1768 = vmatprep.mubr.f32.mxu0 0.0
      %1769 = vmatmul.mubr.f32.gmra.mrb[0].mxu0 %v1687
      %v1770 = vpop.f32.mrb[0].mxu0
      %v1771 = vadd.f32 %v1676, %v1770
      %v1772 = vpop.f32.mrb[0].mxu0
      %1773 = vdwg.mxu0
      %v1774 = vmul.f32 %v1756, 0.5
      %v1775 = vmul.f32 %v1761, 0.5
      %v1776 = vmul.f32 %v1766, 0.5
      %v1777 = vmul.f32 %v1771, 0.5
      %v1778 = vmul.f32 %v1756, 0.70710677
      %v1779 = vmul.f32 %v1761, 0.70710677
      %v1780 = vmul.f32 %v1766, 0.70710677
      %v1781 = vmul.f32 %v1771, 0.70710677
      %vm1782 = vcmp.ge.f32.partialorder %v1778, 0.0
      %vm1783 = vcmp.ge.f32.partialorder %v1779, 0.0
      %vm1784 = vcmp.ge.f32.partialorder %v1780, 0.0
      %vm1785 = vcmp.ge.f32.partialorder %v1781, 0.0
      %v1786 = vsel %vm1782, 1.0, -1.0
      %v1787 = vsel %vm1783, 1.0, -1.0
      %v1788 = vsel %vm1784, 1.0, -1.0
      %v1789 = vsel %vm1785, 1.0, -1.0
      %v1790 = vand.u32 2147483647, %v1778
      %v1791 = vand.u32 2147483647, %v1779
      %v1792 = vand.u32 2147483647, %v1780
      %v1793 = vand.u32 2147483647, %v1781
      %v1794 = vmul.f32 %v1790, 0.3275911
      %v1795 = vmul.f32 %v1791, 0.3275911
      %v1796 = vmul.f32 %v1792, 0.3275911
      %v1797 = vmul.f32 %v1793, 0.3275911
      %v1798 = vadd.f32 %v1794, 1.0
      %v1799 = vadd.f32 %v1795, 1.0
      %v1800 = vadd.f32 %v1796, 1.0
      %v1801 = vadd.f32 %v1797, 1.0
      %v1802 = vrcp.pop %v1798
      %v1803 = vmul.f32 1.0, %v1802
      %v1804 = vrcp.pop %v1799
      %v1805 = vmul.f32 1.0, %v1804
      %v1806 = vrcp.pop %v1800
      %v1807 = vmul.f32 1.0, %v1806
      %v1808 = vrcp.pop %v1801
      %v1809 = vmul.f32 1.0, %v1808
      %v1810 = vmul.f32 %v1803, 1.0614054
      %v1811 = vmul.f32 %v1805, 1.0614054
      %v1812 = vmul.f32 %v1807, 1.0614054
      %v1813 = vmul.f32 %v1809, 1.0614054
      %v1814 = vadd.f32 %v1810, -1.4531521
      %v1815 = vadd.f32 %v1811, -1.4531521
      %v1816 = vadd.f32 %v1812, -1.4531521
      %v1817 = vadd.f32 %v1813, -1.4531521
      %v1818 = vmul.f32 %v1814, %v1803
      %v1819 = vmul.f32 %v1815, %v1805
      %v1820 = vmul.f32 %v1816, %v1807
      %v1821 = vmul.f32 %v1817, %v1809
      %v1822 = vadd.f32 %v1818, 1.4214138
      %v1823 = vadd.f32 %v1819, 1.4214138
      %v1824 = vadd.f32 %v1820, 1.4214138
      %v1825 = vadd.f32 %v1821, 1.4214138
      %v1826 = vmul.f32 %v1822, %v1803
      %v1827 = vmul.f32 %v1823, %v1805
      %v1828 = vmul.f32 %v1824, %v1807
      %v1829 = vmul.f32 %v1825, %v1809
      %v1830 = vadd.f32 %v1826, -0.28449672
      %v1831 = vadd.f32 %v1827, -0.28449672
      %v1832 = vadd.f32 %v1828, -0.28449672
      %v1833 = vadd.f32 %v1829, -0.28449672
      %v1834 = vmul.f32 %v1830, %v1803
      %v1835 = vmul.f32 %v1831, %v1805
      %v1836 = vmul.f32 %v1832, %v1807
      %v1837 = vmul.f32 %v1833, %v1809
      %v1838 = vadd.f32 %v1834, 0.2548296
      %v1839 = vadd.f32 %v1835, 0.2548296
      %v1840 = vadd.f32 %v1836, 0.2548296
      %v1841 = vadd.f32 %v1837, 0.2548296
      %v1842 = vmul.f32 %v1838, %v1803
      %v1843 = vmul.f32 %v1839, %v1805
      %v1844 = vmul.f32 %v1840, %v1807
      %v1845 = vmul.f32 %v1841, %v1809
      %v1846 = vsub.f32 0.0, %v1790
      %v1847 = vsub.f32 0.0, %v1791
      %v1848 = vsub.f32 0.0, %v1792
      %v1849 = vsub.f32 0.0, %v1793
      %v1850 = vmul.f32 %v1846, %v1790
      %v1851 = vmul.f32 %v1847, %v1791
      %v1852 = vmul.f32 %v1848, %v1792
      %v1853 = vmul.f32 %v1849, %v1793
      %v1854 = vmul.f32 %v1850, 1.442695
      %v1855 = vpow.pop %v1854
      %v1856 = vmul.f32 %v1851, 1.442695
      %v1857 = vpow.pop %v1856
      %v1858 = vmul.f32 %v1852, 1.442695
      %v1859 = vpow.pop %v1858
      %v1860 = vmul.f32 %v1853, 1.442695
      %v1861 = vpow.pop %v1860
      %v1862 = vmul.f32 %v1842, %v1855
      %v1863 = vmul.f32 %v1843, %v1857
      %v1864 = vmul.f32 %v1844, %v1859
      %v1865 = vmul.f32 %v1845, %v1861
      %v1866 = vsub.f32 1.0, %v1862
      %v1867 = vsub.f32 1.0, %v1863
      %v1868 = vsub.f32 1.0, %v1864
      %v1869 = vsub.f32 1.0, %v1865
      %v1870 = vmul.f32 %v1786, %v1866
      %v1871 = vmul.f32 %v1787, %v1867
      %v1872 = vmul.f32 %v1788, %v1868
      %v1873 = vmul.f32 %v1789, %v1869
      %v1874 = vadd.f32 %v1870, 1.0
      %v1875 = vadd.f32 %v1871, 1.0
      %v1876 = vadd.f32 %v1872, 1.0
      %v1877 = vadd.f32 %v1873, 1.0
      %v1878 = vmul.f32 %v1774, %v1874
      %v1879 = vmul.f32 %v1775, %v1875
      %v1880 = vmul.f32 %v1776, %v1876
      %v1881 = vmul.f32 %v1777, %v1877
      %v1882 = vld [vmem:[%s14] sm:$0xff]
      %v1883 = vld [vmem:[%s14 + $0x8] sm:$0xff]
      %v1884 = vld [vmem:[%s14 + $0x10] sm:$0xff]
      %v1885 = vld [vmem:[%s14 + $0x18] sm:$0xff]
      %v1886 = vld [vmem:[%s15] sm:$0xff]
      %v1887 = vld [vmem:[%s15 + $0x8] sm:$0xff]
      %v1888 = vld [vmem:[%s15 + $0x10] sm:$0xff]
      %v1889 = vld [vmem:[%s15 + $0x18] sm:$0xff]
      %v1891 = vsel %vm804, %v1882, 0
      %v1894 = vsel %vm804, %v1883, 0
      %v1897 = vsel %vm804, %v1884, 0
      %v1900 = vsel %vm804, %v1885, 0
      %1902 = vmatprep.subr.mxu0 0.0
      %1903 = vmatpush1.msra.mxu0 %v1878
      %1904 = vmatprep.subr.mxu0 0.0
      %1905 = vmatpush1.msra.mxu0 %v1879
      %1906 = vmatprep.subr.mxu0 0.0
      %1907 = vmatpush1.msra.mxu0 %v1880
      %1908 = vmatprep.subr.mxu0 0.0
      %1909 = vmatpush1.msra.mxu0 %v1881
      %1910 = vmatprep.subr.mxu0 0.0
      %1911 = vmatpush1.msra.mxu0 0.0
      %1912 = vmatprep.subr.mxu0 0.0
      %1913 = vmatpush1.msra.mxu0 0.0
      %1914 = vmatprep.subr.mxu0 0.0
      %1915 = vmatpush1.msra.mxu0 0.0
      %1916 = vmatprep.subr.mxu0 0.0
      %1917 = vmatpush1.msra.mxu0 0.0
      %1918 = vmatprep.subr.mxu0 0.0
      %1919 = vmatpush1.msra.mxu0 0.0
      %1920 = vmatprep.subr.mxu0 0.0
      %1921 = vmatpush1.msra.mxu0 0.0
      %1922 = vmatprep.subr.mxu0 0.0
      %1923 = vmatpush1.msra.mxu0 0.0
      %1924 = vmatprep.subr.mxu0 0.0
      %1925 = vmatpush1.msra.mxu0 0.0
      %1926 = vmatprep.subr.mxu0 0.0
      %1927 = vmatpush1.msra.mxu0 0.0
      %1928 = vmatprep.subr.mxu0 0.0
      %1929 = vmatpush1.msra.mxu0 0.0
      %1930 = vmatprep.subr.mxu0 0.0
      %1931 = vmatpush1.msra.mxu0 0.0
      %1932 = vmatprep.subr.mxu0 0.0
      %1933 = vmatpush1.msra.mxu0 0.0
      %1934 = vmatprep.subr.mxu0 0.0
      %1935 = vmatpush1.msra.mxu0 0.0
      %1936 = vmatprep.subr.mxu0 0.0
      %1937 = vmatpush1.msra.mxu0 0.0
      %1938 = vmatprep.subr.mxu0 0.0
      %1939 = vmatpush1.msra.mxu0 0.0
      %1940 = vmatprep.subr.mxu0 0.0
      %1941 = vmatpush1.msra.mxu0 0.0
      %1942 = vmatprep.subr.mxu0 0.0
      %1943 = vmatpush1.msra.mxu0 0.0
      %1944 = vmatprep.subr.mxu0 0.0
      %1945 = vmatpush1.msra.mxu0 0.0
      %1946 = vmatprep.subr.mxu0 0.0
      %1947 = vmatpush1.msra.mxu0 0.0
      %1948 = vmatprep.subr.mxu0 0.0
      %1949 = vmatpush1.msra.mxu0 0.0
      %1950 = vmatprep.subr.mxu0 0.0
      %1951 = vmatpush1.msra.mxu0 0.0
      %1952 = vmatprep.subr.mxu0 0.0
      %1953 = vmatpush1.msra.mxu0 0.0
      %1954 = vmatprep.subr.mxu0 0.0
      %1955 = vmatpush1.msra.mxu0 0.0
      %1956 = vmatprep.subr.mxu0 0.0
      %1957 = vmatpush1.msra.mxu0 0.0
      %1958 = vmatprep.subr.mxu0 0.0
      %1959 = vmatpush1.msra.mxu0 0.0
      %1960 = vmatprep.subr.mxu0 0.0
      %1961 = vmatpush1.msra.mxu0 0.0
      %1962 = vmatprep.subr.mxu0 0.0
      %1963 = vmatpush1.msra.mxu0 0.0
      %1964 = vmatprep.subr.mxu0 0.0
      %1965 = vmatpush1.msra.mxu0 0.0
      %1966 = vmatprep.mubr.f32.mxu0 0.0
      %1967 = vmatmul.mubr.f32.gmra.mrb[0].mxu0 %v1891
      %v1968 = vpop.f32.mrb[0].mxu0
      %v1969 = vadd.f32 %v1886, %v1968
      %v1970 = vpop.f32.mrb[0].mxu0
      %1971 = vmatprep.mubr.f32.mxu0 0.0
      %1972 = vmatmul.mubr.f32.gmra.mrb[0].mxu0 %v1894
      %v1973 = vpop.f32.mrb[0].mxu0
      %v1974 = vadd.f32 %v1887, %v1973
      %v1975 = vpop.f32.mrb[0].mxu0
      %1976 = vmatprep.mubr.f32.mxu0 0.0
      %1977 = vmatmul.mubr.f32.gmra.mrb[0].mxu0 %v1897
      %v1978 = vpop.f32.mrb[0].mxu0
      %v1979 = vadd.f32 %v1888, %v1978
      %v1980 = vpop.f32.mrb[0].mxu0
      %1981 = vmatprep.mubr.f32.mxu0 0.0
      %1982 = vmatmul.mubr.f32.gmra.mrb[0].mxu0 %v1900
      %v1983 = vpop.f32.mrb[0].mxu0
      %v1984 = vadd.f32 %v1889, %v1983
      %v1985 = vpop.f32.mrb[0].mxu0
      %1986 = vdwg.mxu0
      %v1987 = vxor.u32 %v1969, 2147483648
      %v1988 = vxor.u32 %v1974, 2147483648
      %v1989 = vxor.u32 %v1979, 2147483648
      %v1990 = vxor.u32 %v1984, 2147483648
      %v1991 = vmul.f32 %v1987, 1.442695
      %v1992 = vpow.pop %v1991
      %v1993 = vmul.f32 %v1988, 1.442695
      %v1994 = vpow.pop %v1993
      %v1995 = vmul.f32 %v1989, 1.442695
      %v1996 = vpow.pop %v1995
      %v1997 = vmul.f32 %v1990, 1.442695
      %v1998 = vpow.pop %v1997
      %v1999 = vadd.f32 %v1992, 1.0
      %v2000 = vadd.f32 %v1994, 1.0
      %v2001 = vadd.f32 %v1996, 1.0
      %v2002 = vadd.f32 %v1998, 1.0
      %v2003 = vrcp.pop %v1999
      %v2004 = vmul.f32 1.0, %v2003
      %v2005 = vrcp.pop %v2000
      %v2006 = vmul.f32 1.0, %v2005
      %v2007 = vrcp.pop %v2001
      %v2008 = vmul.f32 1.0, %v2007
      %v2009 = vrcp.pop %v2002
      %v2010 = vmul.f32 1.0, %v2009
      %vm2011 = vcmask 7168
      %2012 = vst.msk [vmem:[%s541] sm:$0xff] %vm2011, %v2004
      %2013 = vst.msk [vmem:[%s541 + $0x8] sm:$0xff] %vm2011, %v2006
      %2014 = vst.msk [vmem:[%s541 + $0x10] sm:$0xff] %vm2011, %v2008
      %2015 = vst.msk [vmem:[%s541 + $0x18] sm:$0xff] %vm2011, %v2010
      %p2016 = scmp.lt.s32.totalorder %s27, 1
      %s2017 = scalar_select %p2016, %s27, 1
      %s2018 = smul.addr %s2017, 4
      %s2019 = smul.addr %s2018, 8
      %s2020 = scalar_lea.vmem %s16, %s2019
      // Predicated region
      $region85: #{fre_enc_forward.3} parent=83 // pred_check
        %p2021 = pneg %p391
      $region86: #{fre_enc_forward.3} parent=83 // pred_check_branch
        %2023 = sbr.rel (%p2021) target = $region88
      $region87: #{fre_enc_forward.3} parent=83 // pred_region
        _
      $region88: #{fre_enc_forward.3} parent=83 // pred_fallthru
        _
    $region84: #{fre_enc_forward.3} parent=5 // pred_fallthru
      _
    %p2024 = scmp.le.s32.totalorder 2, %s22
    // Predicated region
    $region89: #{fre_enc_forward.3} parent=5 // pred_check
      %p2025 = pneg %p2024
    $region90: #{fre_enc_forward.3} parent=5 // pred_check_branch
      %2027 = sbr.rel (%p2025) target = $region92
    $region91: #{fre_enc_forward.3} parent=5 // pred_region
      %s2028 = ssub.s32 %s22, 2
      // Predicated region
      $region93: #{fre_enc_forward.3} parent=91 // pred_check
        %p2029 = pneg %p397
      $region94: #{fre_enc_forward.3} parent=91 // pred_check_branch
        %2031 = sbr.rel (%p2029) target = $region96
      $region95: #{fre_enc_forward.3} parent=91 // pred_region
        %p2032 = scmp.lt.s32.totalorder %s28, 1
        %s2033 = scalar_select %p2032, %s28, 1
        %s2034 = smul.addr %s2033, 4
        %s2035 = smul.addr %s2034, 8
        %s2036 = scalar_lea.vmem %s16, %s2035
      $region96: #{fre_enc_forward.3} parent=91 // pred_fallthru
        _
    $region92: #{fre_enc_forward.3} parent=5 // pred_fallthru
      _
  $region6: #{fre_enc_forward.3} parent=0 // loop_footer
    %s26 = sadd.s32 1, %s22
  $region7: #{fre_enc_forward.3} parent=0 // loop_footer_branch
    %21 = sbr.rel target = $region3
  $region8: #{fre_enc_forward.3} parent=0 // loop_exit
    _

</llo_original>
